<compile_context>
chip_gen: v6e
topology: v6e:2x2x1
jax: 0.10.0
libtpu: 0.0.40
codegen_flags: <defaults>
</compile_context>

<pallas_src>
import math
import jax
import jax.numpy as jnp
from jax.experimental import pallas as pl
from jax.experimental.pallas import tpu as pltpu


def _round_up(n, m):
    return ((n + m - 1) // m) * m


def mlp_decoder_kernel(
    t_ref, tconst_ref, x_ref,
    w_te1_ref, b_te1_ref, w_te2_ref, b_te2_ref,
    w_proj_ref, b_proj_ref,
    w0_ref, b0_ref, w1_ref, b1_ref,
    w_head_ref, b_head_ref,
    o_ref,
):
    f32 = jnp.float32
    bf16 = jnp.bfloat16

    # ---- sinusoidal timestep embedding via a single sin() with per-lane phase ----
    # tconst row 0 = [freqs_half, freqs_half]; row 1 = [pi/2]*half ++ [0]*half
    # sin(a + pi/2) == cos(a)  =>  result == concat([cos(a), sin(a)], -1)
    t = t_ref[...]                          # [TB, 1]   f32
    freqs = tconst_ref[0:1, :]              # [1, dim_t]
    phase = tconst_ref[1:2, :]              # [1, dim_t]
    emb0 = jnp.sin(t * freqs + phase)       # [TB, dim_t]  f32

    # ---- time_embed: Linear -> SiLU -> Linear (bf16 MXU inputs, f32 accumulate) ----
    h = jnp.dot(emb0.astype(bf16), w_te1_ref[...], preferred_element_type=f32) + b_te1_ref[...]
    h = h * jax.nn.sigmoid(h)               # SiLU in f32 (EUP/VPU)
    emb = jnp.dot(h.astype(bf16), w_te2_ref[...], preferred_element_type=f32) + b_te2_ref[...]

    # ---- proj(x) + emb ----
    xp = jnp.dot(x_ref[...], w_proj_ref[...], preferred_element_type=f32)   # x already bf16
    xp = xp + b_proj_ref[...] + emb

    # ---- MLP blocks: Linear -> ReLU -> (Dropout = identity in eval mode) ----
    h = jnp.dot(xp.astype(bf16), w0_ref[...], preferred_element_type=f32) + b0_ref[...]
    h = jnp.maximum(h, 0.0)
    h = jnp.dot(h.astype(bf16), w1_ref[...], preferred_element_type=f32) + b1_ref[...]
    h = jnp.maximum(h, 0.0)

    # ---- head (output lane-padded to a multiple of 128 -> dense stores) ----
    out = jnp.dot(h.astype(bf16), w_head_ref[...], preferred_element_type=f32) + b_head_ref[...]
    o_ref[...] = out.astype(o_ref.dtype)


def mlp_decoder(x, timesteps, params, *, dim_t=128, max_period=10000, tile_b=128):
    """x: [B, d_in] float, timesteps: [B] float/int. Returns [B, d_out] float32."""
    x = x.astype(jnp.float32)
    B, d_in = x.shape
    half = dim_t // 2
    assert dim_t % 2 == 0, "odd dim_t branch not implemented"

    d_out = params["w_head"].shape[1]
    d_hidden1 = params["w1"].shape[1]

    bf = jnp.bfloat16

    # --- batch / lane padding (zero rows & cols keep the math exact) ---
    B_pad = _round_up(B, tile_b)
    d_in_pad = _round_up(d_in, 128)
    d_out_pad = _round_up(d_out, 128)

    x_p = jnp.zeros((B_pad, d_in_pad), bf).at[:B, :d_in].set(x.astype(bf))
    t_p = jnp.zeros((B_pad, 1), jnp.float32).at[:B, 0].set(timesteps.astype(jnp.float32))

    # frequency + phase table packed into one small operand
    freqs_half = jnp.exp(-math.log(max_period) * jnp.arange(half, dtype=jnp.float32) / half)
    freqs_full = jnp.concatenate([freqs_half, freqs_half])
    phase = jnp.concatenate([jnp.full((half,), jnp.pi / 2, jnp.float32),
                             jnp.zeros((half,), jnp.float32)])
    tconst = jnp.stack([freqs_full, phase])                      # [2, dim_t]

    # weights -> bf16 (MXU path); biases stay f32 (added post-accumulation)
    w_proj = jnp.zeros((d_in_pad, dim_t), bf).at[:d_in, :].set(params["w_proj"].astype(bf))
    w_head = jnp.zeros((d_hidden1, d_out_pad), bf).at[:, :d_out].set(params["w_head"].astype(bf))
    b_head = jnp.zeros((1, d_out_pad), jnp.float32).at[:, :d_out].set(params["b_head"])

    weights = [
        params["w_te1"].astype(bf), params["b_te1"].astype(jnp.float32),
        params["w_te2"].astype(bf), params["b_te2"].astype(jnp.float32),
        w_proj, params["b_proj"].astype(jnp.float32),
        params["w0"].astype(bf), params["b0"].astype(jnp.float32),
        params["w1"].astype(bf), params["b1"].astype(jnp.float32),
        w_head, b_head,
    ]

    num_tiles = B_pad // tile_b

    def batch_spec(last):
        return pl.BlockSpec((tile_b, last), lambda i: (i, 0))

    def resident_spec(arr):
        # full-array block, constant index -> stays VMEM-resident across grid steps
        return pl.BlockSpec(arr.shape, lambda i: (0, 0))

    in_specs = (
        [batch_spec(1), resident_spec(tconst), batch_spec(d_in_pad)]
        + [resident_spec(w) for w in weights]
    )

    out_pad = pl.pallas_call(
        mlp_decoder_kernel,
        out_shape=jax.ShapeDtypeStruct((B_pad, d_out_pad), jnp.float32),
        grid_spec=pltpu.PrefetchScalarGridSpec(
            num_scalar_prefetch=0,
            grid=(num_tiles,),
            in_specs=in_specs,
            out_specs=batch_spec(d_out_pad),
        ),
        compiler_params=pltpu.CompilerParams(
            dimension_semantics=("parallel",),        # 2-TC sharding on v7x, no-op elsewhere
            vmem_limit_bytes=32 * 1024 * 1024,
        ),
    )(t_p, tconst, x_p, *weights)

    return out_pad[:B, :d_out]


def init_params(key, d_in, d_layers, dim_t):
    """Deterministic synthetic parameters (Linear weights stored [in, out])."""
    ks = jax.random.split(key, 12)
    scale = 0.05

    def lin(kw, kb, din, dout):
        w = jax.random.normal(kw, (din, dout), jnp.float32) * scale
        b = jax.random.normal(kb, (1, dout), jnp.float32) * scale
        return w, b

    p = {}
    p["w_te1"], p["b_te1"] = lin(ks[0], ks[1], dim_t, dim_t)
    p["w_te2"], p["b_te2"] = lin(ks[2], ks[3], dim_t, dim_t)
    p["w_proj"], p["b_proj"] = lin(ks[4], ks[5], d_in, dim_t)
    p["w0"], p["b0"] = lin(ks[6], ks[7], dim_t, d_layers[0])
    p["w1"], p["b1"] = lin(ks[8], ks[9], d_layers[0], d_layers[1])
    p["w_head"], p["b_head"] = lin(ks[10], ks[11], d_layers[1], d_in)   # d_out == d_in
    return p


def reference_forward(x, timesteps, params, *, dim_t=128, max_period=10000):
    """Pure-JAX f32 reference mirroring the PyTorch forward (eval mode)."""
    x = x.astype(jnp.float32)
    half = dim_t // 2
    freqs = jnp.exp(-math.log(max_period) * jnp.arange(half, dtype=jnp.float32) / half)
    args = timesteps.astype(jnp.float32)[:, None] * freqs[None]
    emb0 = jnp.concatenate([jnp.cos(args), jnp.sin(args)], axis=-1)
    h = emb0 @ params["w_te1"] + params["b_te1"]
    h = h * jax.nn.sigmoid(h)
    emb = h @ params["w_te2"] + params["b_te2"]
    xp = x @ params["w_proj"] + params["b_proj"] + emb
    h = jnp.maximum(xp @ params["w0"] + params["b0"], 0.0)
    h = jnp.maximum(h @ params["w1"] + params["b1"], 0.0)
    return h @ params["w_head"] + params["b_head"]


if __name__ == "__main__":
    d_in = 16            # tabular feature dim (also MLP output dim)
    dim_t = 128          # default time-embedding dim from the module
    d_layers = [128, 128]
    B = 200              # non-multiple of tile_b to exercise batch padding
    tile_b = 128         # -> grid=(2,), 2 pipelined batch tiles

    key = jax.random.PRNGKey(0)
    k_x, k_t, k_p = jax.random.split(key, 3)
    x = jax.random.normal(k_x, (B, d_in), jnp.float32)
    timesteps = jax.random.uniform(k_t, (B,), jnp.float32, 0.0, 1000.0)
    params = init_params(k_p, d_in, d_layers, dim_t)

    out = mlp_decoder(x, timesteps, params, dim_t=dim_t, tile_b=tile_b)
    out = jax.block_until_ready(out)

    ref = reference_forward(x, timesteps, params, dim_t=dim_t)
    assert out.shape == (B, d_in)
    # bf16 MXU inputs (f32 accumulate) -> loosened tolerance vs the f32 reference
    assert jnp.allclose(out, ref, atol=3e-2, rtol=3e-2), "mismatch vs pure-JAX reference"

    print("KERNEL_OK")
</pallas_src>

<mosaic_0001>
module attributes {stable_mosaic.version = 11 : i64} {
  func.func @mlp_decoder_kernel(%arg0: i32, %arg1: memref<128x1xf32, #tpu.memory_space<vmem>>, %arg2: memref<2x128xf32, #tpu.memory_space<vmem>>, %arg3: memref<128x128xbf16, #tpu.memory_space<vmem>>, %arg4: memref<128x128xbf16, #tpu.memory_space<vmem>>, %arg5: memref<1x128xf32, #tpu.memory_space<vmem>>, %arg6: memref<128x128xbf16, #tpu.memory_space<vmem>>, %arg7: memref<1x128xf32, #tpu.memory_space<vmem>>, %arg8: memref<128x128xbf16, #tpu.memory_space<vmem>>, %arg9: memref<1x128xf32, #tpu.memory_space<vmem>>, %arg10: memref<128x128xbf16, #tpu.memory_space<vmem>>, %arg11: memref<1x128xf32, #tpu.memory_space<vmem>>, %arg12: memref<128x128xbf16, #tpu.memory_space<vmem>>, %arg13: memref<1x128xf32, #tpu.memory_space<vmem>>, %arg14: memref<128x128xbf16, #tpu.memory_space<vmem>>, %arg15: memref<1x128xf32, #tpu.memory_space<vmem>>, %arg16: memref<128x128xf32, #tpu.memory_space<vmem>>) attributes {dimension_semantics = [#tpu.dimension_semantics<parallel>], iteration_bounds = array<i64: 2>, scalar_prefetch = 0 : i64, scratch_operands = 0 : i64, tpu.core_type = #tpu.core_type<tc>, window_params = [{transform_indices = @transform_0, window_bounds = array<i64: 128, 1>}, {pipeline_mode = #tpu.pipeline_mode<synchronous>, transform_indices = @transform_1, window_bounds = array<i64: 2, 128>}, {transform_indices = @transform_2, window_bounds = array<i64: 128, 128>}, {pipeline_mode = #tpu.pipeline_mode<synchronous>, transform_indices = @transform_3, window_bounds = array<i64: 128, 128>}, {pipeline_mode = #tpu.pipeline_mode<synchronous>, transform_indices = @transform_4, window_bounds = array<i64: 1, 128>}, {pipeline_mode = #tpu.pipeline_mode<synchronous>, transform_indices = @transform_5, window_bounds = array<i64: 128, 128>}, {pipeline_mode = #tpu.pipeline_mode<synchronous>, transform_indices = @transform_6, window_bounds = array<i64: 1, 128>}, {pipeline_mode = #tpu.pipeline_mode<synchronous>, transform_indices = @transform_7, window_bounds = array<i64: 128, 128>}, {pipeline_mode = #tpu.pipeline_mode<synchronous>, transform_indices = @transform_8, window_bounds = array<i64: 1, 128>}, {pipeline_mode = #tpu.pipeline_mode<synchronous>, transform_indices = @transform_9, window_bounds = array<i64: 128, 128>}, {pipeline_mode = #tpu.pipeline_mode<synchronous>, transform_indices = @transform_10, window_bounds = array<i64: 1, 128>}, {pipeline_mode = #tpu.pipeline_mode<synchronous>, transform_indices = @transform_11, window_bounds = array<i64: 128, 128>}, {pipeline_mode = #tpu.pipeline_mode<synchronous>, transform_indices = @transform_12, window_bounds = array<i64: 1, 128>}, {pipeline_mode = #tpu.pipeline_mode<synchronous>, transform_indices = @transform_13, window_bounds = array<i64: 128, 128>}, {pipeline_mode = #tpu.pipeline_mode<synchronous>, transform_indices = @transform_14, window_bounds = array<i64: 1, 128>}, {transform_indices = @transform_15, window_bounds = array<i64: 128, 128>}]} {
    %c0 = arith.constant 0 : index
    %c0_0 = arith.constant 0 : index
    %0 = vector.load %arg1[%c0, %c0_0] : memref<128x1xf32, #tpu.memory_space<vmem>>, vector<128x1xf32>
    %c0_1 = arith.constant 0 : index
    %c0_2 = arith.constant 0 : index
    %1 = vector.load %arg2[%c0_1, %c0_2] : memref<2x128xf32, #tpu.memory_space<vmem>>, vector<1x128xf32>
    %c1 = arith.constant 1 : index
    %c0_3 = arith.constant 0 : index
    %2 = vector.load %arg2[%c1, %c0_3] : memref<2x128xf32, #tpu.memory_space<vmem>>, vector<1x128xf32>
    %3 = vector.broadcast %0 : vector<128x1xf32> to vector<128x128xf32>
    %4 = vector.broadcast %1 : vector<1x128xf32> to vector<128x128xf32>
    %5 = arith.mulf %3, %4 : vector<128x128xf32>
    %6 = vector.broadcast %2 : vector<1x128xf32> to vector<128x128xf32>
    %7 = arith.addf %5, %6 : vector<128x128xf32>
    %8 = math.sin %7 : vector<128x128xf32>
    %9 = arith.truncf %8 : vector<128x128xf32> to vector<128x128xbf16>
    %c0_4 = arith.constant 0 : index
    %c0_5 = arith.constant 0 : index
    %10 = vector.load %arg4[%c0_4, %c0_5] : memref<128x128xbf16, #tpu.memory_space<vmem>>, vector<128x128xbf16>
    %cst = arith.constant dense<0.000000e+00> : vector<128x128xf32>
    %11 = tpu.matmul %9, %10, %cst {dimension_numbers = #tpu.dot_dimension_numbers<[1], [0], [0], [1], [0, 0, 1, 1], [], []>} : vector<128x128xbf16>, vector<128x128xbf16>, vector<128x128xf32> -> vector<128x128xf32>
    %c0_6 = arith.constant 0 : index
    %c0_7 = arith.constant 0 : index
    %12 = vector.load %arg5[%c0_6, %c0_7] : memref<1x128xf32, #tpu.memory_space<vmem>>, vector<1x128xf32>
    %13 = vector.broadcast %12 : vector<1x128xf32> to vector<128x128xf32>
    %14 = arith.addf %11, %13 : vector<128x128xf32>
    %15 = arith.negf %14 : vector<128x128xf32>
    %16 = math.exp %15 : vector<128x128xf32>
    %cst_8 = arith.constant 1.000000e+00 : f32
    %17 = vector.broadcast %cst_8 : f32 to vector<128x128xf32>
    %18 = arith.addf %17, %16 : vector<128x128xf32>
    %19 = arith.divf %17, %18 : vector<128x128xf32>
    %20 = arith.mulf %14, %19 : vector<128x128xf32>
    %21 = arith.truncf %20 : vector<128x128xf32> to vector<128x128xbf16>
    %c0_9 = arith.constant 0 : index
    %c0_10 = arith.constant 0 : index
    %22 = vector.load %arg6[%c0_9, %c0_10] : memref<128x128xbf16, #tpu.memory_space<vmem>>, vector<128x128xbf16>
    %cst_11 = arith.constant dense<0.000000e+00> : vector<128x128xf32>
    %23 = tpu.matmul %21, %22, %cst_11 {dimension_numbers = #tpu.dot_dimension_numbers<[1], [0], [0], [1], [0, 0, 1, 1], [], []>} : vector<128x128xbf16>, vector<128x128xbf16>, vector<128x128xf32> -> vector<128x128xf32>
    %c0_12 = arith.constant 0 : index
    %c0_13 = arith.constant 0 : index
    %24 = vector.load %arg7[%c0_12, %c0_13] : memref<1x128xf32, #tpu.memory_space<vmem>>, vector<1x128xf32>
    %25 = vector.broadcast %24 : vector<1x128xf32> to vector<128x128xf32>
    %26 = arith.addf %23, %25 : vector<128x128xf32>
    %c0_14 = arith.constant 0 : index
    %c0_15 = arith.constant 0 : index
    %27 = vector.load %arg3[%c0_14, %c0_15] : memref<128x128xbf16, #tpu.memory_space<vmem>>, vector<128x128xbf16>
    %c0_16 = arith.constant 0 : index
    %c0_17 = arith.constant 0 : index
    %28 = vector.load %arg8[%c0_16, %c0_17] : memref<128x128xbf16, #tpu.memory_space<vmem>>, vector<128x128xbf16>
    %cst_18 = arith.constant dense<0.000000e+00> : vector<128x128xf32>
    %29 = tpu.matmul %27, %28, %cst_18 {dimension_numbers = #tpu.dot_dimension_numbers<[1], [0], [0], [1], [0, 0, 1, 1], [], []>} : vector<128x128xbf16>, vector<128x128xbf16>, vector<128x128xf32> -> vector<128x128xf32>
    %c0_19 = arith.constant 0 : index
    %c0_20 = arith.constant 0 : index
    %30 = vector.load %arg9[%c0_19, %c0_20] : memref<1x128xf32, #tpu.memory_space<vmem>>, vector<1x128xf32>
    %31 = vector.broadcast %30 : vector<1x128xf32> to vector<128x128xf32>
    %32 = arith.addf %29, %31 : vector<128x128xf32>
    %33 = arith.addf %32, %26 : vector<128x128xf32>
    %34 = arith.truncf %33 : vector<128x128xf32> to vector<128x128xbf16>
    %c0_21 = arith.constant 0 : index
    %c0_22 = arith.constant 0 : index
    %35 = vector.load %arg10[%c0_21, %c0_22] : memref<128x128xbf16, #tpu.memory_space<vmem>>, vector<128x128xbf16>
    %cst_23 = arith.constant dense<0.000000e+00> : vector<128x128xf32>
    %36 = tpu.matmul %34, %35, %cst_23 {dimension_numbers = #tpu.dot_dimension_numbers<[1], [0], [0], [1], [0, 0, 1, 1], [], []>} : vector<128x128xbf16>, vector<128x128xbf16>, vector<128x128xf32> -> vector<128x128xf32>
    %c0_24 = arith.constant 0 : index
    %c0_25 = arith.constant 0 : index
    %37 = vector.load %arg11[%c0_24, %c0_25] : memref<1x128xf32, #tpu.memory_space<vmem>>, vector<1x128xf32>
    %38 = vector.broadcast %37 : vector<1x128xf32> to vector<128x128xf32>
    %39 = arith.addf %36, %38 : vector<128x128xf32>
    %cst_26 = arith.constant 0.000000e+00 : f32
    %40 = vector.broadcast %cst_26 : f32 to vector<128x128xf32>
    %41 = arith.maximumf %39, %40 : vector<128x128xf32>
    %42 = arith.truncf %41 : vector<128x128xf32> to vector<128x128xbf16>
    %c0_27 = arith.constant 0 : index
    %c0_28 = arith.constant 0 : index
    %43 = vector.load %arg12[%c0_27, %c0_28] : memref<128x128xbf16, #tpu.memory_space<vmem>>, vector<128x128xbf16>
    %cst_29 = arith.constant dense<0.000000e+00> : vector<128x128xf32>
    %44 = tpu.matmul %42, %43, %cst_29 {dimension_numbers = #tpu.dot_dimension_numbers<[1], [0], [0], [1], [0, 0, 1, 1], [], []>} : vector<128x128xbf16>, vector<128x128xbf16>, vector<128x128xf32> -> vector<128x128xf32>
    %c0_30 = arith.constant 0 : index
    %c0_31 = arith.constant 0 : index
    %45 = vector.load %arg13[%c0_30, %c0_31] : memref<1x128xf32, #tpu.memory_space<vmem>>, vector<1x128xf32>
    %46 = vector.broadcast %45 : vector<1x128xf32> to vector<128x128xf32>
    %47 = arith.addf %44, %46 : vector<128x128xf32>
    %cst_32 = arith.constant 0.000000e+00 : f32
    %48 = vector.broadcast %cst_32 : f32 to vector<128x128xf32>
    %49 = arith.maximumf %47, %48 : vector<128x128xf32>
    %50 = arith.truncf %49 : vector<128x128xf32> to vector<128x128xbf16>
    %c0_33 = arith.constant 0 : index
    %c0_34 = arith.constant 0 : index
    %51 = vector.load %arg14[%c0_33, %c0_34] : memref<128x128xbf16, #tpu.memory_space<vmem>>, vector<128x128xbf16>
    %cst_35 = arith.constant dense<0.000000e+00> : vector<128x128xf32>
    %52 = tpu.matmul %50, %51, %cst_35 {dimension_numbers = #tpu.dot_dimension_numbers<[1], [0], [0], [1], [0, 0, 1, 1], [], []>} : vector<128x128xbf16>, vector<128x128xbf16>, vector<128x128xf32> -> vector<128x128xf32>
    %c0_36 = arith.constant 0 : index
    %c0_37 = arith.constant 0 : index
    %53 = vector.load %arg15[%c0_36, %c0_37] : memref<1x128xf32, #tpu.memory_space<vmem>>, vector<1x128xf32>
    %54 = vector.broadcast %53 : vector<1x128xf32> to vector<128x128xf32>
    %55 = arith.addf %52, %54 : vector<128x128xf32>
    %c0_38 = arith.constant 0 : index
    %c0_39 = arith.constant 0 : index
    %56 = vector.load %arg16[%c0_38, %c0_39] : memref<128x128xf32, #tpu.memory_space<vmem>>, vector<128x128xf32>
    tpu.vector_store %arg16[%c0_38, %c0_39], %55 {strides = array<i32>} : memref<128x128xf32, #tpu.memory_space<vmem>>, vector<128x128xf32>,
    return
  }
  func.func @transform_0(%arg0: i32) -> (i32, i32) {
    %c0_i32 = arith.constant 0 : i32
    %c0_i32_0 = arith.constant 0 : i32
    return %arg0, %c0_i32 : i32, i32
  }
  func.func @transform_1(%arg0: i32) -> (i32, i32) {
    %c0_i32 = arith.constant 0 : i32
    %c0_i32_0 = arith.constant 0 : i32
    %c0_i32_1 = arith.constant 0 : i32
    return %c0_i32, %c0_i32_0 : i32, i32
  }
  func.func @transform_2(%arg0: i32) -> (i32, i32) {
    %c0_i32 = arith.constant 0 : i32
    %c0_i32_0 = arith.constant 0 : i32
    return %arg0, %c0_i32 : i32, i32
  }
  func.func @transform_3(%arg0: i32) -> (i32, i32) {
    %c0_i32 = arith.constant 0 : i32
    %c0_i32_0 = arith.constant 0 : i32
    %c0_i32_1 = arith.constant 0 : i32
    return %c0_i32, %c0_i32_0 : i32, i32
  }
  func.func @transform_4(%arg0: i32) -> (i32, i32) {
    %c0_i32 = arith.constant 0 : i32
    %c0_i32_0 = arith.constant 0 : i32
    %c0_i32_1 = arith.constant 0 : i32
    return %c0_i32, %c0_i32_0 : i32, i32
  }
  func.func @transform_5(%arg0: i32) -> (i32, i32) {
    %c0_i32 = arith.constant 0 : i32
    %c0_i32_0 = arith.constant 0 : i32
    %c0_i32_1 = arith.constant 0 : i32
    return %c0_i32, %c0_i32_0 : i32, i32
  }
  func.func @transform_6(%arg0: i32) -> (i32, i32) {
    %c0_i32 = arith.constant 0 : i32
    %c0_i32_0 = arith.constant 0 : i32
    %c0_i32_1 = arith.constant 0 : i32
    return %c0_i32, %c0_i32_0 : i32, i32
  }
  func.func @transform_7(%arg0: i32) -> (i32, i32) {
    %c0_i32 = arith.constant 0 : i32
    %c0_i32_0 = arith.constant 0 : i32
    %c0_i32_1 = arith.constant 0 : i32
    return %c0_i32, %c0_i32_0 : i32, i32
  }
  func.func @transform_8(%arg0: i32) -> (i32, i32) {
    %c0_i32 = arith.constant 0 : i32
    %c0_i32_0 = arith.constant 0 : i32
    %c0_i32_1 = arith.constant 0 : i32
    return %c0_i32, %c0_i32_0 : i32, i32
  }
  func.func @transform_9(%arg0: i32) -> (i32, i32) {
    %c0_i32 = arith.constant 0 : i32
    %c0_i32_0 = arith.constant 0 : i32
    %c0_i32_1 = arith.constant 0 : i32
    return %c0_i32, %c0_i32_0 : i32, i32
  }
  func.func @transform_10(%arg0: i32) -> (i32, i32) {
    %c0_i32 = arith.constant 0 : i32
    %c0_i32_0 = arith.constant 0 : i32
    %c0_i32_1 = arith.constant 0 : i32
    return %c0_i32, %c0_i32_0 : i32, i32
  }
  func.func @transform_11(%arg0: i32) -> (i32, i32) {
    %c0_i32 = arith.constant 0 : i32
    %c0_i32_0 = arith.constant 0 : i32
    %c0_i32_1 = arith.constant 0 : i32
    return %c0_i32, %c0_i32_0 : i32, i32
  }
  func.func @transform_12(%arg0: i32) -> (i32, i32) {
    %c0_i32 = arith.constant 0 : i32
    %c0_i32_0 = arith.constant 0 : i32
    %c0_i32_1 = arith.constant 0 : i32
    return %c0_i32, %c0_i32_0 : i32, i32
  }
  func.func @transform_13(%arg0: i32) -> (i32, i32) {
    %c0_i32 = arith.constant 0 : i32
    %c0_i32_0 = arith.constant 0 : i32
    %c0_i32_1 = arith.constant 0 : i32
    return %c0_i32, %c0_i32_0 : i32, i32
  }
  func.func @transform_14(%arg0: i32) -> (i32, i32) {
    %c0_i32 = arith.constant 0 : i32
    %c0_i32_0 = arith.constant 0 : i32
    %c0_i32_1 = arith.constant 0 : i32
    return %c0_i32, %c0_i32_0 : i32, i32
  }
  func.func @transform_15(%arg0: i32) -> (i32, i32) {
    %c0_i32 = arith.constant 0 : i32
    %c0_i32_0 = arith.constant 0 : i32
    return %arg0, %c0_i32 : i32, i32
  }
}

</mosaic_0001>

<llo_original>
// kernel: tpu_custom_call.1
$region0: #{tpu_custom_call.1}
  #allocation0 [shape = 'u32[]', space=smem, size = 0x4, offset = 0x4, fixed_abs, tag = 'smem constant byte address 0x4 - core index']
  #allocation1 [shape = 'u32[144,128]{1,0:T(1,128)}', space=vmem, size = 0x12000, scoped, tag = 'internal scratch']
  %s0 = inlined_call_operand.vmem [shape: f32[256,1], index: 0, kind: input, shape index: {}]
  %s1 = inlined_call_operand.vmem [shape: f32[2,128], index: 1, kind: input, shape index: {}]
  %s2 = inlined_call_operand.vmem [shape: bf16[256,128], index: 2, kind: input, shape index: {}]
  %s3 = inlined_call_operand.vmem [shape: bf16[128,128], index: 3, kind: input, shape index: {}]
  %s4 = inlined_call_operand.vmem [shape: f32[1,128], index: 4, kind: input, shape index: {}]
  %s5 = inlined_call_operand.vmem [shape: bf16[128,128], index: 5, kind: input, shape index: {}]
  %s6 = inlined_call_operand.vmem [shape: f32[1,128], index: 6, kind: input, shape index: {}]
  %s7 = inlined_call_operand.hbm [shape: bf16[128,128], index: 7, kind: input, shape index: {}]
  %s8 = inlined_call_operand.vmem [shape: f32[1,128], index: 8, kind: input, shape index: {}]
  %s9 = inlined_call_operand.hbm [shape: bf16[128,128], index: 9, kind: input, shape index: {}]
  %s10 = inlined_call_operand.vmem [shape: f32[1,128], index: 10, kind: input, shape index: {}]
  %s11 = inlined_call_operand.hbm [shape: bf16[128,128], index: 11, kind: input, shape index: {}]
  %s12 = inlined_call_operand.vmem [shape: f32[1,128], index: 12, kind: input, shape index: {}]
  %s13 = inlined_call_operand.hbm [shape: bf16[128,128], index: 13, kind: input, shape index: {}]
  %s14 = inlined_call_operand.vmem [shape: f32[1,128], index: 14, kind: input, shape index: {}]
  %s15 = inlined_call_operand.hbm [shape: f32[256,128], index: 15, kind: output, shape index: {}]
  %s16 = sld [smem:[#allocation0]]
  $region109: #{tpu_custom_call.1} parent=0
    _
  %s18 = ssub.s32 1, %s16
  %s19 = scalar_select 0, %s18, %s16
  $region1: #{tpu_custom_call.1} parent=0
    #allocation2 [shape = 'u8[32768]{0}', space=vmem, size = 0x8000, scoped, tag = 'input window, operand 7, single buffered']
    #allocation3 [shape = 's32[2]{0}', space=sflag, size = 0x8, scoped, tag = 'scoped memory for tpu_custom_call.1']
    #allocation4 [shape = 's32[2]{0}', space=sflag, size = 0x8, scoped, tag = 'scoped memory for tpu_custom_call.1']
    #allocation5 [shape = 'u8[32768]{0}', space=vmem, size = 0x8000, scoped, tag = 'input window, operand 9, single buffered']
    #allocation6 [shape = 's32[1]{0}', space=sflag, size = 0x4, scoped, tag = 'scoped memory for tpu_custom_call.1']
    #allocation7 [shape = 'u8[32768]{0}', space=vmem, size = 0x8000, scoped, tag = 'input window, operand 11, single buffered']
    #allocation8 [shape = 'u8[32768]{0}', space=vmem, size = 0x8000, scoped, tag = 'input window, operand 13, single buffered']
    #allocation9 [shape = 's32[1]{0}', space=sflag, size = 0x4, scoped, tag = 'scoped memory for tpu_custom_call.1']
    #allocation10 [shape = 'u8[131072]{0}', space=vmem, size = 0x20000, scoped, tag = 'output window, operand 0']
    %20 = vsyncpa [#allocation3], 0
    %21 = vsyncpa [#allocation6], 0
    %22 = vsyncpa [#allocation9], 0
    %23 = vsyncpa [#allocation4], 0
    %s24 = scalar_lea.sflag [#allocation4], 1
    %25 = vsyncpa %s24, 0
    loop: start=0, step=1, limit=4
    $region2: #{tpu_custom_call.1} parent=1 // loop_pre_header
      _
    $region3: #{tpu_custom_call.1} parent=1 // loop_header
      %s27 = sphi 0, %s31
      %p28 = scmp.ge.s32.totalorder %s27, 4
      %s37 = sphi 0, %s39
      %s40 = sphi 0, %s37
      %s41 = sphi 0, %s40
      %s57 = sphi 0, %s41
      %s61 = sphi 0, %s61
      %s63 = sphi 0, %s61
      %s64 = sphi 0, %s63
      %s78 = sphi 0, %s64
      %s84 = sphi 0, %s86
      %s87 = sphi 0, %s84
      %s88 = sphi 0, %s87
      %s104 = sphi 0, %s88
      %s108 = sphi 0, %s108
      %s110 = sphi 0, %s108
      %s111 = sphi 0, %s110
      %s125 = sphi 0, %s111
      %s129 = sphi 0, %s129
      %s131 = sphi 0, %s129
      %s132 = sphi 0, %s131
      %s146 = sphi 0, %s132
      %s150 = sphi 0, %s150
      %s152 = sphi 0, %s150
      %s153 = sphi 0, %s152
      %s167 = sphi 0, %s153
      %s171 = sphi 0, %s171
      %s173 = sphi 0, %s171
      %s174 = sphi 0, %s173
      %s188 = sphi 0, %s174
      %s192 = sphi 0, %s192
      %s194 = sphi 0, %s192
      %s195 = sphi 0, %s194
      %s209 = sphi 0, %s195
      %s213 = sphi 0, %s213
      %s215 = sphi 0, %s213
      %s216 = sphi 0, %s215
      %s230 = sphi 0, %s216
      %s234 = sphi 0, %s234
      %s236 = sphi 0, %s234
      %s237 = sphi 0, %s236
      %s251 = sphi 0, %s237
      %s255 = sphi 0, %s255
      %s257 = sphi 0, %s255
      %s258 = sphi 0, %s257
      %s272 = sphi 0, %s258
      %s276 = sphi 0, %s276
      %s278 = sphi 0, %s276
      %s279 = sphi 0, %s278
      %s293 = sphi 0, %s279
      %s297 = sphi 0, %s297
      %s299 = sphi 0, %s297
      %s300 = sphi 0, %s299
      %s314 = sphi 0, %s300
      %s318 = sphi 0, %s318
      %s320 = sphi 0, %s318
      %s321 = sphi 0, %s320
      %s335 = sphi 0, %s321
      %s339 = sphi 0, %s339
      %s341 = sphi 0, %s339
      %s342 = sphi 0, %s341
      %s356 = sphi 0, %s342
      %s362 = sphi 0, %s364
      %s365 = sphi 0, %s362
      %s366 = sphi 0, %s365
      %s382 = sphi 0, %s366
    $region4: #{tpu_custom_call.1} parent=1 // loop_header_branch
      %30 = sbr.rel (%p28) target = $region8
    $region5: #{tpu_custom_call.1} parent=1 // loop_body
      %s32 = ssub.s32 %s27, 1
      %s33 = ssub.s32 %s27, 2
      %s34 = sadd.s32 %s27, 1
      %s35 = ssub.s32 %s27, %s34
      %p36 = scmp.eq.s32.totalorder %s35, 0
      %s38 = sadd.s32 %s37, 1
      %s39 = scalar_select %p36, %s37, %s38
      %p42 = pneg %p36
      %p43 = scmp.eq.s32.totalorder %s27, 1
      %p44 = por %p42, %p43
      %p45 = scmp.ne.s32.totalorder %s37, %s40
      %p46 = scmp.eq.s32.totalorder %s27, 0
      %p47 = por %p45, %p46
      %p48 = scmp.ne.s32.totalorder %s37, %s40
      %p49 = scmp.eq.s32.totalorder %s32, 1
      %p50 = por %p48, %p49
      %p51 = scmp.ne.s32.totalorder %s40, %s41
      %p52 = scmp.eq.s32.totalorder %s32, 0
      %p53 = por %p51, %p52
      %p54 = scmp.ne.s32.totalorder %s40, %s41
      %p55 = scmp.eq.s32.totalorder %s33, 1
      %p56 = por %p54, %p55
      %p58 = scmp.ne.s32.totalorder %s41, %s57
      %p59 = scmp.eq.s32.totalorder %s33, 0
      %p60 = por %p58, %p59
      %s62 = sadd.s32 %s61, 1
      %p65 = scmp.eq.s32.totalorder %s27, 1
      %p66 = scmp.ne.s32.totalorder %s61, %s63
      %p67 = scmp.eq.s32.totalorder %s27, 0
      %p68 = por %p66, %p67
      %p69 = scmp.ne.s32.totalorder %s61, %s63
      %p70 = scmp.eq.s32.totalorder %s32, 1
      %p71 = por %p69, %p70
      %p72 = scmp.ne.s32.totalorder %s63, %s64
      %p73 = scmp.eq.s32.totalorder %s32, 0
      %p74 = por %p72, %p73
      %p75 = scmp.ne.s32.totalorder %s63, %s64
      %p76 = scmp.eq.s32.totalorder %s33, 1
      %p77 = por %p75, %p76
      %p79 = scmp.ne.s32.totalorder %s64, %s78
      %p80 = scmp.eq.s32.totalorder %s33, 0
      %p81 = por %p79, %p80
      %s82 = ssub.s32 %s27, %s34
      %p83 = scmp.eq.s32.totalorder %s82, 0
      %s85 = sadd.s32 %s84, 1
      %s86 = scalar_select %p83, %s84, %s85
      %p89 = pneg %p83
      %p90 = scmp.eq.s32.totalorder %s27, 1
      %p91 = por %p89, %p90
      %p92 = scmp.ne.s32.totalorder %s84, %s87
      %p93 = scmp.eq.s32.totalorder %s27, 0
      %p94 = por %p92, %p93
      %p95 = scmp.ne.s32.totalorder %s84, %s87
      %p96 = scmp.eq.s32.totalorder %s32, 1
      %p97 = por %p95, %p96
      %p98 = scmp.ne.s32.totalorder %s87, %s88
      %p99 = scmp.eq.s32.totalorder %s32, 0
      %p100 = por %p98, %p99
      %p101 = scmp.ne.s32.totalorder %s87, %s88
      %p102 = scmp.eq.s32.totalorder %s33, 1
      %p103 = por %p101, %p102
      %p105 = scmp.ne.s32.totalorder %s88, %s104
      %p106 = scmp.eq.s32.totalorder %s33, 0
      %p107 = por %p105, %p106
      %s109 = sadd.s32 %s108, 1
      %p112 = scmp.eq.s32.totalorder %s27, 1
      %p113 = scmp.ne.s32.totalorder %s108, %s110
      %p114 = scmp.eq.s32.totalorder %s27, 0
      %p115 = por %p113, %p114
      %p116 = scmp.ne.s32.totalorder %s108, %s110
      %p117 = scmp.eq.s32.totalorder %s32, 1
      %p118 = por %p116, %p117
      %p119 = scmp.ne.s32.totalorder %s110, %s111
      %p120 = scmp.eq.s32.totalorder %s32, 0
      %p121 = por %p119, %p120
      %p122 = scmp.ne.s32.totalorder %s110, %s111
      %p123 = scmp.eq.s32.totalorder %s33, 1
      %p124 = por %p122, %p123
      %p126 = scmp.ne.s32.totalorder %s111, %s125
      %p127 = scmp.eq.s32.totalorder %s33, 0
      %p128 = por %p126, %p127
      %s130 = sadd.s32 %s129, 1
      %p133 = scmp.eq.s32.totalorder %s27, 1
      %p134 = scmp.ne.s32.totalorder %s129, %s131
      %p135 = scmp.eq.s32.totalorder %s27, 0
      %p136 = por %p134, %p135
      %p137 = scmp.ne.s32.totalorder %s129, %s131
      %p138 = scmp.eq.s32.totalorder %s32, 1
      %p139 = por %p137, %p138
      %p140 = scmp.ne.s32.totalorder %s131, %s132
      %p141 = scmp.eq.s32.totalorder %s32, 0
      %p142 = por %p140, %p141
      %p143 = scmp.ne.s32.totalorder %s131, %s132
      %p144 = scmp.eq.s32.totalorder %s33, 1
      %p145 = por %p143, %p144
      %p147 = scmp.ne.s32.totalorder %s132, %s146
      %p148 = scmp.eq.s32.totalorder %s33, 0
      %p149 = por %p147, %p148
      %s151 = sadd.s32 %s150, 1
      %p154 = scmp.eq.s32.totalorder %s27, 1
      %p155 = scmp.ne.s32.totalorder %s150, %s152
      %p156 = scmp.eq.s32.totalorder %s27, 0
      %p157 = por %p155, %p156
      %p158 = scmp.ne.s32.totalorder %s150, %s152
      %p159 = scmp.eq.s32.totalorder %s32, 1
      %p160 = por %p158, %p159
      %p161 = scmp.ne.s32.totalorder %s152, %s153
      %p162 = scmp.eq.s32.totalorder %s32, 0
      %p163 = por %p161, %p162
      %p164 = scmp.ne.s32.totalorder %s152, %s153
      %p165 = scmp.eq.s32.totalorder %s33, 1
      %p166 = por %p164, %p165
      %p168 = scmp.ne.s32.totalorder %s153, %s167
      %p169 = scmp.eq.s32.totalorder %s33, 0
      %p170 = por %p168, %p169
      %s172 = sadd.s32 %s171, 1
      %p175 = scmp.eq.s32.totalorder %s27, 1
      %p176 = scmp.ne.s32.totalorder %s171, %s173
      %p177 = scmp.eq.s32.totalorder %s27, 0
      %p178 = por %p176, %p177
      %p179 = scmp.ne.s32.totalorder %s171, %s173
      %p180 = scmp.eq.s32.totalorder %s32, 1
      %p181 = por %p179, %p180
      %p182 = scmp.ne.s32.totalorder %s173, %s174
      %p183 = scmp.eq.s32.totalorder %s32, 0
      %p184 = por %p182, %p183
      %p185 = scmp.ne.s32.totalorder %s173, %s174
      %p186 = scmp.eq.s32.totalorder %s33, 1
      %p187 = por %p185, %p186
      %p189 = scmp.ne.s32.totalorder %s174, %s188
      %p190 = scmp.eq.s32.totalorder %s33, 0
      %p191 = por %p189, %p190
      %s193 = sadd.s32 %s192, 1
      %p196 = scmp.eq.s32.totalorder %s27, 1
      %p197 = scmp.ne.s32.totalorder %s192, %s194
      %p198 = scmp.eq.s32.totalorder %s27, 0
      %p199 = por %p197, %p198
      %p200 = scmp.ne.s32.totalorder %s192, %s194
      %p201 = scmp.eq.s32.totalorder %s32, 1
      %p202 = por %p200, %p201
      %p203 = scmp.ne.s32.totalorder %s194, %s195
      %p204 = scmp.eq.s32.totalorder %s32, 0
      %p205 = por %p203, %p204
      %p206 = scmp.ne.s32.totalorder %s194, %s195
      %p207 = scmp.eq.s32.totalorder %s33, 1
      %p208 = por %p206, %p207
      %p210 = scmp.ne.s32.totalorder %s195, %s209
      %p211 = scmp.eq.s32.totalorder %s33, 0
      %p212 = por %p210, %p211
      %s214 = sadd.s32 %s213, 1
      %p217 = scmp.eq.s32.totalorder %s27, 1
      %p218 = scmp.ne.s32.totalorder %s213, %s215
      %p219 = scmp.eq.s32.totalorder %s27, 0
      %p220 = por %p218, %p219
      %p221 = scmp.ne.s32.totalorder %s213, %s215
      %p222 = scmp.eq.s32.totalorder %s32, 1
      %p223 = por %p221, %p222
      %p224 = scmp.ne.s32.totalorder %s215, %s216
      %p225 = scmp.eq.s32.totalorder %s32, 0
      %p226 = por %p224, %p225
      %p227 = scmp.ne.s32.totalorder %s215, %s216
      %p228 = scmp.eq.s32.totalorder %s33, 1
      %p229 = por %p227, %p228
      %p231 = scmp.ne.s32.totalorder %s216, %s230
      %p232 = scmp.eq.s32.totalorder %s33, 0
      %p233 = por %p231, %p232
      %s235 = sadd.s32 %s234, 1
      %p238 = scmp.eq.s32.totalorder %s27, 1
      %p239 = scmp.ne.s32.totalorder %s234, %s236
      %p240 = scmp.eq.s32.totalorder %s27, 0
      %p241 = por %p239, %p240
      %p242 = scmp.ne.s32.totalorder %s234, %s236
      %p243 = scmp.eq.s32.totalorder %s32, 1
      %p244 = por %p242, %p243
      %p245 = scmp.ne.s32.totalorder %s236, %s237
      %p246 = scmp.eq.s32.totalorder %s32, 0
      %p247 = por %p245, %p246
      %p248 = scmp.ne.s32.totalorder %s236, %s237
      %p249 = scmp.eq.s32.totalorder %s33, 1
      %p250 = por %p248, %p249
      %p252 = scmp.ne.s32.totalorder %s237, %s251
      %p253 = scmp.eq.s32.totalorder %s33, 0
      %p254 = por %p252, %p253
      %s256 = sadd.s32 %s255, 1
      %p259 = scmp.eq.s32.totalorder %s27, 1
      %p260 = scmp.ne.s32.totalorder %s255, %s257
      %p261 = scmp.eq.s32.totalorder %s27, 0
      %p262 = por %p260, %p261
      %p263 = scmp.ne.s32.totalorder %s255, %s257
      %p264 = scmp.eq.s32.totalorder %s32, 1
      %p265 = por %p263, %p264
      %p266 = scmp.ne.s32.totalorder %s257, %s258
      %p267 = scmp.eq.s32.totalorder %s32, 0
      %p268 = por %p266, %p267
      %p269 = scmp.ne.s32.totalorder %s257, %s258
      %p270 = scmp.eq.s32.totalorder %s33, 1
      %p271 = por %p269, %p270
      %p273 = scmp.ne.s32.totalorder %s258, %s272
      %p274 = scmp.eq.s32.totalorder %s33, 0
      %p275 = por %p273, %p274
      %s277 = sadd.s32 %s276, 1
      %p280 = scmp.eq.s32.totalorder %s27, 1
      %p281 = scmp.ne.s32.totalorder %s276, %s278
      %p282 = scmp.eq.s32.totalorder %s27, 0
      %p283 = por %p281, %p282
      %p284 = scmp.ne.s32.totalorder %s276, %s278
      %p285 = scmp.eq.s32.totalorder %s32, 1
      %p286 = por %p284, %p285
      %p287 = scmp.ne.s32.totalorder %s278, %s279
      %p288 = scmp.eq.s32.totalorder %s32, 0
      %p289 = por %p287, %p288
      %p290 = scmp.ne.s32.totalorder %s278, %s279
      %p291 = scmp.eq.s32.totalorder %s33, 1
      %p292 = por %p290, %p291
      %p294 = scmp.ne.s32.totalorder %s279, %s293
      %p295 = scmp.eq.s32.totalorder %s33, 0
      %p296 = por %p294, %p295
      %s298 = sadd.s32 %s297, 1
      %p301 = scmp.eq.s32.totalorder %s27, 1
      %p302 = scmp.ne.s32.totalorder %s297, %s299
      %p303 = scmp.eq.s32.totalorder %s27, 0
      %p304 = por %p302, %p303
      %p305 = scmp.ne.s32.totalorder %s297, %s299
      %p306 = scmp.eq.s32.totalorder %s32, 1
      %p307 = por %p305, %p306
      %p308 = scmp.ne.s32.totalorder %s299, %s300
      %p309 = scmp.eq.s32.totalorder %s32, 0
      %p310 = por %p308, %p309
      %p311 = scmp.ne.s32.totalorder %s299, %s300
      %p312 = scmp.eq.s32.totalorder %s33, 1
      %p313 = por %p311, %p312
      %p315 = scmp.ne.s32.totalorder %s300, %s314
      %p316 = scmp.eq.s32.totalorder %s33, 0
      %p317 = por %p315, %p316
      %s319 = sadd.s32 %s318, 1
      %p322 = scmp.eq.s32.totalorder %s27, 1
      %p323 = scmp.ne.s32.totalorder %s318, %s320
      %p324 = scmp.eq.s32.totalorder %s27, 0
      %p325 = por %p323, %p324
      %p326 = scmp.ne.s32.totalorder %s318, %s320
      %p327 = scmp.eq.s32.totalorder %s32, 1
      %p328 = por %p326, %p327
      %p329 = scmp.ne.s32.totalorder %s320, %s321
      %p330 = scmp.eq.s32.totalorder %s32, 0
      %p331 = por %p329, %p330
      %p332 = scmp.ne.s32.totalorder %s320, %s321
      %p333 = scmp.eq.s32.totalorder %s33, 1
      %p334 = por %p332, %p333
      %p336 = scmp.ne.s32.totalorder %s321, %s335
      %p337 = scmp.eq.s32.totalorder %s33, 0
      %p338 = por %p336, %p337
      %s340 = sadd.s32 %s339, 1
      %p343 = scmp.eq.s32.totalorder %s27, 1
      %p344 = scmp.ne.s32.totalorder %s339, %s341
      %p345 = scmp.eq.s32.totalorder %s27, 0
      %p346 = por %p344, %p345
      %p347 = scmp.ne.s32.totalorder %s339, %s341
      %p348 = scmp.eq.s32.totalorder %s32, 1
      %p349 = por %p347, %p348
      %p350 = scmp.ne.s32.totalorder %s341, %s342
      %p351 = scmp.eq.s32.totalorder %s32, 0
      %p352 = por %p350, %p351
      %p353 = scmp.ne.s32.totalorder %s341, %s342
      %p354 = scmp.eq.s32.totalorder %s33, 1
      %p355 = por %p353, %p354
      %p357 = scmp.ne.s32.totalorder %s342, %s356
      %p358 = scmp.eq.s32.totalorder %s33, 0
      %p359 = por %p357, %p358
      %s360 = ssub.s32 %s27, %s34
      %p361 = scmp.eq.s32.totalorder %s360, 0
      %s363 = sadd.s32 %s362, 1
      %s364 = scalar_select %p361, %s362, %s363
      %p367 = pneg %p361
      %p368 = scmp.eq.s32.totalorder %s27, 1
      %p369 = por %p367, %p368
      %p370 = scmp.ne.s32.totalorder %s362, %s365
      %p371 = scmp.eq.s32.totalorder %s27, 0
      %p372 = por %p370, %p371
      %p373 = scmp.ne.s32.totalorder %s362, %s365
      %p374 = scmp.eq.s32.totalorder %s32, 1
      %p375 = por %p373, %p374
      %p376 = scmp.ne.s32.totalorder %s365, %s366
      %p377 = scmp.eq.s32.totalorder %s32, 0
      %p378 = por %p376, %p377
      %p379 = scmp.ne.s32.totalorder %s365, %s366
      %p380 = scmp.eq.s32.totalorder %s33, 1
      %p381 = por %p379, %p380
      %p383 = scmp.ne.s32.totalorder %s366, %s382
      %p384 = scmp.eq.s32.totalorder %s33, 0
      %p385 = por %p383, %p384
      %p386 = scmp.le.s32.totalorder 1, %s27
      %p387 = scmp.lt.s32.totalorder %s27, 3
      %p388 = pnand %p386, %p387
      %p389 = pneg %p388
      // Predicated region
      $region9: #{tpu_custom_call.1} parent=5 // pred_check
        _
      $region10: #{tpu_custom_call.1} parent=5 // pred_check_branch
        %391 = sbr.rel (%p388) target = $region12
      $region11: #{tpu_custom_call.1} parent=5 // pred_region
        %s392 = ssub.s32 %s27, 1
        // Predicated region
        $region13: #{tpu_custom_call.1} parent=11 // pred_check
          %p393 = pneg %p74
        $region14: #{tpu_custom_call.1} parent=11 // pred_check_branch
          %395 = sbr.rel (%p393) target = $region16
        $region15: #{tpu_custom_call.1} parent=11 // pred_region
          _
        $region16: #{tpu_custom_call.1} parent=11 // pred_fallthru
          _
        // Predicated region
        $region17: #{tpu_custom_call.1} parent=11 // pred_check
          %p396 = pneg %p121
        $region18: #{tpu_custom_call.1} parent=11 // pred_check_branch
          %398 = sbr.rel (%p396) target = $region20
        $region19: #{tpu_custom_call.1} parent=11 // pred_region
          _
        $region20: #{tpu_custom_call.1} parent=11 // pred_fallthru
          _
        // Predicated region
        $region21: #{tpu_custom_call.1} parent=11 // pred_check
          %p399 = pneg %p142
        $region22: #{tpu_custom_call.1} parent=11 // pred_check_branch
          %401 = sbr.rel (%p399) target = $region24
        $region23: #{tpu_custom_call.1} parent=11 // pred_region
          _
        $region24: #{tpu_custom_call.1} parent=11 // pred_fallthru
          _
        // Predicated region
        $region25: #{tpu_custom_call.1} parent=11 // pred_check
          %p402 = pneg %p163
        $region26: #{tpu_custom_call.1} parent=11 // pred_check_branch
          %404 = sbr.rel (%p402) target = $region28
        $region27: #{tpu_custom_call.1} parent=11 // pred_region
          _
        $region28: #{tpu_custom_call.1} parent=11 // pred_fallthru
          _
        // Predicated region
        $region29: #{tpu_custom_call.1} parent=11 // pred_check
          %p405 = pneg %p184
        $region30: #{tpu_custom_call.1} parent=11 // pred_check_branch
          %407 = sbr.rel (%p405) target = $region32
        $region31: #{tpu_custom_call.1} parent=11 // pred_region
          _
        $region32: #{tpu_custom_call.1} parent=11 // pred_fallthru
          _
        // Predicated region
        $region33: #{tpu_custom_call.1} parent=11 // pred_check
          %p408 = pneg %p205
        $region34: #{tpu_custom_call.1} parent=11 // pred_check_branch
          %410 = sbr.rel (%p408) target = $region36
        $region35: #{tpu_custom_call.1} parent=11 // pred_region
          %s412 = ssub.s32 1024, 1024
          %413 = vsyncadd [#allocation3], %s412
          %s414 = sshll.u32 [#allocation2], 4
          %s415 = int_to_ptr.vmem [resolvable:$true] %s414
          %420 = dma.hbm_to_vmem [thread:$0]  %s7, 1024, %s415, [#allocation3], 64, 64, 4
        $region36: #{tpu_custom_call.1} parent=11 // pred_fallthru
          _
        // Predicated region
        $region37: #{tpu_custom_call.1} parent=11 // pred_check
          %p421 = pneg %p226
        $region38: #{tpu_custom_call.1} parent=11 // pred_check_branch
          %423 = sbr.rel (%p421) target = $region40
        $region39: #{tpu_custom_call.1} parent=11 // pred_region
          _
        $region40: #{tpu_custom_call.1} parent=11 // pred_fallthru
          _
        // Predicated region
        $region41: #{tpu_custom_call.1} parent=11 // pred_check
          %p424 = pneg %p247
        $region42: #{tpu_custom_call.1} parent=11 // pred_check_branch
          %426 = sbr.rel (%p424) target = $region44
        $region43: #{tpu_custom_call.1} parent=11 // pred_region
          %s428 = ssub.s32 1024, 1024
          %429 = vsyncadd [#allocation6], %s428
          %s430 = sshll.u32 [#allocation5], 4
          %s431 = int_to_ptr.vmem [resolvable:$true] %s430
          %436 = dma.hbm_to_vmem [thread:$0]  %s9, 1024, %s431, [#allocation6], 64, 64, 4
        $region44: #{tpu_custom_call.1} parent=11 // pred_fallthru
          _
        // Predicated region
        $region45: #{tpu_custom_call.1} parent=11 // pred_check
          %p437 = pneg %p268
        $region46: #{tpu_custom_call.1} parent=11 // pred_check_branch
          %439 = sbr.rel (%p437) target = $region48
        $region47: #{tpu_custom_call.1} parent=11 // pred_region
          _
        $region48: #{tpu_custom_call.1} parent=11 // pred_fallthru
          _
        // Predicated region
        $region49: #{tpu_custom_call.1} parent=11 // pred_check
          %p440 = pneg %p289
        $region50: #{tpu_custom_call.1} parent=11 // pred_check_branch
          %442 = sbr.rel (%p440) target = $region52
        $region51: #{tpu_custom_call.1} parent=11 // pred_region
          %s444 = ssub.s32 1024, 1024
          %445 = vsyncadd [#allocation6], %s444
          %s446 = sshll.u32 [#allocation7], 4
          %s447 = int_to_ptr.vmem [resolvable:$true] %s446
          %452 = dma.hbm_to_vmem [thread:$0]  %s11, 1024, %s447, [#allocation6], 64, 64, 4
        $region52: #{tpu_custom_call.1} parent=11 // pred_fallthru
          _
        // Predicated region
        $region53: #{tpu_custom_call.1} parent=11 // pred_check
          %p453 = pneg %p310
        $region54: #{tpu_custom_call.1} parent=11 // pred_check_branch
          %455 = sbr.rel (%p453) target = $region56
        $region55: #{tpu_custom_call.1} parent=11 // pred_region
          _
        $region56: #{tpu_custom_call.1} parent=11 // pred_fallthru
          _
        // Predicated region
        $region57: #{tpu_custom_call.1} parent=11 // pred_check
          %p456 = pneg %p331
        $region58: #{tpu_custom_call.1} parent=11 // pred_check_branch
          %458 = sbr.rel (%p456) target = $region60
        $region59: #{tpu_custom_call.1} parent=11 // pred_region
          %s460 = ssub.s32 1024, 1024
          %461 = vsyncadd [#allocation9], %s460
          %s462 = sshll.u32 [#allocation8], 4
          %s463 = int_to_ptr.vmem [resolvable:$true] %s462
          %468 = dma.hbm_to_vmem [thread:$0]  %s13, 1024, %s463, [#allocation9], 64, 64, 4
        $region60: #{tpu_custom_call.1} parent=11 // pred_fallthru
          _
        // Predicated region
        $region61: #{tpu_custom_call.1} parent=11 // pred_check
          %p469 = pneg %p352
        $region62: #{tpu_custom_call.1} parent=11 // pred_check_branch
          %471 = sbr.rel (%p469) target = $region64
        $region63: #{tpu_custom_call.1} parent=11 // pred_region
          _
        $region64: #{tpu_custom_call.1} parent=11 // pred_fallthru
          _
      $region12: #{tpu_custom_call.1} parent=5 // pred_fallthru
        _
      %p472 = scmp.lt.s32.totalorder %s27, 2
      // Predicated region
      $region65: #{tpu_custom_call.1} parent=5 // pred_check
        %p473 = pneg %p472
      $region66: #{tpu_custom_call.1} parent=5 // pred_check_branch
        %475 = sbr.rel (%p473) target = $region68
      $region67: #{tpu_custom_call.1} parent=5 // pred_region
        // Predicated region
        $region69: #{tpu_custom_call.1} parent=67 // pred_check
          %p476 = pneg %p47
        $region70: #{tpu_custom_call.1} parent=67 // pred_check_branch
          %478 = sbr.rel (%p476) target = $region72
        $region71: #{tpu_custom_call.1} parent=67 // pred_region
          %s479 = smul.u32 16, %s27
          %p480 = scmp.lt.s32.totalorder %s479, 31
          %s481 = scalar_select %p480, %s479, 31
          %s482 = smul.addr %s481, 8
          %s483 = scalar_lea.vmem %s0, %s482
          %s484 = smul.u32 16, %s27
        $region72: #{tpu_custom_call.1} parent=67 // pred_fallthru
          _
        // Predicated region
        $region73: #{tpu_custom_call.1} parent=67 // pred_check
          %p485 = pneg %p94
        $region74: #{tpu_custom_call.1} parent=67 // pred_check_branch
          %487 = sbr.rel (%p485) target = $region76
        $region75: #{tpu_custom_call.1} parent=67 // pred_region
          %s488 = smul.u32 16, %s27
          %p489 = scmp.lt.s32.totalorder %s488, 31
          %s490 = scalar_select %p489, %s488, 31
          %s491 = smul.addr %s490, 4
          %s492 = scalar_lea.vmem %s2, %s491
          %s493 = smul.u32 16, %s27
        $region76: #{tpu_custom_call.1} parent=67 // pred_fallthru
          _
      $region68: #{tpu_custom_call.1} parent=5 // pred_fallthru
        _
      %p494 = scmp.le.s32.totalorder 1, %s27
      %p495 = scmp.lt.s32.totalorder %s27, 3
      %p496 = pnand %p494, %p495
      %p497 = pneg %p496
      // Predicated region
      $region77: #{tpu_custom_call.1} parent=5 // pred_check
        _
      $region78: #{tpu_custom_call.1} parent=5 // pred_check_branch
        %499 = sbr.rel (%p496) target = $region80
      $region79: #{tpu_custom_call.1} parent=5 // pred_region
        %s500 = ssub.s32 %s27, 1
        // Predicated region
        $region81: #{tpu_custom_call.1} parent=79 // pred_check
          %p501 = pneg %p205
        $region82: #{tpu_custom_call.1} parent=79 // pred_check_branch
          %503 = sbr.rel (%p501) target = $region84
        $region83: #{tpu_custom_call.1} parent=79 // pred_region
          %504 = dma.done [#allocation3], 1024
        $region84: #{tpu_custom_call.1} parent=79 // pred_fallthru
          _
        // Predicated region
        $region85: #{tpu_custom_call.1} parent=79 // pred_check
          %p505 = pneg %p247
        $region86: #{tpu_custom_call.1} parent=79 // pred_check_branch
          %507 = sbr.rel (%p505) target = $region88
        $region87: #{tpu_custom_call.1} parent=79 // pred_region
          %508 = dma.done [#allocation6], 1024
        $region88: #{tpu_custom_call.1} parent=79 // pred_fallthru
          _
        // Predicated region
        $region89: #{tpu_custom_call.1} parent=79 // pred_check
          %p509 = pneg %p289
        $region90: #{tpu_custom_call.1} parent=79 // pred_check_branch
          %511 = sbr.rel (%p509) target = $region92
        $region91: #{tpu_custom_call.1} parent=79 // pred_region
          %512 = dma.done [#allocation6], 1024
        $region92: #{tpu_custom_call.1} parent=79 // pred_fallthru
          _
        // Predicated region
        $region93: #{tpu_custom_call.1} parent=79 // pred_check
          %p513 = pneg %p331
        $region94: #{tpu_custom_call.1} parent=79 // pred_check_branch
          %515 = sbr.rel (%p513) target = $region96
        $region95: #{tpu_custom_call.1} parent=79 // pred_region
          %516 = dma.done [#allocation9], 1024
        $region96: #{tpu_custom_call.1} parent=79 // pred_fallthru
          _
        %s517 = smul.u32 16, %s32
        %p518 = scmp.lt.s32.totalorder %s517, 31
        %s519 = scalar_select %p518, %s517, 31
        %s520 = smul.addr %s519, 8
        %s521 = scalar_lea.vmem %s0, %s520
        %p522 = pneg %p53
        %p523 = pneg %p50
        %p524 = pneg %p74
        %p525 = pneg %p71
        %s526 = smul.u32 16, %s32
        %p527 = scmp.lt.s32.totalorder %s526, 31
        %s528 = scalar_select %p527, %s526, 31
        %s529 = smul.addr %s528, 4
        %s530 = scalar_lea.vmem %s2, %s529
        %p531 = pneg %p100
        %p532 = pneg %p97
        %p533 = pneg %p121
        %p534 = pneg %p118
        %p535 = pneg %p142
        %p536 = pneg %p139
        %p537 = pneg %p163
        %p538 = pneg %p160
        %p539 = pneg %p184
        %p540 = pneg %p181
        %p541 = pneg %p205
        %p542 = pneg %p202
        %p543 = pneg %p226
        %p544 = pneg %p223
        %p545 = pneg %p247
        %p546 = pneg %p244
        %p547 = pneg %p268
        %p548 = pneg %p265
        %p549 = pneg %p289
        %p550 = pneg %p286
        %p551 = pneg %p310
        %p552 = pneg %p307
        %p553 = pneg %p331
        %p554 = pneg %p328
        %p555 = pneg %p352
        %p556 = pneg %p349
        %p557 = pneg %p378
        %p558 = pneg %p375
        %s559 = sand.u32 %s365, 1
        %s560 = scalar_lea.sflag [#allocation4], %s559
        %s561 = sand.u32 %s365, 1
        %s562 = smul.addr %s561, 128
        %s563 = scalar_lea.vmem [#allocation10], %s562
        %s564 = smul.u32 16, %s32
        %p565 = scmp.lt.s32.totalorder %s564, 31
        %s566 = scalar_select %p565, %s564, 31
        %s567 = smul.addr %s566, 8
        %s568 = scalar_lea.vmem %s0, %s567
        %s569 = smul.u32 16, %s32
        %s570 = smul.u32 16, %s32
        %p571 = scmp.lt.s32.totalorder %s570, 31
        %s572 = scalar_select %p571, %s570, 31
        %s573 = smul.addr %s572, 4
        %s574 = scalar_lea.vmem %s2, %s573
        %s575 = smul.u32 16, %s32
        %s576 = smul.u32 16, %s32
        %v578 = vld [vmem:[%s568] sm:$0xff]
        %v579 = vld [vmem:[%s568 + $0x8] sm:$0xff]
        %v580 = vld [vmem:[%s568 + $0x10] sm:$0xff]
        %v581 = vld [vmem:[%s568 + $0x18] sm:$0xff]
        %v582 = vld [vmem:[%s568 + $0x20] sm:$0xff]
        %v583 = vld [vmem:[%s568 + $0x28] sm:$0xff]
        %v584 = vld [vmem:[%s568 + $0x30] sm:$0xff]
        %v585 = vld [vmem:[%s568 + $0x38] sm:$0xff]
        %v586 = vld [vmem:[%s568 + $0x40] sm:$0xff]
        %v587 = vld [vmem:[%s568 + $0x48] sm:$0xff]
        %v588 = vld [vmem:[%s568 + $0x50] sm:$0xff]
        %v589 = vld [vmem:[%s568 + $0x58] sm:$0xff]
        %v590 = vld [vmem:[%s568 + $0x60] sm:$0xff]
        %v591 = vld [vmem:[%s568 + $0x68] sm:$0xff]
        %v592 = vld [vmem:[%s568 + $0x70] sm:$0xff]
        %v593 = vld [vmem:[%s568 + $0x78] sm:$0xff]
        %v594 = vld [vmem:[%s1] sm:$0x1]
        %v595 = vld [vmem:[%s1 + $0x1] sm:$0x1]
        %597 = vset.pattern.permute.xlu0 0
        %598 = vperm.xlu0 %597, %v578
        %v599 = vpop.permute.xlu0 %598
        %602 = vset.pattern.permute.xlu0 0
        %603 = vperm.xlu0 %602, %v579
        %v604 = vpop.permute.xlu0 %603
        %607 = vset.pattern.permute.xlu0 0
        %608 = vperm.xlu0 %607, %v580
        %v609 = vpop.permute.xlu0 %608
        %612 = vset.pattern.permute.xlu0 0
        %613 = vperm.xlu0 %612, %v581
        %v614 = vpop.permute.xlu0 %613
        %617 = vset.pattern.permute.xlu0 0
        %618 = vperm.xlu0 %617, %v582
        %v619 = vpop.permute.xlu0 %618
        %622 = vset.pattern.permute.xlu0 0
        %623 = vperm.xlu0 %622, %v583
        %v624 = vpop.permute.xlu0 %623
        %627 = vset.pattern.permute.xlu0 0
        %628 = vperm.xlu0 %627, %v584
        %v629 = vpop.permute.xlu0 %628
        %632 = vset.pattern.permute.xlu0 0
        %633 = vperm.xlu0 %632, %v585
        %v634 = vpop.permute.xlu0 %633
        %637 = vset.pattern.permute.xlu0 0
        %638 = vperm.xlu0 %637, %v586
        %v639 = vpop.permute.xlu0 %638
        %642 = vset.pattern.permute.xlu0 0
        %643 = vperm.xlu0 %642, %v587
        %v644 = vpop.permute.xlu0 %643
        %647 = vset.pattern.permute.xlu0 0
        %648 = vperm.xlu0 %647, %v588
        %v649 = vpop.permute.xlu0 %648
        %652 = vset.pattern.permute.xlu0 0
        %653 = vperm.xlu0 %652, %v589
        %v654 = vpop.permute.xlu0 %653
        %657 = vset.pattern.permute.xlu0 0
        %658 = vperm.xlu0 %657, %v590
        %v659 = vpop.permute.xlu0 %658
        %662 = vset.pattern.permute.xlu0 0
        %663 = vperm.xlu0 %662, %v591
        %v664 = vpop.permute.xlu0 %663
        %667 = vset.pattern.permute.xlu0 0
        %668 = vperm.xlu0 %667, %v592
        %v669 = vpop.permute.xlu0 %668
        %672 = vset.pattern.permute.xlu0 0
        %673 = vperm.xlu0 %672, %v593
        %v674 = vpop.permute.xlu0 %673
        %v676 = vlaneseq
        %v677 = vshrl.u32 %v676, 7
        %v678 = vsub.s32 0, %v677
        %v679 = vrot.slane %v594, %v678
        %v680 = vmul.f32 %v599, %v679
        %v681 = vmul.f32 %v604, %v679
        %v682 = vmul.f32 %v609, %v679
        %v683 = vmul.f32 %v614, %v679
        %v684 = vmul.f32 %v619, %v679
        %v685 = vmul.f32 %v624, %v679
        %v686 = vmul.f32 %v629, %v679
        %v687 = vmul.f32 %v634, %v679
        %v688 = vmul.f32 %v639, %v679
        %v689 = vmul.f32 %v644, %v679
        %v690 = vmul.f32 %v649, %v679
        %v691 = vmul.f32 %v654, %v679
        %v692 = vmul.f32 %v659, %v679
        %v693 = vmul.f32 %v664, %v679
        %v694 = vmul.f32 %v669, %v679
        %v695 = vmul.f32 %v674, %v679
        %v696 = vlaneseq
        %v697 = vshrl.u32 %v696, 7
        %v698 = vsub.s32 0, %v697
        %v699 = vrot.slane %v595, %v698
        %v700 = vadd.f32 %v680, %v699
        %v701 = vadd.f32 %v681, %v699
        %v702 = vadd.f32 %v682, %v699
        %v703 = vadd.f32 %v683, %v699
        %v704 = vadd.f32 %v684, %v699
        %v705 = vadd.f32 %v685, %v699
        %v706 = vadd.f32 %v686, %v699
        %v707 = vadd.f32 %v687, %v699
        %v708 = vadd.f32 %v688, %v699
        %v709 = vadd.f32 %v689, %v699
        %v710 = vadd.f32 %v690, %v699
        %v711 = vadd.f32 %v691, %v699
        %v712 = vadd.f32 %v692, %v699
        %v713 = vadd.f32 %v693, %v699
        %v714 = vadd.f32 %v694, %v699
        %v715 = vadd.f32 %v695, %v699
        %v716 = vand.u32 2147483647, %v700
        %vm717 = vcmp.le.f32.partialorder %v716, 0.7853982
        %vm718 = vcmp.lt.s32.totalorder %v700, 0
        %v719 = vand.u32 %v700, 2139095040
        %v720 = vshrl.u32 %v719, 23
        %v721 = vsub.s32 %v720, 127
        %v722 = vand.u32 2147483647, %v700
        %v723 = vand.u32 %v722, 8388607
        %v724 = vor.u32 %v723, 8388608
        %v725 = vsub.s32 0, %v724
        %v726 = vadd.s32 %v721, 1
        %vm727 = vcmp.gt.s32.totalorder %v726, 0
        %v728 = vsel %vm727, %v726, 0
        %v729 = vshrl.u32 %v728, 5
        %v730 = vand.u32 %v728, 31
        %v731 = vsub.s32 32, %v730
        %v732 = vshrl.u32 683565275, %v731
        %v733 = vshll.u32 683565275, %v730
        %v734 = vshrl.u32 2475754826, %v731
        %v735 = vor.u32 %v733, %v734
        %v736 = vshll.u32 2475754826, %v730
        %v737 = vshrl.u32 2131351028, %v731
        %v738 = vor.u32 %v736, %v737
        %v739 = vshll.u32 2131351028, %v730
        %v740 = vshrl.u32 2102212464, %v731
        %v741 = vor.u32 %v739, %v740
        %v742 = vshll.u32 2102212464, %v730
        %v743 = vshrl.u32 920167782, %v731
        %v744 = vor.u32 %v742, %v743
        %v745 = vshll.u32 920167782, %v730
        %v746 = vshrl.u32 1326507024, %v731
        %v747 = vor.u32 %v745, %v746
        %vm748 = vcmp.lt.s32.totalorder %v729, 1
        %vm749 = vcmp.lt.s32.totalorder %v729, 2
        %vm750 = vcmp.lt.s32.totalorder %v729, 3
        %vm751 = vcmp.lt.s32.totalorder %v729, 4
        %v752 = vsel %vm748, %v732, %v735
        %v753 = vsel %vm751, %v741, 2102212464
        %v754 = vsel %vm750, %v738, %v753
        %v755 = vsel %vm749, %v752, %v754
        %v756 = vsel %vm748, %v735, %v738
        %v757 = vsel %vm751, %v744, 920167782
        %v758 = vsel %vm750, %v741, %v757
        %v759 = vsel %vm749, %v756, %v758
        %v760 = vsel %vm748, %v738, %v741
        %v761 = vsel %vm751, %v747, 1326507024
        %v762 = vsel %vm750, %v744, %v761
        %v763 = vsel %vm749, %v760, %v762
        %v764 = vshll.u32 %v724, 8
        %v765 = vmul.u32.u64.compose %v764, %v763
        %v766 = vextract.low.u32 %v765
        %v767 = vextract.high.u32 %v765
        %v768 = vmul.u32.u64.compose %v764, %v759
        %v769 = vextract.low.u32 %v768
        %v770 = vextract.high.u32 %v768
        %v771 = vmul.u32 %v764, %v755
        %v772 = vadd.s32 %v767, %v769
        %vm773 = vc.u32 %v767, %v769
        %v774 = vadd.s32 %v770, 1
        %v775 = vsel %vm773, %v774, %v770
        %v776 = vadd.s32 %v771, %v775
        %v777 = vadd.s32 %v776, 536870912
        %v778 = vshrl.u32 %v777, 30
        %v779 = vshll.u32 %v778, 30
        %v780 = vsub.s32 %v776, %v779
        %vm781 = vcmp.lt.s32.totalorder %v780, 0
        %v782 = vsub.s32 0, %v780
        %v783 = vsel %vm781, %v782, %v780
        %v784 = vclz %v783
        %v785 = vsub.s32 %v784, 2
        %vm786 = vcmp.gt.s32.totalorder 0, %v785
        %v787 = vsel %vm786, 0, %v785
        %v788 = vsub.s32 32, %v787
        %v789 = vshll.u32 %v780, %v787
        %v790 = vshrl.u32 %v772, %v788
        %v791 = vor.u32 %v789, %v790
        %v792 = vsub.s32 4294967266, %v787
        %v793 = vadd.s32 %v792, 127
        %v794 = vshll.u32 %v793, 23
        %v795 = vor.u32 4788187, %v794
        %v796 = vand.u32 2147483647, %v795
        %v798 = vcvt.s32.f32 %v791
        %v799 = vmul.f32 %v798, %v796
        %v800 = vxor.u32 %v799, 2147483648
        %v801 = vsel %vm718, %v800, %v799
        %v802 = vsub.s32 4, %v778
        %v803 = vsel %vm718, %v802, %v778
        %v804 = vsel %vm717, %v700, %v801
        %v805 = vsel %vm717, 0, %v803
        %v806 = vcosq.f32.pop %v804
        %v807 = vsinq.f32.pop %v804
        %vm808 = vweird.f32 %v700
        %v809 = vadd.s32 %v805, 3
        %v810 = vand.u32 %v809, 3
        %vm811 = vcmp.lt.s32.totalorder %v810, 2
        %vm812 = vcmp.eq.s32.totalorder %v810, 0
        %v813 = vxor.u32 %v807, 2147483648
        %v814 = vsel %vm812, %v806, %v813
        %vm815 = vcmp.eq.s32.totalorder %v810, 2
        %v816 = vxor.u32 %v806, 2147483648
        %v817 = vsel %vm815, %v816, %v807
        %v818 = vsel %vm811, %v814, %v817
        %v819 = vsel %vm808, nan, %v818
        %v820 = vand.u32 2147483647, %v701
        %vm821 = vcmp.le.f32.partialorder %v820, 0.7853982
        %vm822 = vcmp.lt.s32.totalorder %v701, 0
        %v823 = vand.u32 %v701, 2139095040
        %v824 = vshrl.u32 %v823, 23
        %v825 = vsub.s32 %v824, 127
        %v826 = vand.u32 2147483647, %v701
        %v827 = vand.u32 %v826, 8388607
        %v828 = vor.u32 %v827, 8388608
        %v829 = vsub.s32 0, %v828
        %v830 = vadd.s32 %v825, 1
        %vm831 = vcmp.gt.s32.totalorder %v830, 0
        %v832 = vsel %vm831, %v830, 0
        %v833 = vshrl.u32 %v832, 5
        %v834 = vand.u32 %v832, 31
        %v835 = vsub.s32 32, %v834
        %v836 = vshrl.u32 683565275, %v835
        %v837 = vshll.u32 683565275, %v834
        %v838 = vshrl.u32 2475754826, %v835
        %v839 = vor.u32 %v837, %v838
        %v840 = vshll.u32 2475754826, %v834
        %v841 = vshrl.u32 2131351028, %v835
        %v842 = vor.u32 %v840, %v841
        %v843 = vshll.u32 2131351028, %v834
        %v844 = vshrl.u32 2102212464, %v835
        %v845 = vor.u32 %v843, %v844
        %v846 = vshll.u32 2102212464, %v834
        %v847 = vshrl.u32 920167782, %v835
        %v848 = vor.u32 %v846, %v847
        %v849 = vshll.u32 920167782, %v834
        %v850 = vshrl.u32 1326507024, %v835
        %v851 = vor.u32 %v849, %v850
        %vm852 = vcmp.lt.s32.totalorder %v833, 1
        %vm853 = vcmp.lt.s32.totalorder %v833, 2
        %vm854 = vcmp.lt.s32.totalorder %v833, 3
        %vm855 = vcmp.lt.s32.totalorder %v833, 4
        %v856 = vsel %vm852, %v836, %v839
        %v857 = vsel %vm855, %v845, 2102212464
        %v858 = vsel %vm854, %v842, %v857
        %v859 = vsel %vm853, %v856, %v858
        %v860 = vsel %vm852, %v839, %v842
        %v861 = vsel %vm855, %v848, 920167782
        %v862 = vsel %vm854, %v845, %v861
        %v863 = vsel %vm853, %v860, %v862
        %v864 = vsel %vm852, %v842, %v845
        %v865 = vsel %vm855, %v851, 1326507024
        %v866 = vsel %vm854, %v848, %v865
        %v867 = vsel %vm853, %v864, %v866
        %v868 = vshll.u32 %v828, 8
        %v869 = vmul.u32.u64.compose %v868, %v867
        %v870 = vextract.low.u32 %v869
        %v871 = vextract.high.u32 %v869
        %v872 = vmul.u32.u64.compose %v868, %v863
        %v873 = vextract.low.u32 %v872
        %v874 = vextract.high.u32 %v872
        %v875 = vmul.u32 %v868, %v859
        %v876 = vadd.s32 %v871, %v873
        %vm877 = vc.u32 %v871, %v873
        %v878 = vadd.s32 %v874, 1
        %v879 = vsel %vm877, %v878, %v874
        %v880 = vadd.s32 %v875, %v879
        %v881 = vadd.s32 %v880, 536870912
        %v882 = vshrl.u32 %v881, 30
        %v883 = vshll.u32 %v882, 30
        %v884 = vsub.s32 %v880, %v883
        %vm885 = vcmp.lt.s32.totalorder %v884, 0
        %v886 = vsub.s32 0, %v884
        %v887 = vsel %vm885, %v886, %v884
        %v888 = vclz %v887
        %v889 = vsub.s32 %v888, 2
        %vm890 = vcmp.gt.s32.totalorder 0, %v889
        %v891 = vsel %vm890, 0, %v889
        %v892 = vsub.s32 32, %v891
        %v893 = vshll.u32 %v884, %v891
        %v894 = vshrl.u32 %v876, %v892
        %v895 = vor.u32 %v893, %v894
        %v896 = vsub.s32 4294967266, %v891
        %v897 = vadd.s32 %v896, 127
        %v898 = vshll.u32 %v897, 23
        %v899 = vor.u32 4788187, %v898
        %v900 = vand.u32 2147483647, %v899
        %v902 = vcvt.s32.f32 %v895
        %v903 = vmul.f32 %v902, %v900
        %v904 = vxor.u32 %v903, 2147483648
        %v905 = vsel %vm822, %v904, %v903
        %v906 = vsub.s32 4, %v882
        %v907 = vsel %vm822, %v906, %v882
        %v908 = vsel %vm821, %v701, %v905
        %v909 = vsel %vm821, 0, %v907
        %v910 = vcosq.f32.pop %v908
        %v911 = vsinq.f32.pop %v908
        %vm912 = vweird.f32 %v701
        %v913 = vadd.s32 %v909, 3
        %v914 = vand.u32 %v913, 3
        %vm915 = vcmp.lt.s32.totalorder %v914, 2
        %vm916 = vcmp.eq.s32.totalorder %v914, 0
        %v917 = vxor.u32 %v911, 2147483648
        %v918 = vsel %vm916, %v910, %v917
        %vm919 = vcmp.eq.s32.totalorder %v914, 2
        %v920 = vxor.u32 %v910, 2147483648
        %v921 = vsel %vm919, %v920, %v911
        %v922 = vsel %vm915, %v918, %v921
        %v923 = vsel %vm912, nan, %v922
        %v924 = vand.u32 2147483647, %v702
        %vm925 = vcmp.le.f32.partialorder %v924, 0.7853982
        %vm926 = vcmp.lt.s32.totalorder %v702, 0
        %v927 = vand.u32 %v702, 2139095040
        %v928 = vshrl.u32 %v927, 23
        %v929 = vsub.s32 %v928, 127
        %v930 = vand.u32 2147483647, %v702
        %v931 = vand.u32 %v930, 8388607
        %v932 = vor.u32 %v931, 8388608
        %v933 = vsub.s32 0, %v932
        %v934 = vadd.s32 %v929, 1
        %vm935 = vcmp.gt.s32.totalorder %v934, 0
        %v936 = vsel %vm935, %v934, 0
        %v937 = vshrl.u32 %v936, 5
        %v938 = vand.u32 %v936, 31
        %v939 = vsub.s32 32, %v938
        %v940 = vshrl.u32 683565275, %v939
        %v941 = vshll.u32 683565275, %v938
        %v942 = vshrl.u32 2475754826, %v939
        %v943 = vor.u32 %v941, %v942
        %v944 = vshll.u32 2475754826, %v938
        %v945 = vshrl.u32 2131351028, %v939
        %v946 = vor.u32 %v944, %v945
        %v947 = vshll.u32 2131351028, %v938
        %v948 = vshrl.u32 2102212464, %v939
        %v949 = vor.u32 %v947, %v948
        %v950 = vshll.u32 2102212464, %v938
        %v951 = vshrl.u32 920167782, %v939
        %v952 = vor.u32 %v950, %v951
        %v953 = vshll.u32 920167782, %v938
        %v954 = vshrl.u32 1326507024, %v939
        %v955 = vor.u32 %v953, %v954
        %vm956 = vcmp.lt.s32.totalorder %v937, 1
        %vm957 = vcmp.lt.s32.totalorder %v937, 2
        %vm958 = vcmp.lt.s32.totalorder %v937, 3
        %vm959 = vcmp.lt.s32.totalorder %v937, 4
        %v960 = vsel %vm956, %v940, %v943
        %v961 = vsel %vm959, %v949, 2102212464
        %v962 = vsel %vm958, %v946, %v961
        %v963 = vsel %vm957, %v960, %v962
        %v964 = vsel %vm956, %v943, %v946
        %v965 = vsel %vm959, %v952, 920167782
        %v966 = vsel %vm958, %v949, %v965
        %v967 = vsel %vm957, %v964, %v966
        %v968 = vsel %vm956, %v946, %v949
        %v969 = vsel %vm959, %v955, 1326507024
        %v970 = vsel %vm958, %v952, %v969
        %v971 = vsel %vm957, %v968, %v970
        %v972 = vshll.u32 %v932, 8
        %v973 = vmul.u32.u64.compose %v972, %v971
        %v974 = vextract.low.u32 %v973
        %v975 = vextract.high.u32 %v973
        %v976 = vmul.u32.u64.compose %v972, %v967
        %v977 = vextract.low.u32 %v976
        %v978 = vextract.high.u32 %v976
        %v979 = vmul.u32 %v972, %v963
        %v980 = vadd.s32 %v975, %v977
        %vm981 = vc.u32 %v975, %v977
        %v982 = vadd.s32 %v978, 1
        %v983 = vsel %vm981, %v982, %v978
        %v984 = vadd.s32 %v979, %v983
        %v985 = vadd.s32 %v984, 536870912
        %v986 = vshrl.u32 %v985, 30
        %v987 = vshll.u32 %v986, 30
        %v988 = vsub.s32 %v984, %v987
        %vm989 = vcmp.lt.s32.totalorder %v988, 0
        %v990 = vsub.s32 0, %v988
        %v991 = vsel %vm989, %v990, %v988
        %v992 = vclz %v991
        %v993 = vsub.s32 %v992, 2
        %vm994 = vcmp.gt.s32.totalorder 0, %v993
        %v995 = vsel %vm994, 0, %v993
        %v996 = vsub.s32 32, %v995
        %v997 = vshll.u32 %v988, %v995
        %v998 = vshrl.u32 %v980, %v996
        %v999 = vor.u32 %v997, %v998
        %v1000 = vsub.s32 4294967266, %v995
        %v1001 = vadd.s32 %v1000, 127
        %v1002 = vshll.u32 %v1001, 23
        %v1003 = vor.u32 4788187, %v1002
        %v1004 = vand.u32 2147483647, %v1003
        %v1006 = vcvt.s32.f32 %v999
        %v1007 = vmul.f32 %v1006, %v1004
        %v1008 = vxor.u32 %v1007, 2147483648
        %v1009 = vsel %vm926, %v1008, %v1007
        %v1010 = vsub.s32 4, %v986
        %v1011 = vsel %vm926, %v1010, %v986
        %v1012 = vsel %vm925, %v702, %v1009
        %v1013 = vsel %vm925, 0, %v1011
        %v1014 = vcosq.f32.pop %v1012
        %v1015 = vsinq.f32.pop %v1012
        %vm1016 = vweird.f32 %v702
        %v1017 = vadd.s32 %v1013, 3
        %v1018 = vand.u32 %v1017, 3
        %vm1019 = vcmp.lt.s32.totalorder %v1018, 2
        %vm1020 = vcmp.eq.s32.totalorder %v1018, 0
        %v1021 = vxor.u32 %v1015, 2147483648
        %v1022 = vsel %vm1020, %v1014, %v1021
        %vm1023 = vcmp.eq.s32.totalorder %v1018, 2
        %v1024 = vxor.u32 %v1014, 2147483648
        %v1025 = vsel %vm1023, %v1024, %v1015
        %v1026 = vsel %vm1019, %v1022, %v1025
        %v1027 = vsel %vm1016, nan, %v1026
        %v1028 = vand.u32 2147483647, %v703
        %vm1029 = vcmp.le.f32.partialorder %v1028, 0.7853982
        %vm1030 = vcmp.lt.s32.totalorder %v703, 0
        %v1031 = vand.u32 %v703, 2139095040
        %v1032 = vshrl.u32 %v1031, 23
        %v1033 = vsub.s32 %v1032, 127
        %v1034 = vand.u32 2147483647, %v703
        %v1035 = vand.u32 %v1034, 8388607
        %v1036 = vor.u32 %v1035, 8388608
        %v1037 = vsub.s32 0, %v1036
        %v1038 = vadd.s32 %v1033, 1
        %vm1039 = vcmp.gt.s32.totalorder %v1038, 0
        %v1040 = vsel %vm1039, %v1038, 0
        %v1041 = vshrl.u32 %v1040, 5
        %v1042 = vand.u32 %v1040, 31
        %v1043 = vsub.s32 32, %v1042
        %v1044 = vshrl.u32 683565275, %v1043
        %v1045 = vshll.u32 683565275, %v1042
        %v1046 = vshrl.u32 2475754826, %v1043
        %v1047 = vor.u32 %v1045, %v1046
        %v1048 = vshll.u32 2475754826, %v1042
        %v1049 = vshrl.u32 2131351028, %v1043
        %v1050 = vor.u32 %v1048, %v1049
        %v1051 = vshll.u32 2131351028, %v1042
        %v1052 = vshrl.u32 2102212464, %v1043
        %v1053 = vor.u32 %v1051, %v1052
        %v1054 = vshll.u32 2102212464, %v1042
        %v1055 = vshrl.u32 920167782, %v1043
        %v1056 = vor.u32 %v1054, %v1055
        %v1057 = vshll.u32 920167782, %v1042
        %v1058 = vshrl.u32 1326507024, %v1043
        %v1059 = vor.u32 %v1057, %v1058
        %vm1060 = vcmp.lt.s32.totalorder %v1041, 1
        %vm1061 = vcmp.lt.s32.totalorder %v1041, 2
        %vm1062 = vcmp.lt.s32.totalorder %v1041, 3
        %vm1063 = vcmp.lt.s32.totalorder %v1041, 4
        %v1064 = vsel %vm1060, %v1044, %v1047
        %v1065 = vsel %vm1063, %v1053, 2102212464
        %v1066 = vsel %vm1062, %v1050, %v1065
        %v1067 = vsel %vm1061, %v1064, %v1066
        %v1068 = vsel %vm1060, %v1047, %v1050
        %v1069 = vsel %vm1063, %v1056, 920167782
        %v1070 = vsel %vm1062, %v1053, %v1069
        %v1071 = vsel %vm1061, %v1068, %v1070
        %v1072 = vsel %vm1060, %v1050, %v1053
        %v1073 = vsel %vm1063, %v1059, 1326507024
        %v1074 = vsel %vm1062, %v1056, %v1073
        %v1075 = vsel %vm1061, %v1072, %v1074
        %v1076 = vshll.u32 %v1036, 8
        %v1077 = vmul.u32.u64.compose %v1076, %v1075
        %v1078 = vextract.low.u32 %v1077
        %v1079 = vextract.high.u32 %v1077
        %v1080 = vmul.u32.u64.compose %v1076, %v1071
        %v1081 = vextract.low.u32 %v1080
        %v1082 = vextract.high.u32 %v1080
        %v1083 = vmul.u32 %v1076, %v1067
        %v1084 = vadd.s32 %v1079, %v1081
        %vm1085 = vc.u32 %v1079, %v1081
        %v1086 = vadd.s32 %v1082, 1
        %v1087 = vsel %vm1085, %v1086, %v1082
        %v1088 = vadd.s32 %v1083, %v1087
        %v1089 = vadd.s32 %v1088, 536870912
        %v1090 = vshrl.u32 %v1089, 30
        %v1091 = vshll.u32 %v1090, 30
        %v1092 = vsub.s32 %v1088, %v1091
        %vm1093 = vcmp.lt.s32.totalorder %v1092, 0
        %v1094 = vsub.s32 0, %v1092
        %v1095 = vsel %vm1093, %v1094, %v1092
        %v1096 = vclz %v1095
        %v1097 = vsub.s32 %v1096, 2
        %vm1098 = vcmp.gt.s32.totalorder 0, %v1097
        %v1099 = vsel %vm1098, 0, %v1097
        %v1100 = vsub.s32 32, %v1099
        %v1101 = vshll.u32 %v1092, %v1099
        %v1102 = vshrl.u32 %v1084, %v1100
        %v1103 = vor.u32 %v1101, %v1102
        %v1104 = vsub.s32 4294967266, %v1099
        %v1105 = vadd.s32 %v1104, 127
        %v1106 = vshll.u32 %v1105, 23
        %v1107 = vor.u32 4788187, %v1106
        %v1108 = vand.u32 2147483647, %v1107
        %v1110 = vcvt.s32.f32 %v1103
        %v1111 = vmul.f32 %v1110, %v1108
        %v1112 = vxor.u32 %v1111, 2147483648
        %v1113 = vsel %vm1030, %v1112, %v1111
        %v1114 = vsub.s32 4, %v1090
        %v1115 = vsel %vm1030, %v1114, %v1090
        %v1116 = vsel %vm1029, %v703, %v1113
        %v1117 = vsel %vm1029, 0, %v1115
        %v1118 = vcosq.f32.pop %v1116
        %v1119 = vsinq.f32.pop %v1116
        %vm1120 = vweird.f32 %v703
        %v1121 = vadd.s32 %v1117, 3
        %v1122 = vand.u32 %v1121, 3
        %vm1123 = vcmp.lt.s32.totalorder %v1122, 2
        %vm1124 = vcmp.eq.s32.totalorder %v1122, 0
        %v1125 = vxor.u32 %v1119, 2147483648
        %v1126 = vsel %vm1124, %v1118, %v1125
        %vm1127 = vcmp.eq.s32.totalorder %v1122, 2
        %v1128 = vxor.u32 %v1118, 2147483648
        %v1129 = vsel %vm1127, %v1128, %v1119
        %v1130 = vsel %vm1123, %v1126, %v1129
        %v1131 = vsel %vm1120, nan, %v1130
        %v1132 = vand.u32 2147483647, %v704
        %vm1133 = vcmp.le.f32.partialorder %v1132, 0.7853982
        %vm1134 = vcmp.lt.s32.totalorder %v704, 0
        %v1135 = vand.u32 %v704, 2139095040
        %v1136 = vshrl.u32 %v1135, 23
        %v1137 = vsub.s32 %v1136, 127
        %v1138 = vand.u32 2147483647, %v704
        %v1139 = vand.u32 %v1138, 8388607
        %v1140 = vor.u32 %v1139, 8388608
        %v1141 = vsub.s32 0, %v1140
        %v1142 = vadd.s32 %v1137, 1
        %vm1143 = vcmp.gt.s32.totalorder %v1142, 0
        %v1144 = vsel %vm1143, %v1142, 0
        %v1145 = vshrl.u32 %v1144, 5
        %v1146 = vand.u32 %v1144, 31
        %v1147 = vsub.s32 32, %v1146
        %v1148 = vshrl.u32 683565275, %v1147
        %v1149 = vshll.u32 683565275, %v1146
        %v1150 = vshrl.u32 2475754826, %v1147
        %v1151 = vor.u32 %v1149, %v1150
        %v1152 = vshll.u32 2475754826, %v1146
        %v1153 = vshrl.u32 2131351028, %v1147
        %v1154 = vor.u32 %v1152, %v1153
        %v1155 = vshll.u32 2131351028, %v1146
        %v1156 = vshrl.u32 2102212464, %v1147
        %v1157 = vor.u32 %v1155, %v1156
        %v1158 = vshll.u32 2102212464, %v1146
        %v1159 = vshrl.u32 920167782, %v1147
        %v1160 = vor.u32 %v1158, %v1159
        %v1161 = vshll.u32 920167782, %v1146
        %v1162 = vshrl.u32 1326507024, %v1147
        %v1163 = vor.u32 %v1161, %v1162
        %vm1164 = vcmp.lt.s32.totalorder %v1145, 1
        %vm1165 = vcmp.lt.s32.totalorder %v1145, 2
        %vm1166 = vcmp.lt.s32.totalorder %v1145, 3
        %vm1167 = vcmp.lt.s32.totalorder %v1145, 4
        %v1168 = vsel %vm1164, %v1148, %v1151
        %v1169 = vsel %vm1167, %v1157, 2102212464
        %v1170 = vsel %vm1166, %v1154, %v1169
        %v1171 = vsel %vm1165, %v1168, %v1170
        %v1172 = vsel %vm1164, %v1151, %v1154
        %v1173 = vsel %vm1167, %v1160, 920167782
        %v1174 = vsel %vm1166, %v1157, %v1173
        %v1175 = vsel %vm1165, %v1172, %v1174
        %v1176 = vsel %vm1164, %v1154, %v1157
        %v1177 = vsel %vm1167, %v1163, 1326507024
        %v1178 = vsel %vm1166, %v1160, %v1177
        %v1179 = vsel %vm1165, %v1176, %v1178
        %v1180 = vshll.u32 %v1140, 8
        %v1181 = vmul.u32.u64.compose %v1180, %v1179
        %v1182 = vextract.low.u32 %v1181
        %v1183 = vextract.high.u32 %v1181
        %v1184 = vmul.u32.u64.compose %v1180, %v1175
        %v1185 = vextract.low.u32 %v1184
        %v1186 = vextract.high.u32 %v1184
        %v1187 = vmul.u32 %v1180, %v1171
        %v1188 = vadd.s32 %v1183, %v1185
        %vm1189 = vc.u32 %v1183, %v1185
        %v1190 = vadd.s32 %v1186, 1
        %v1191 = vsel %vm1189, %v1190, %v1186
        %v1192 = vadd.s32 %v1187, %v1191
        %v1193 = vadd.s32 %v1192, 536870912
        %v1194 = vshrl.u32 %v1193, 30
        %v1195 = vshll.u32 %v1194, 30
        %v1196 = vsub.s32 %v1192, %v1195
        %vm1197 = vcmp.lt.s32.totalorder %v1196, 0
        %v1198 = vsub.s32 0, %v1196
        %v1199 = vsel %vm1197, %v1198, %v1196
        %v1200 = vclz %v1199
        %v1201 = vsub.s32 %v1200, 2
        %vm1202 = vcmp.gt.s32.totalorder 0, %v1201
        %v1203 = vsel %vm1202, 0, %v1201
        %v1204 = vsub.s32 32, %v1203
        %v1205 = vshll.u32 %v1196, %v1203
        %v1206 = vshrl.u32 %v1188, %v1204
        %v1207 = vor.u32 %v1205, %v1206
        %v1208 = vsub.s32 4294967266, %v1203
        %v1209 = vadd.s32 %v1208, 127
        %v1210 = vshll.u32 %v1209, 23
        %v1211 = vor.u32 4788187, %v1210
        %v1212 = vand.u32 2147483647, %v1211
        %v1214 = vcvt.s32.f32 %v1207
        %v1215 = vmul.f32 %v1214, %v1212
        %v1216 = vxor.u32 %v1215, 2147483648
        %v1217 = vsel %vm1134, %v1216, %v1215
        %v1218 = vsub.s32 4, %v1194
        %v1219 = vsel %vm1134, %v1218, %v1194
        %v1220 = vsel %vm1133, %v704, %v1217
        %v1221 = vsel %vm1133, 0, %v1219
        %v1222 = vcosq.f32.pop %v1220
        %v1223 = vsinq.f32.pop %v1220
        %vm1224 = vweird.f32 %v704
        %v1225 = vadd.s32 %v1221, 3
        %v1226 = vand.u32 %v1225, 3
        %vm1227 = vcmp.lt.s32.totalorder %v1226, 2
        %vm1228 = vcmp.eq.s32.totalorder %v1226, 0
        %v1229 = vxor.u32 %v1223, 2147483648
        %v1230 = vsel %vm1228, %v1222, %v1229
        %vm1231 = vcmp.eq.s32.totalorder %v1226, 2
        %v1232 = vxor.u32 %v1222, 2147483648
        %v1233 = vsel %vm1231, %v1232, %v1223
        %v1234 = vsel %vm1227, %v1230, %v1233
        %v1235 = vsel %vm1224, nan, %v1234
        %v1236 = vand.u32 2147483647, %v705
        %vm1237 = vcmp.le.f32.partialorder %v1236, 0.7853982
        %vm1238 = vcmp.lt.s32.totalorder %v705, 0
        %v1239 = vand.u32 %v705, 2139095040
        %v1240 = vshrl.u32 %v1239, 23
        %v1241 = vsub.s32 %v1240, 127
        %v1242 = vand.u32 2147483647, %v705
        %v1243 = vand.u32 %v1242, 8388607
        %v1244 = vor.u32 %v1243, 8388608
        %v1245 = vsub.s32 0, %v1244
        %v1246 = vadd.s32 %v1241, 1
        %vm1247 = vcmp.gt.s32.totalorder %v1246, 0
        %v1248 = vsel %vm1247, %v1246, 0
        %v1249 = vshrl.u32 %v1248, 5
        %v1250 = vand.u32 %v1248, 31
        %v1251 = vsub.s32 32, %v1250
        %v1252 = vshrl.u32 683565275, %v1251
        %v1253 = vshll.u32 683565275, %v1250
        %v1254 = vshrl.u32 2475754826, %v1251
        %v1255 = vor.u32 %v1253, %v1254
        %v1256 = vshll.u32 2475754826, %v1250
        %v1257 = vshrl.u32 2131351028, %v1251
        %v1258 = vor.u32 %v1256, %v1257
        %v1259 = vshll.u32 2131351028, %v1250
        %v1260 = vshrl.u32 2102212464, %v1251
        %v1261 = vor.u32 %v1259, %v1260
        %v1262 = vshll.u32 2102212464, %v1250
        %v1263 = vshrl.u32 920167782, %v1251
        %v1264 = vor.u32 %v1262, %v1263
        %v1265 = vshll.u32 920167782, %v1250
        %v1266 = vshrl.u32 1326507024, %v1251
        %v1267 = vor.u32 %v1265, %v1266
        %vm1268 = vcmp.lt.s32.totalorder %v1249, 1
        %vm1269 = vcmp.lt.s32.totalorder %v1249, 2
        %vm1270 = vcmp.lt.s32.totalorder %v1249, 3
        %vm1271 = vcmp.lt.s32.totalorder %v1249, 4
        %v1272 = vsel %vm1268, %v1252, %v1255
        %v1273 = vsel %vm1271, %v1261, 2102212464
        %v1274 = vsel %vm1270, %v1258, %v1273
        %v1275 = vsel %vm1269, %v1272, %v1274
        %v1276 = vsel %vm1268, %v1255, %v1258
        %v1277 = vsel %vm1271, %v1264, 920167782
        %v1278 = vsel %vm1270, %v1261, %v1277
        %v1279 = vsel %vm1269, %v1276, %v1278
        %v1280 = vsel %vm1268, %v1258, %v1261
        %v1281 = vsel %vm1271, %v1267, 1326507024
        %v1282 = vsel %vm1270, %v1264, %v1281
        %v1283 = vsel %vm1269, %v1280, %v1282
        %v1284 = vshll.u32 %v1244, 8
        %v1285 = vmul.u32.u64.compose %v1284, %v1283
        %v1286 = vextract.low.u32 %v1285
        %v1287 = vextract.high.u32 %v1285
        %v1288 = vmul.u32.u64.compose %v1284, %v1279
        %v1289 = vextract.low.u32 %v1288
        %v1290 = vextract.high.u32 %v1288
        %v1291 = vmul.u32 %v1284, %v1275
        %v1292 = vadd.s32 %v1287, %v1289
        %vm1293 = vc.u32 %v1287, %v1289
        %v1294 = vadd.s32 %v1290, 1
        %v1295 = vsel %vm1293, %v1294, %v1290
        %v1296 = vadd.s32 %v1291, %v1295
        %v1297 = vadd.s32 %v1296, 536870912
        %v1298 = vshrl.u32 %v1297, 30
        %v1299 = vshll.u32 %v1298, 30
        %v1300 = vsub.s32 %v1296, %v1299
        %vm1301 = vcmp.lt.s32.totalorder %v1300, 0
        %v1302 = vsub.s32 0, %v1300
        %v1303 = vsel %vm1301, %v1302, %v1300
        %v1304 = vclz %v1303
        %v1305 = vsub.s32 %v1304, 2
        %vm1306 = vcmp.gt.s32.totalorder 0, %v1305
        %v1307 = vsel %vm1306, 0, %v1305
        %v1308 = vsub.s32 32, %v1307
        %v1309 = vshll.u32 %v1300, %v1307
        %v1310 = vshrl.u32 %v1292, %v1308
        %v1311 = vor.u32 %v1309, %v1310
        %v1312 = vsub.s32 4294967266, %v1307
        %v1313 = vadd.s32 %v1312, 127
        %v1314 = vshll.u32 %v1313, 23
        %v1315 = vor.u32 4788187, %v1314
        %v1316 = vand.u32 2147483647, %v1315
        %v1318 = vcvt.s32.f32 %v1311
        %v1319 = vmul.f32 %v1318, %v1316
        %v1320 = vxor.u32 %v1319, 2147483648
        %v1321 = vsel %vm1238, %v1320, %v1319
        %v1322 = vsub.s32 4, %v1298
        %v1323 = vsel %vm1238, %v1322, %v1298
        %v1324 = vsel %vm1237, %v705, %v1321
        %v1325 = vsel %vm1237, 0, %v1323
        %v1326 = vcosq.f32.pop %v1324
        %v1327 = vsinq.f32.pop %v1324
        %vm1328 = vweird.f32 %v705
        %v1329 = vadd.s32 %v1325, 3
        %v1330 = vand.u32 %v1329, 3
        %vm1331 = vcmp.lt.s32.totalorder %v1330, 2
        %vm1332 = vcmp.eq.s32.totalorder %v1330, 0
        %v1333 = vxor.u32 %v1327, 2147483648
        %v1334 = vsel %vm1332, %v1326, %v1333
        %vm1335 = vcmp.eq.s32.totalorder %v1330, 2
        %v1336 = vxor.u32 %v1326, 2147483648
        %v1337 = vsel %vm1335, %v1336, %v1327
        %v1338 = vsel %vm1331, %v1334, %v1337
        %v1339 = vsel %vm1328, nan, %v1338
        %v1340 = vand.u32 2147483647, %v706
        %vm1341 = vcmp.le.f32.partialorder %v1340, 0.7853982
        %vm1342 = vcmp.lt.s32.totalorder %v706, 0
        %v1343 = vand.u32 %v706, 2139095040
        %v1344 = vshrl.u32 %v1343, 23
        %v1345 = vsub.s32 %v1344, 127
        %v1346 = vand.u32 2147483647, %v706
        %v1347 = vand.u32 %v1346, 8388607
        %v1348 = vor.u32 %v1347, 8388608
        %v1349 = vsub.s32 0, %v1348
        %v1350 = vadd.s32 %v1345, 1
        %vm1351 = vcmp.gt.s32.totalorder %v1350, 0
        %v1352 = vsel %vm1351, %v1350, 0
        %v1353 = vshrl.u32 %v1352, 5
        %v1354 = vand.u32 %v1352, 31
        %v1355 = vsub.s32 32, %v1354
        %v1356 = vshrl.u32 683565275, %v1355
        %v1357 = vshll.u32 683565275, %v1354
        %v1358 = vshrl.u32 2475754826, %v1355
        %v1359 = vor.u32 %v1357, %v1358
        %v1360 = vshll.u32 2475754826, %v1354
        %v1361 = vshrl.u32 2131351028, %v1355
        %v1362 = vor.u32 %v1360, %v1361
        %v1363 = vshll.u32 2131351028, %v1354
        %v1364 = vshrl.u32 2102212464, %v1355
        %v1365 = vor.u32 %v1363, %v1364
        %v1366 = vshll.u32 2102212464, %v1354
        %v1367 = vshrl.u32 920167782, %v1355
        %v1368 = vor.u32 %v1366, %v1367
        %v1369 = vshll.u32 920167782, %v1354
        %v1370 = vshrl.u32 1326507024, %v1355
        %v1371 = vor.u32 %v1369, %v1370
        %vm1372 = vcmp.lt.s32.totalorder %v1353, 1
        %vm1373 = vcmp.lt.s32.totalorder %v1353, 2
        %vm1374 = vcmp.lt.s32.totalorder %v1353, 3
        %vm1375 = vcmp.lt.s32.totalorder %v1353, 4
        %v1376 = vsel %vm1372, %v1356, %v1359
        %v1377 = vsel %vm1375, %v1365, 2102212464
        %v1378 = vsel %vm1374, %v1362, %v1377
        %v1379 = vsel %vm1373, %v1376, %v1378
        %v1380 = vsel %vm1372, %v1359, %v1362
        %v1381 = vsel %vm1375, %v1368, 920167782
        %v1382 = vsel %vm1374, %v1365, %v1381
        %v1383 = vsel %vm1373, %v1380, %v1382
        %v1384 = vsel %vm1372, %v1362, %v1365
        %v1385 = vsel %vm1375, %v1371, 1326507024
        %v1386 = vsel %vm1374, %v1368, %v1385
        %v1387 = vsel %vm1373, %v1384, %v1386
        %v1388 = vshll.u32 %v1348, 8
        %v1389 = vmul.u32.u64.compose %v1388, %v1387
        %v1390 = vextract.low.u32 %v1389
        %v1391 = vextract.high.u32 %v1389
        %v1392 = vmul.u32.u64.compose %v1388, %v1383
        %v1393 = vextract.low.u32 %v1392
        %v1394 = vextract.high.u32 %v1392
        %v1395 = vmul.u32 %v1388, %v1379
        %v1396 = vadd.s32 %v1391, %v1393
        %vm1397 = vc.u32 %v1391, %v1393
        %v1398 = vadd.s32 %v1394, 1
        %v1399 = vsel %vm1397, %v1398, %v1394
        %v1400 = vadd.s32 %v1395, %v1399
        %v1401 = vadd.s32 %v1400, 536870912
        %v1402 = vshrl.u32 %v1401, 30
        %v1403 = vshll.u32 %v1402, 30
        %v1404 = vsub.s32 %v1400, %v1403
        %vm1405 = vcmp.lt.s32.totalorder %v1404, 0
        %v1406 = vsub.s32 0, %v1404
        %v1407 = vsel %vm1405, %v1406, %v1404
        %v1408 = vclz %v1407
        %v1409 = vsub.s32 %v1408, 2
        %vm1410 = vcmp.gt.s32.totalorder 0, %v1409
        %v1411 = vsel %vm1410, 0, %v1409
        %v1412 = vsub.s32 32, %v1411
        %v1413 = vshll.u32 %v1404, %v1411
        %v1414 = vshrl.u32 %v1396, %v1412
        %v1415 = vor.u32 %v1413, %v1414
        %v1416 = vsub.s32 4294967266, %v1411
        %v1417 = vadd.s32 %v1416, 127
        %v1418 = vshll.u32 %v1417, 23
        %v1419 = vor.u32 4788187, %v1418
        %v1420 = vand.u32 2147483647, %v1419
        %v1422 = vcvt.s32.f32 %v1415
        %v1423 = vmul.f32 %v1422, %v1420
        %v1424 = vxor.u32 %v1423, 2147483648
        %v1425 = vsel %vm1342, %v1424, %v1423
        %v1426 = vsub.s32 4, %v1402
        %v1427 = vsel %vm1342, %v1426, %v1402
        %v1428 = vsel %vm1341, %v706, %v1425
        %v1429 = vsel %vm1341, 0, %v1427
        %v1430 = vcosq.f32.pop %v1428
        %v1431 = vsinq.f32.pop %v1428
        %vm1432 = vweird.f32 %v706
        %v1433 = vadd.s32 %v1429, 3
        %v1434 = vand.u32 %v1433, 3
        %vm1435 = vcmp.lt.s32.totalorder %v1434, 2
        %vm1436 = vcmp.eq.s32.totalorder %v1434, 0
        %v1437 = vxor.u32 %v1431, 2147483648
        %v1438 = vsel %vm1436, %v1430, %v1437
        %vm1439 = vcmp.eq.s32.totalorder %v1434, 2
        %v1440 = vxor.u32 %v1430, 2147483648
        %v1441 = vsel %vm1439, %v1440, %v1431
        %v1442 = vsel %vm1435, %v1438, %v1441
        %v1443 = vsel %vm1432, nan, %v1442
        %v1444 = vand.u32 2147483647, %v707
        %vm1445 = vcmp.le.f32.partialorder %v1444, 0.7853982
        %vm1446 = vcmp.lt.s32.totalorder %v707, 0
        %v1447 = vand.u32 %v707, 2139095040
        %v1448 = vshrl.u32 %v1447, 23
        %v1449 = vsub.s32 %v1448, 127
        %v1450 = vand.u32 2147483647, %v707
        %v1451 = vand.u32 %v1450, 8388607
        %v1452 = vor.u32 %v1451, 8388608
        %v1453 = vsub.s32 0, %v1452
        %v1454 = vadd.s32 %v1449, 1
        %vm1455 = vcmp.gt.s32.totalorder %v1454, 0
        %v1456 = vsel %vm1455, %v1454, 0
        %v1457 = vshrl.u32 %v1456, 5
        %v1458 = vand.u32 %v1456, 31
        %v1459 = vsub.s32 32, %v1458
        %v1460 = vshrl.u32 683565275, %v1459
        %v1461 = vshll.u32 683565275, %v1458
        %v1462 = vshrl.u32 2475754826, %v1459
        %v1463 = vor.u32 %v1461, %v1462
        %v1464 = vshll.u32 2475754826, %v1458
        %v1465 = vshrl.u32 2131351028, %v1459
        %v1466 = vor.u32 %v1464, %v1465
        %v1467 = vshll.u32 2131351028, %v1458
        %v1468 = vshrl.u32 2102212464, %v1459
        %v1469 = vor.u32 %v1467, %v1468
        %v1470 = vshll.u32 2102212464, %v1458
        %v1471 = vshrl.u32 920167782, %v1459
        %v1472 = vor.u32 %v1470, %v1471
        %v1473 = vshll.u32 920167782, %v1458
        %v1474 = vshrl.u32 1326507024, %v1459
        %v1475 = vor.u32 %v1473, %v1474
        %vm1476 = vcmp.lt.s32.totalorder %v1457, 1
        %vm1477 = vcmp.lt.s32.totalorder %v1457, 2
        %vm1478 = vcmp.lt.s32.totalorder %v1457, 3
        %vm1479 = vcmp.lt.s32.totalorder %v1457, 4
        %v1480 = vsel %vm1476, %v1460, %v1463
        %v1481 = vsel %vm1479, %v1469, 2102212464
        %v1482 = vsel %vm1478, %v1466, %v1481
        %v1483 = vsel %vm1477, %v1480, %v1482
        %v1484 = vsel %vm1476, %v1463, %v1466
        %v1485 = vsel %vm1479, %v1472, 920167782
        %v1486 = vsel %vm1478, %v1469, %v1485
        %v1487 = vsel %vm1477, %v1484, %v1486
        %v1488 = vsel %vm1476, %v1466, %v1469
        %v1489 = vsel %vm1479, %v1475, 1326507024
        %v1490 = vsel %vm1478, %v1472, %v1489
        %v1491 = vsel %vm1477, %v1488, %v1490
        %v1492 = vshll.u32 %v1452, 8
        %v1493 = vmul.u32.u64.compose %v1492, %v1491
        %v1494 = vextract.low.u32 %v1493
        %v1495 = vextract.high.u32 %v1493
        %v1496 = vmul.u32.u64.compose %v1492, %v1487
        %v1497 = vextract.low.u32 %v1496
        %v1498 = vextract.high.u32 %v1496
        %v1499 = vmul.u32 %v1492, %v1483
        %v1500 = vadd.s32 %v1495, %v1497
        %vm1501 = vc.u32 %v1495, %v1497
        %v1502 = vadd.s32 %v1498, 1
        %v1503 = vsel %vm1501, %v1502, %v1498
        %v1504 = vadd.s32 %v1499, %v1503
        %v1505 = vadd.s32 %v1504, 536870912
        %v1506 = vshrl.u32 %v1505, 30
        %v1507 = vshll.u32 %v1506, 30
        %v1508 = vsub.s32 %v1504, %v1507
        %vm1509 = vcmp.lt.s32.totalorder %v1508, 0
        %v1510 = vsub.s32 0, %v1508
        %v1511 = vsel %vm1509, %v1510, %v1508
        %v1512 = vclz %v1511
        %v1513 = vsub.s32 %v1512, 2
        %vm1514 = vcmp.gt.s32.totalorder 0, %v1513
        %v1515 = vsel %vm1514, 0, %v1513
        %v1516 = vsub.s32 32, %v1515
        %v1517 = vshll.u32 %v1508, %v1515
        %v1518 = vshrl.u32 %v1500, %v1516
        %v1519 = vor.u32 %v1517, %v1518
        %v1520 = vsub.s32 4294967266, %v1515
        %v1521 = vadd.s32 %v1520, 127
        %v1522 = vshll.u32 %v1521, 23
        %v1523 = vor.u32 4788187, %v1522
        %v1524 = vand.u32 2147483647, %v1523
        %v1526 = vcvt.s32.f32 %v1519
        %v1527 = vmul.f32 %v1526, %v1524
        %v1528 = vxor.u32 %v1527, 2147483648
        %v1529 = vsel %vm1446, %v1528, %v1527
        %v1530 = vsub.s32 4, %v1506
        %v1531 = vsel %vm1446, %v1530, %v1506
        %v1532 = vsel %vm1445, %v707, %v1529
        %v1533 = vsel %vm1445, 0, %v1531
        %v1534 = vcosq.f32.pop %v1532
        %v1535 = vsinq.f32.pop %v1532
        %vm1536 = vweird.f32 %v707
        %v1537 = vadd.s32 %v1533, 3
        %v1538 = vand.u32 %v1537, 3
        %vm1539 = vcmp.lt.s32.totalorder %v1538, 2
        %vm1540 = vcmp.eq.s32.totalorder %v1538, 0
        %v1541 = vxor.u32 %v1535, 2147483648
        %v1542 = vsel %vm1540, %v1534, %v1541
        %vm1543 = vcmp.eq.s32.totalorder %v1538, 2
        %v1544 = vxor.u32 %v1534, 2147483648
        %v1545 = vsel %vm1543, %v1544, %v1535
        %v1546 = vsel %vm1539, %v1542, %v1545
        %v1547 = vsel %vm1536, nan, %v1546
        %v1548 = vand.u32 2147483647, %v708
        %vm1549 = vcmp.le.f32.partialorder %v1548, 0.7853982
        %vm1550 = vcmp.lt.s32.totalorder %v708, 0
        %v1551 = vand.u32 %v708, 2139095040
        %v1552 = vshrl.u32 %v1551, 23
        %v1553 = vsub.s32 %v1552, 127
        %v1554 = vand.u32 2147483647, %v708
        %v1555 = vand.u32 %v1554, 8388607
        %v1556 = vor.u32 %v1555, 8388608
        %v1557 = vsub.s32 0, %v1556
        %v1558 = vadd.s32 %v1553, 1
        %vm1559 = vcmp.gt.s32.totalorder %v1558, 0
        %v1560 = vsel %vm1559, %v1558, 0
        %v1561 = vshrl.u32 %v1560, 5
        %v1562 = vand.u32 %v1560, 31
        %v1563 = vsub.s32 32, %v1562
        %v1564 = vshrl.u32 683565275, %v1563
        %v1565 = vshll.u32 683565275, %v1562
        %v1566 = vshrl.u32 2475754826, %v1563
        %v1567 = vor.u32 %v1565, %v1566
        %v1568 = vshll.u32 2475754826, %v1562
        %v1569 = vshrl.u32 2131351028, %v1563
        %v1570 = vor.u32 %v1568, %v1569
        %v1571 = vshll.u32 2131351028, %v1562
        %v1572 = vshrl.u32 2102212464, %v1563
        %v1573 = vor.u32 %v1571, %v1572
        %v1574 = vshll.u32 2102212464, %v1562
        %v1575 = vshrl.u32 920167782, %v1563
        %v1576 = vor.u32 %v1574, %v1575
        %v1577 = vshll.u32 920167782, %v1562
        %v1578 = vshrl.u32 1326507024, %v1563
        %v1579 = vor.u32 %v1577, %v1578
        %vm1580 = vcmp.lt.s32.totalorder %v1561, 1
        %vm1581 = vcmp.lt.s32.totalorder %v1561, 2
        %vm1582 = vcmp.lt.s32.totalorder %v1561, 3
        %vm1583 = vcmp.lt.s32.totalorder %v1561, 4
        %v1584 = vsel %vm1580, %v1564, %v1567
        %v1585 = vsel %vm1583, %v1573, 2102212464
        %v1586 = vsel %vm1582, %v1570, %v1585
        %v1587 = vsel %vm1581, %v1584, %v1586
        %v1588 = vsel %vm1580, %v1567, %v1570
        %v1589 = vsel %vm1583, %v1576, 920167782
        %v1590 = vsel %vm1582, %v1573, %v1589
        %v1591 = vsel %vm1581, %v1588, %v1590
        %v1592 = vsel %vm1580, %v1570, %v1573
        %v1593 = vsel %vm1583, %v1579, 1326507024
        %v1594 = vsel %vm1582, %v1576, %v1593
        %v1595 = vsel %vm1581, %v1592, %v1594
        %v1596 = vshll.u32 %v1556, 8
        %v1597 = vmul.u32.u64.compose %v1596, %v1595
        %v1598 = vextract.low.u32 %v1597
        %v1599 = vextract.high.u32 %v1597
        %v1600 = vmul.u32.u64.compose %v1596, %v1591
        %v1601 = vextract.low.u32 %v1600
        %v1602 = vextract.high.u32 %v1600
        %v1603 = vmul.u32 %v1596, %v1587
        %v1604 = vadd.s32 %v1599, %v1601
        %vm1605 = vc.u32 %v1599, %v1601
        %v1606 = vadd.s32 %v1602, 1
        %v1607 = vsel %vm1605, %v1606, %v1602
        %v1608 = vadd.s32 %v1603, %v1607
        %v1609 = vadd.s32 %v1608, 536870912
        %v1610 = vshrl.u32 %v1609, 30
        %v1611 = vshll.u32 %v1610, 30
        %v1612 = vsub.s32 %v1608, %v1611
        %vm1613 = vcmp.lt.s32.totalorder %v1612, 0
        %v1614 = vsub.s32 0, %v1612
        %v1615 = vsel %vm1613, %v1614, %v1612
        %v1616 = vclz %v1615
        %v1617 = vsub.s32 %v1616, 2
        %vm1618 = vcmp.gt.s32.totalorder 0, %v1617
        %v1619 = vsel %vm1618, 0, %v1617
        %v1620 = vsub.s32 32, %v1619
        %v1621 = vshll.u32 %v1612, %v1619
        %v1622 = vshrl.u32 %v1604, %v1620
        %v1623 = vor.u32 %v1621, %v1622
        %v1624 = vsub.s32 4294967266, %v1619
        %v1625 = vadd.s32 %v1624, 127
        %v1626 = vshll.u32 %v1625, 23
        %v1627 = vor.u32 4788187, %v1626
        %v1628 = vand.u32 2147483647, %v1627
        %v1630 = vcvt.s32.f32 %v1623
        %v1631 = vmul.f32 %v1630, %v1628
        %v1632 = vxor.u32 %v1631, 2147483648
        %v1633 = vsel %vm1550, %v1632, %v1631
        %v1634 = vsub.s32 4, %v1610
        %v1635 = vsel %vm1550, %v1634, %v1610
        %v1636 = vsel %vm1549, %v708, %v1633
        %v1637 = vsel %vm1549, 0, %v1635
        %v1638 = vcosq.f32.pop %v1636
        %v1639 = vsinq.f32.pop %v1636
        %vm1640 = vweird.f32 %v708
        %v1641 = vadd.s32 %v1637, 3
        %v1642 = vand.u32 %v1641, 3
        %vm1643 = vcmp.lt.s32.totalorder %v1642, 2
        %vm1644 = vcmp.eq.s32.totalorder %v1642, 0
        %v1645 = vxor.u32 %v1639, 2147483648
        %v1646 = vsel %vm1644, %v1638, %v1645
        %vm1647 = vcmp.eq.s32.totalorder %v1642, 2
        %v1648 = vxor.u32 %v1638, 2147483648
        %v1649 = vsel %vm1647, %v1648, %v1639
        %v1650 = vsel %vm1643, %v1646, %v1649
        %v1651 = vsel %vm1640, nan, %v1650
        %v1652 = vand.u32 2147483647, %v709
        %vm1653 = vcmp.le.f32.partialorder %v1652, 0.7853982
        %vm1654 = vcmp.lt.s32.totalorder %v709, 0
        %v1655 = vand.u32 %v709, 2139095040
        %v1656 = vshrl.u32 %v1655, 23
        %v1657 = vsub.s32 %v1656, 127
        %v1658 = vand.u32 2147483647, %v709
        %v1659 = vand.u32 %v1658, 8388607
        %v1660 = vor.u32 %v1659, 8388608
        %v1661 = vsub.s32 0, %v1660
        %v1662 = vadd.s32 %v1657, 1
        %vm1663 = vcmp.gt.s32.totalorder %v1662, 0
        %v1664 = vsel %vm1663, %v1662, 0
        %v1665 = vshrl.u32 %v1664, 5
        %v1666 = vand.u32 %v1664, 31
        %v1667 = vsub.s32 32, %v1666
        %v1668 = vshrl.u32 683565275, %v1667
        %v1669 = vshll.u32 683565275, %v1666
        %v1670 = vshrl.u32 2475754826, %v1667
        %v1671 = vor.u32 %v1669, %v1670
        %v1672 = vshll.u32 2475754826, %v1666
        %v1673 = vshrl.u32 2131351028, %v1667
        %v1674 = vor.u32 %v1672, %v1673
        %v1675 = vshll.u32 2131351028, %v1666
        %v1676 = vshrl.u32 2102212464, %v1667
        %v1677 = vor.u32 %v1675, %v1676
        %v1678 = vshll.u32 2102212464, %v1666
        %v1679 = vshrl.u32 920167782, %v1667
        %v1680 = vor.u32 %v1678, %v1679
        %v1681 = vshll.u32 920167782, %v1666
        %v1682 = vshrl.u32 1326507024, %v1667
        %v1683 = vor.u32 %v1681, %v1682
        %vm1684 = vcmp.lt.s32.totalorder %v1665, 1
        %vm1685 = vcmp.lt.s32.totalorder %v1665, 2
        %vm1686 = vcmp.lt.s32.totalorder %v1665, 3
        %vm1687 = vcmp.lt.s32.totalorder %v1665, 4
        %v1688 = vsel %vm1684, %v1668, %v1671
        %v1689 = vsel %vm1687, %v1677, 2102212464
        %v1690 = vsel %vm1686, %v1674, %v1689
        %v1691 = vsel %vm1685, %v1688, %v1690
        %v1692 = vsel %vm1684, %v1671, %v1674
        %v1693 = vsel %vm1687, %v1680, 920167782
        %v1694 = vsel %vm1686, %v1677, %v1693
        %v1695 = vsel %vm1685, %v1692, %v1694
        %v1696 = vsel %vm1684, %v1674, %v1677
        %v1697 = vsel %vm1687, %v1683, 1326507024
        %v1698 = vsel %vm1686, %v1680, %v1697
        %v1699 = vsel %vm1685, %v1696, %v1698
        %v1700 = vshll.u32 %v1660, 8
        %v1701 = vmul.u32.u64.compose %v1700, %v1699
        %v1702 = vextract.low.u32 %v1701
        %v1703 = vextract.high.u32 %v1701
        %v1704 = vmul.u32.u64.compose %v1700, %v1695
        %v1705 = vextract.low.u32 %v1704
        %v1706 = vextract.high.u32 %v1704
        %v1707 = vmul.u32 %v1700, %v1691
        %v1708 = vadd.s32 %v1703, %v1705
        %vm1709 = vc.u32 %v1703, %v1705
        %v1710 = vadd.s32 %v1706, 1
        %v1711 = vsel %vm1709, %v1710, %v1706
        %v1712 = vadd.s32 %v1707, %v1711
        %v1713 = vadd.s32 %v1712, 536870912
        %v1714 = vshrl.u32 %v1713, 30
        %v1715 = vshll.u32 %v1714, 30
        %v1716 = vsub.s32 %v1712, %v1715
        %vm1717 = vcmp.lt.s32.totalorder %v1716, 0
        %v1718 = vsub.s32 0, %v1716
        %v1719 = vsel %vm1717, %v1718, %v1716
        %v1720 = vclz %v1719
        %v1721 = vsub.s32 %v1720, 2
        %vm1722 = vcmp.gt.s32.totalorder 0, %v1721
        %v1723 = vsel %vm1722, 0, %v1721
        %v1724 = vsub.s32 32, %v1723
        %v1725 = vshll.u32 %v1716, %v1723
        %v1726 = vshrl.u32 %v1708, %v1724
        %v1727 = vor.u32 %v1725, %v1726
        %v1728 = vsub.s32 4294967266, %v1723
        %v1729 = vadd.s32 %v1728, 127
        %v1730 = vshll.u32 %v1729, 23
        %v1731 = vor.u32 4788187, %v1730
        %v1732 = vand.u32 2147483647, %v1731
        %v1734 = vcvt.s32.f32 %v1727
        %v1735 = vmul.f32 %v1734, %v1732
        %v1736 = vxor.u32 %v1735, 2147483648
        %v1737 = vsel %vm1654, %v1736, %v1735
        %v1738 = vsub.s32 4, %v1714
        %v1739 = vsel %vm1654, %v1738, %v1714
        %v1740 = vsel %vm1653, %v709, %v1737
        %v1741 = vsel %vm1653, 0, %v1739
        %v1742 = vcosq.f32.pop %v1740
        %v1743 = vsinq.f32.pop %v1740
        %vm1744 = vweird.f32 %v709
        %v1745 = vadd.s32 %v1741, 3
        %v1746 = vand.u32 %v1745, 3
        %vm1747 = vcmp.lt.s32.totalorder %v1746, 2
        %vm1748 = vcmp.eq.s32.totalorder %v1746, 0
        %v1749 = vxor.u32 %v1743, 2147483648
        %v1750 = vsel %vm1748, %v1742, %v1749
        %vm1751 = vcmp.eq.s32.totalorder %v1746, 2
        %v1752 = vxor.u32 %v1742, 2147483648
        %v1753 = vsel %vm1751, %v1752, %v1743
        %v1754 = vsel %vm1747, %v1750, %v1753
        %v1755 = vsel %vm1744, nan, %v1754
        %v1756 = vand.u32 2147483647, %v710
        %vm1757 = vcmp.le.f32.partialorder %v1756, 0.7853982
        %vm1758 = vcmp.lt.s32.totalorder %v710, 0
        %v1759 = vand.u32 %v710, 2139095040
        %v1760 = vshrl.u32 %v1759, 23
        %v1761 = vsub.s32 %v1760, 127
        %v1762 = vand.u32 2147483647, %v710
        %v1763 = vand.u32 %v1762, 8388607
        %v1764 = vor.u32 %v1763, 8388608
        %v1765 = vsub.s32 0, %v1764
        %v1766 = vadd.s32 %v1761, 1
        %vm1767 = vcmp.gt.s32.totalorder %v1766, 0
        %v1768 = vsel %vm1767, %v1766, 0
        %v1769 = vshrl.u32 %v1768, 5
        %v1770 = vand.u32 %v1768, 31
        %v1771 = vsub.s32 32, %v1770
        %v1772 = vshrl.u32 683565275, %v1771
        %v1773 = vshll.u32 683565275, %v1770
        %v1774 = vshrl.u32 2475754826, %v1771
        %v1775 = vor.u32 %v1773, %v1774
        %v1776 = vshll.u32 2475754826, %v1770
        %v1777 = vshrl.u32 2131351028, %v1771
        %v1778 = vor.u32 %v1776, %v1777
        %v1779 = vshll.u32 2131351028, %v1770
        %v1780 = vshrl.u32 2102212464, %v1771
        %v1781 = vor.u32 %v1779, %v1780
        %v1782 = vshll.u32 2102212464, %v1770
        %v1783 = vshrl.u32 920167782, %v1771
        %v1784 = vor.u32 %v1782, %v1783
        %v1785 = vshll.u32 920167782, %v1770
        %v1786 = vshrl.u32 1326507024, %v1771
        %v1787 = vor.u32 %v1785, %v1786
        %vm1788 = vcmp.lt.s32.totalorder %v1769, 1
        %vm1789 = vcmp.lt.s32.totalorder %v1769, 2
        %vm1790 = vcmp.lt.s32.totalorder %v1769, 3
        %vm1791 = vcmp.lt.s32.totalorder %v1769, 4
        %v1792 = vsel %vm1788, %v1772, %v1775
        %v1793 = vsel %vm1791, %v1781, 2102212464
        %v1794 = vsel %vm1790, %v1778, %v1793
        %v1795 = vsel %vm1789, %v1792, %v1794
        %v1796 = vsel %vm1788, %v1775, %v1778
        %v1797 = vsel %vm1791, %v1784, 920167782
        %v1798 = vsel %vm1790, %v1781, %v1797
        %v1799 = vsel %vm1789, %v1796, %v1798
        %v1800 = vsel %vm1788, %v1778, %v1781
        %v1801 = vsel %vm1791, %v1787, 1326507024
        %v1802 = vsel %vm1790, %v1784, %v1801
        %v1803 = vsel %vm1789, %v1800, %v1802
        %v1804 = vshll.u32 %v1764, 8
        %v1805 = vmul.u32.u64.compose %v1804, %v1803
        %v1806 = vextract.low.u32 %v1805
        %v1807 = vextract.high.u32 %v1805
        %v1808 = vmul.u32.u64.compose %v1804, %v1799
        %v1809 = vextract.low.u32 %v1808
        %v1810 = vextract.high.u32 %v1808
        %v1811 = vmul.u32 %v1804, %v1795
        %v1812 = vadd.s32 %v1807, %v1809
        %vm1813 = vc.u32 %v1807, %v1809
        %v1814 = vadd.s32 %v1810, 1
        %v1815 = vsel %vm1813, %v1814, %v1810
        %v1816 = vadd.s32 %v1811, %v1815
        %v1817 = vadd.s32 %v1816, 536870912
        %v1818 = vshrl.u32 %v1817, 30
        %v1819 = vshll.u32 %v1818, 30
        %v1820 = vsub.s32 %v1816, %v1819
        %vm1821 = vcmp.lt.s32.totalorder %v1820, 0
        %v1822 = vsub.s32 0, %v1820
        %v1823 = vsel %vm1821, %v1822, %v1820
        %v1824 = vclz %v1823
        %v1825 = vsub.s32 %v1824, 2
        %vm1826 = vcmp.gt.s32.totalorder 0, %v1825
        %v1827 = vsel %vm1826, 0, %v1825
        %v1828 = vsub.s32 32, %v1827
        %v1829 = vshll.u32 %v1820, %v1827
        %v1830 = vshrl.u32 %v1812, %v1828
        %v1831 = vor.u32 %v1829, %v1830
        %v1832 = vsub.s32 4294967266, %v1827
        %v1833 = vadd.s32 %v1832, 127
        %v1834 = vshll.u32 %v1833, 23
        %v1835 = vor.u32 4788187, %v1834
        %v1836 = vand.u32 2147483647, %v1835
        %v1838 = vcvt.s32.f32 %v1831
        %v1839 = vmul.f32 %v1838, %v1836
        %v1840 = vxor.u32 %v1839, 2147483648
        %v1841 = vsel %vm1758, %v1840, %v1839
        %v1842 = vsub.s32 4, %v1818
        %v1843 = vsel %vm1758, %v1842, %v1818
        %v1844 = vsel %vm1757, %v710, %v1841
        %v1845 = vsel %vm1757, 0, %v1843
        %v1846 = vcosq.f32.pop %v1844
        %v1847 = vsinq.f32.pop %v1844
        %vm1848 = vweird.f32 %v710
        %v1849 = vadd.s32 %v1845, 3
        %v1850 = vand.u32 %v1849, 3
        %vm1851 = vcmp.lt.s32.totalorder %v1850, 2
        %vm1852 = vcmp.eq.s32.totalorder %v1850, 0
        %v1853 = vxor.u32 %v1847, 2147483648
        %v1854 = vsel %vm1852, %v1846, %v1853
        %vm1855 = vcmp.eq.s32.totalorder %v1850, 2
        %v1856 = vxor.u32 %v1846, 2147483648
        %v1857 = vsel %vm1855, %v1856, %v1847
        %v1858 = vsel %vm1851, %v1854, %v1857
        %v1859 = vsel %vm1848, nan, %v1858
        %v1860 = vand.u32 2147483647, %v711
        %vm1861 = vcmp.le.f32.partialorder %v1860, 0.7853982
        %vm1862 = vcmp.lt.s32.totalorder %v711, 0
        %v1863 = vand.u32 %v711, 2139095040
        %v1864 = vshrl.u32 %v1863, 23
        %v1865 = vsub.s32 %v1864, 127
        %v1866 = vand.u32 2147483647, %v711
        %v1867 = vand.u32 %v1866, 8388607
        %v1868 = vor.u32 %v1867, 8388608
        %v1869 = vsub.s32 0, %v1868
        %v1870 = vadd.s32 %v1865, 1
        %vm1871 = vcmp.gt.s32.totalorder %v1870, 0
        %v1872 = vsel %vm1871, %v1870, 0
        %v1873 = vshrl.u32 %v1872, 5
        %v1874 = vand.u32 %v1872, 31
        %v1875 = vsub.s32 32, %v1874
        %v1876 = vshrl.u32 683565275, %v1875
        %v1877 = vshll.u32 683565275, %v1874
        %v1878 = vshrl.u32 2475754826, %v1875
        %v1879 = vor.u32 %v1877, %v1878
        %v1880 = vshll.u32 2475754826, %v1874
        %v1881 = vshrl.u32 2131351028, %v1875
        %v1882 = vor.u32 %v1880, %v1881
        %v1883 = vshll.u32 2131351028, %v1874
        %v1884 = vshrl.u32 2102212464, %v1875
        %v1885 = vor.u32 %v1883, %v1884
        %v1886 = vshll.u32 2102212464, %v1874
        %v1887 = vshrl.u32 920167782, %v1875
        %v1888 = vor.u32 %v1886, %v1887
        %v1889 = vshll.u32 920167782, %v1874
        %v1890 = vshrl.u32 1326507024, %v1875
        %v1891 = vor.u32 %v1889, %v1890
        %vm1892 = vcmp.lt.s32.totalorder %v1873, 1
        %vm1893 = vcmp.lt.s32.totalorder %v1873, 2
        %vm1894 = vcmp.lt.s32.totalorder %v1873, 3
        %vm1895 = vcmp.lt.s32.totalorder %v1873, 4
        %v1896 = vsel %vm1892, %v1876, %v1879
        %v1897 = vsel %vm1895, %v1885, 2102212464
        %v1898 = vsel %vm1894, %v1882, %v1897
        %v1899 = vsel %vm1893, %v1896, %v1898
        %v1900 = vsel %vm1892, %v1879, %v1882
        %v1901 = vsel %vm1895, %v1888, 920167782
        %v1902 = vsel %vm1894, %v1885, %v1901
        %v1903 = vsel %vm1893, %v1900, %v1902
        %v1904 = vsel %vm1892, %v1882, %v1885
        %v1905 = vsel %vm1895, %v1891, 1326507024
        %v1906 = vsel %vm1894, %v1888, %v1905
        %v1907 = vsel %vm1893, %v1904, %v1906
        %v1908 = vshll.u32 %v1868, 8
        %v1909 = vmul.u32.u64.compose %v1908, %v1907
        %v1910 = vextract.low.u32 %v1909
        %v1911 = vextract.high.u32 %v1909
        %v1912 = vmul.u32.u64.compose %v1908, %v1903
        %v1913 = vextract.low.u32 %v1912
        %v1914 = vextract.high.u32 %v1912
        %v1915 = vmul.u32 %v1908, %v1899
        %v1916 = vadd.s32 %v1911, %v1913
        %vm1917 = vc.u32 %v1911, %v1913
        %v1918 = vadd.s32 %v1914, 1
        %v1919 = vsel %vm1917, %v1918, %v1914
        %v1920 = vadd.s32 %v1915, %v1919
        %v1921 = vadd.s32 %v1920, 536870912
        %v1922 = vshrl.u32 %v1921, 30
        %v1923 = vshll.u32 %v1922, 30
        %v1924 = vsub.s32 %v1920, %v1923
        %vm1925 = vcmp.lt.s32.totalorder %v1924, 0
        %v1926 = vsub.s32 0, %v1924
        %v1927 = vsel %vm1925, %v1926, %v1924
        %v1928 = vclz %v1927
        %v1929 = vsub.s32 %v1928, 2
        %vm1930 = vcmp.gt.s32.totalorder 0, %v1929
        %v1931 = vsel %vm1930, 0, %v1929
        %v1932 = vsub.s32 32, %v1931
        %v1933 = vshll.u32 %v1924, %v1931
        %v1934 = vshrl.u32 %v1916, %v1932
        %v1935 = vor.u32 %v1933, %v1934
        %v1936 = vsub.s32 4294967266, %v1931
        %v1937 = vadd.s32 %v1936, 127
        %v1938 = vshll.u32 %v1937, 23
        %v1939 = vor.u32 4788187, %v1938
        %v1940 = vand.u32 2147483647, %v1939
        %v1942 = vcvt.s32.f32 %v1935
        %v1943 = vmul.f32 %v1942, %v1940
        %v1944 = vxor.u32 %v1943, 2147483648
        %v1945 = vsel %vm1862, %v1944, %v1943
        %v1946 = vsub.s32 4, %v1922
        %v1947 = vsel %vm1862, %v1946, %v1922
        %v1948 = vsel %vm1861, %v711, %v1945
        %v1949 = vsel %vm1861, 0, %v1947
        %v1950 = vcosq.f32.pop %v1948
        %v1951 = vsinq.f32.pop %v1948
        %vm1952 = vweird.f32 %v711
        %v1953 = vadd.s32 %v1949, 3
        %v1954 = vand.u32 %v1953, 3
        %vm1955 = vcmp.lt.s32.totalorder %v1954, 2
        %vm1956 = vcmp.eq.s32.totalorder %v1954, 0
        %v1957 = vxor.u32 %v1951, 2147483648
        %v1958 = vsel %vm1956, %v1950, %v1957
        %vm1959 = vcmp.eq.s32.totalorder %v1954, 2
        %v1960 = vxor.u32 %v1950, 2147483648
        %v1961 = vsel %vm1959, %v1960, %v1951
        %v1962 = vsel %vm1955, %v1958, %v1961
        %v1963 = vsel %vm1952, nan, %v1962
        %v1964 = vand.u32 2147483647, %v712
        %vm1965 = vcmp.le.f32.partialorder %v1964, 0.7853982
        %vm1966 = vcmp.lt.s32.totalorder %v712, 0
        %v1967 = vand.u32 %v712, 2139095040
        %v1968 = vshrl.u32 %v1967, 23
        %v1969 = vsub.s32 %v1968, 127
        %v1970 = vand.u32 2147483647, %v712
        %v1971 = vand.u32 %v1970, 8388607
        %v1972 = vor.u32 %v1971, 8388608
        %v1973 = vsub.s32 0, %v1972
        %v1974 = vadd.s32 %v1969, 1
        %vm1975 = vcmp.gt.s32.totalorder %v1974, 0
        %v1976 = vsel %vm1975, %v1974, 0
        %v1977 = vshrl.u32 %v1976, 5
        %v1978 = vand.u32 %v1976, 31
        %v1979 = vsub.s32 32, %v1978
        %v1980 = vshrl.u32 683565275, %v1979
        %v1981 = vshll.u32 683565275, %v1978
        %v1982 = vshrl.u32 2475754826, %v1979
        %v1983 = vor.u32 %v1981, %v1982
        %v1984 = vshll.u32 2475754826, %v1978
        %v1985 = vshrl.u32 2131351028, %v1979
        %v1986 = vor.u32 %v1984, %v1985
        %v1987 = vshll.u32 2131351028, %v1978
        %v1988 = vshrl.u32 2102212464, %v1979
        %v1989 = vor.u32 %v1987, %v1988
        %v1990 = vshll.u32 2102212464, %v1978
        %v1991 = vshrl.u32 920167782, %v1979
        %v1992 = vor.u32 %v1990, %v1991
        %v1993 = vshll.u32 920167782, %v1978
        %v1994 = vshrl.u32 1326507024, %v1979
        %v1995 = vor.u32 %v1993, %v1994
        %vm1996 = vcmp.lt.s32.totalorder %v1977, 1
        %vm1997 = vcmp.lt.s32.totalorder %v1977, 2
        %vm1998 = vcmp.lt.s32.totalorder %v1977, 3
        %vm1999 = vcmp.lt.s32.totalorder %v1977, 4
        %v2000 = vsel %vm1996, %v1980, %v1983
        %v2001 = vsel %vm1999, %v1989, 2102212464
        %v2002 = vsel %vm1998, %v1986, %v2001
        %v2003 = vsel %vm1997, %v2000, %v2002
        %v2004 = vsel %vm1996, %v1983, %v1986
        %v2005 = vsel %vm1999, %v1992, 920167782
        %v2006 = vsel %vm1998, %v1989, %v2005
        %v2007 = vsel %vm1997, %v2004, %v2006
        %v2008 = vsel %vm1996, %v1986, %v1989
        %v2009 = vsel %vm1999, %v1995, 1326507024
        %v2010 = vsel %vm1998, %v1992, %v2009
        %v2011 = vsel %vm1997, %v2008, %v2010
        %v2012 = vshll.u32 %v1972, 8
        %v2013 = vmul.u32.u64.compose %v2012, %v2011
        %v2014 = vextract.low.u32 %v2013
        %v2015 = vextract.high.u32 %v2013
        %v2016 = vmul.u32.u64.compose %v2012, %v2007
        %v2017 = vextract.low.u32 %v2016
        %v2018 = vextract.high.u32 %v2016
        %v2019 = vmul.u32 %v2012, %v2003
        %v2020 = vadd.s32 %v2015, %v2017
        %vm2021 = vc.u32 %v2015, %v2017
        %v2022 = vadd.s32 %v2018, 1
        %v2023 = vsel %vm2021, %v2022, %v2018
        %v2024 = vadd.s32 %v2019, %v2023
        %v2025 = vadd.s32 %v2024, 536870912
        %v2026 = vshrl.u32 %v2025, 30
        %v2027 = vshll.u32 %v2026, 30
        %v2028 = vsub.s32 %v2024, %v2027
        %vm2029 = vcmp.lt.s32.totalorder %v2028, 0
        %v2030 = vsub.s32 0, %v2028
        %v2031 = vsel %vm2029, %v2030, %v2028
        %v2032 = vclz %v2031
        %v2033 = vsub.s32 %v2032, 2
        %vm2034 = vcmp.gt.s32.totalorder 0, %v2033
        %v2035 = vsel %vm2034, 0, %v2033
        %v2036 = vsub.s32 32, %v2035
        %v2037 = vshll.u32 %v2028, %v2035
        %v2038 = vshrl.u32 %v2020, %v2036
        %v2039 = vor.u32 %v2037, %v2038
        %v2040 = vsub.s32 4294967266, %v2035
        %v2041 = vadd.s32 %v2040, 127
        %v2042 = vshll.u32 %v2041, 23
        %v2043 = vor.u32 4788187, %v2042
        %v2044 = vand.u32 2147483647, %v2043
        %v2046 = vcvt.s32.f32 %v2039
        %v2047 = vmul.f32 %v2046, %v2044
        %v2048 = vxor.u32 %v2047, 2147483648
        %v2049 = vsel %vm1966, %v2048, %v2047
        %v2050 = vsub.s32 4, %v2026
        %v2051 = vsel %vm1966, %v2050, %v2026
        %v2052 = vsel %vm1965, %v712, %v2049
        %v2053 = vsel %vm1965, 0, %v2051
        %v2054 = vcosq.f32.pop %v2052
        %v2055 = vsinq.f32.pop %v2052
        %vm2056 = vweird.f32 %v712
        %v2057 = vadd.s32 %v2053, 3
        %v2058 = vand.u32 %v2057, 3
        %vm2059 = vcmp.lt.s32.totalorder %v2058, 2
        %vm2060 = vcmp.eq.s32.totalorder %v2058, 0
        %v2061 = vxor.u32 %v2055, 2147483648
        %v2062 = vsel %vm2060, %v2054, %v2061
        %vm2063 = vcmp.eq.s32.totalorder %v2058, 2
        %v2064 = vxor.u32 %v2054, 2147483648
        %v2065 = vsel %vm2063, %v2064, %v2055
        %v2066 = vsel %vm2059, %v2062, %v2065
        %v2067 = vsel %vm2056, nan, %v2066
        %v2068 = vand.u32 2147483647, %v713
        %vm2069 = vcmp.le.f32.partialorder %v2068, 0.7853982
        %vm2070 = vcmp.lt.s32.totalorder %v713, 0
        %v2071 = vand.u32 %v713, 2139095040
        %v2072 = vshrl.u32 %v2071, 23
        %v2073 = vsub.s32 %v2072, 127
        %v2074 = vand.u32 2147483647, %v713
        %v2075 = vand.u32 %v2074, 8388607
        %v2076 = vor.u32 %v2075, 8388608
        %v2077 = vsub.s32 0, %v2076
        %v2078 = vadd.s32 %v2073, 1
        %vm2079 = vcmp.gt.s32.totalorder %v2078, 0
        %v2080 = vsel %vm2079, %v2078, 0
        %v2081 = vshrl.u32 %v2080, 5
        %v2082 = vand.u32 %v2080, 31
        %v2083 = vsub.s32 32, %v2082
        %v2084 = vshrl.u32 683565275, %v2083
        %v2085 = vshll.u32 683565275, %v2082
        %v2086 = vshrl.u32 2475754826, %v2083
        %v2087 = vor.u32 %v2085, %v2086
        %v2088 = vshll.u32 2475754826, %v2082
        %v2089 = vshrl.u32 2131351028, %v2083
        %v2090 = vor.u32 %v2088, %v2089
        %v2091 = vshll.u32 2131351028, %v2082
        %v2092 = vshrl.u32 2102212464, %v2083
        %v2093 = vor.u32 %v2091, %v2092
        %v2094 = vshll.u32 2102212464, %v2082
        %v2095 = vshrl.u32 920167782, %v2083
        %v2096 = vor.u32 %v2094, %v2095
        %v2097 = vshll.u32 920167782, %v2082
        %v2098 = vshrl.u32 1326507024, %v2083
        %v2099 = vor.u32 %v2097, %v2098
        %vm2100 = vcmp.lt.s32.totalorder %v2081, 1
        %vm2101 = vcmp.lt.s32.totalorder %v2081, 2
        %vm2102 = vcmp.lt.s32.totalorder %v2081, 3
        %vm2103 = vcmp.lt.s32.totalorder %v2081, 4
        %v2104 = vsel %vm2100, %v2084, %v2087
        %v2105 = vsel %vm2103, %v2093, 2102212464
        %v2106 = vsel %vm2102, %v2090, %v2105
        %v2107 = vsel %vm2101, %v2104, %v2106
        %v2108 = vsel %vm2100, %v2087, %v2090
        %v2109 = vsel %vm2103, %v2096, 920167782
        %v2110 = vsel %vm2102, %v2093, %v2109
        %v2111 = vsel %vm2101, %v2108, %v2110
        %v2112 = vsel %vm2100, %v2090, %v2093
        %v2113 = vsel %vm2103, %v2099, 1326507024
        %v2114 = vsel %vm2102, %v2096, %v2113
        %v2115 = vsel %vm2101, %v2112, %v2114
        %v2116 = vshll.u32 %v2076, 8
        %v2117 = vmul.u32.u64.compose %v2116, %v2115
        %v2118 = vextract.low.u32 %v2117
        %v2119 = vextract.high.u32 %v2117
        %v2120 = vmul.u32.u64.compose %v2116, %v2111
        %v2121 = vextract.low.u32 %v2120
        %v2122 = vextract.high.u32 %v2120
        %v2123 = vmul.u32 %v2116, %v2107
        %v2124 = vadd.s32 %v2119, %v2121
        %vm2125 = vc.u32 %v2119, %v2121
        %v2126 = vadd.s32 %v2122, 1
        %v2127 = vsel %vm2125, %v2126, %v2122
        %v2128 = vadd.s32 %v2123, %v2127
        %v2129 = vadd.s32 %v2128, 536870912
        %v2130 = vshrl.u32 %v2129, 30
        %v2131 = vshll.u32 %v2130, 30
        %v2132 = vsub.s32 %v2128, %v2131
        %vm2133 = vcmp.lt.s32.totalorder %v2132, 0
        %v2134 = vsub.s32 0, %v2132
        %v2135 = vsel %vm2133, %v2134, %v2132
        %v2136 = vclz %v2135
        %v2137 = vsub.s32 %v2136, 2
        %vm2138 = vcmp.gt.s32.totalorder 0, %v2137
        %v2139 = vsel %vm2138, 0, %v2137
        %v2140 = vsub.s32 32, %v2139
        %v2141 = vshll.u32 %v2132, %v2139
        %v2142 = vshrl.u32 %v2124, %v2140
        %v2143 = vor.u32 %v2141, %v2142
        %v2144 = vsub.s32 4294967266, %v2139
        %v2145 = vadd.s32 %v2144, 127
        %v2146 = vshll.u32 %v2145, 23
        %v2147 = vor.u32 4788187, %v2146
        %v2148 = vand.u32 2147483647, %v2147
        %v2150 = vcvt.s32.f32 %v2143
        %v2151 = vmul.f32 %v2150, %v2148
        %v2152 = vxor.u32 %v2151, 2147483648
        %v2153 = vsel %vm2070, %v2152, %v2151
        %v2154 = vsub.s32 4, %v2130
        %v2155 = vsel %vm2070, %v2154, %v2130
        %v2156 = vsel %vm2069, %v713, %v2153
        %v2157 = vsel %vm2069, 0, %v2155
        %v2158 = vcosq.f32.pop %v2156
        %v2159 = vsinq.f32.pop %v2156
        %vm2160 = vweird.f32 %v713
        %v2161 = vadd.s32 %v2157, 3
        %v2162 = vand.u32 %v2161, 3
        %vm2163 = vcmp.lt.s32.totalorder %v2162, 2
        %vm2164 = vcmp.eq.s32.totalorder %v2162, 0
        %v2165 = vxor.u32 %v2159, 2147483648
        %v2166 = vsel %vm2164, %v2158, %v2165
        %vm2167 = vcmp.eq.s32.totalorder %v2162, 2
        %v2168 = vxor.u32 %v2158, 2147483648
        %v2169 = vsel %vm2167, %v2168, %v2159
        %v2170 = vsel %vm2163, %v2166, %v2169
        %v2171 = vsel %vm2160, nan, %v2170
        %v2172 = vand.u32 2147483647, %v714
        %vm2173 = vcmp.le.f32.partialorder %v2172, 0.7853982
        %vm2174 = vcmp.lt.s32.totalorder %v714, 0
        %v2175 = vand.u32 %v714, 2139095040
        %v2176 = vshrl.u32 %v2175, 23
        %v2177 = vsub.s32 %v2176, 127
        %v2178 = vand.u32 2147483647, %v714
        %v2179 = vand.u32 %v2178, 8388607
        %v2180 = vor.u32 %v2179, 8388608
        %v2181 = vsub.s32 0, %v2180
        %v2182 = vadd.s32 %v2177, 1
        %vm2183 = vcmp.gt.s32.totalorder %v2182, 0
        %v2184 = vsel %vm2183, %v2182, 0
        %v2185 = vshrl.u32 %v2184, 5
        %v2186 = vand.u32 %v2184, 31
        %v2187 = vsub.s32 32, %v2186
        %v2188 = vshrl.u32 683565275, %v2187
        %v2189 = vshll.u32 683565275, %v2186
        %v2190 = vshrl.u32 2475754826, %v2187
        %v2191 = vor.u32 %v2189, %v2190
        %v2192 = vshll.u32 2475754826, %v2186
        %v2193 = vshrl.u32 2131351028, %v2187
        %v2194 = vor.u32 %v2192, %v2193
        %v2195 = vshll.u32 2131351028, %v2186
        %v2196 = vshrl.u32 2102212464, %v2187
        %v2197 = vor.u32 %v2195, %v2196
        %v2198 = vshll.u32 2102212464, %v2186
        %v2199 = vshrl.u32 920167782, %v2187
        %v2200 = vor.u32 %v2198, %v2199
        %v2201 = vshll.u32 920167782, %v2186
        %v2202 = vshrl.u32 1326507024, %v2187
        %v2203 = vor.u32 %v2201, %v2202
        %vm2204 = vcmp.lt.s32.totalorder %v2185, 1
        %vm2205 = vcmp.lt.s32.totalorder %v2185, 2
        %vm2206 = vcmp.lt.s32.totalorder %v2185, 3
        %vm2207 = vcmp.lt.s32.totalorder %v2185, 4
        %v2208 = vsel %vm2204, %v2188, %v2191
        %v2209 = vsel %vm2207, %v2197, 2102212464
        %v2210 = vsel %vm2206, %v2194, %v2209
        %v2211 = vsel %vm2205, %v2208, %v2210
        %v2212 = vsel %vm2204, %v2191, %v2194
        %v2213 = vsel %vm2207, %v2200, 920167782
        %v2214 = vsel %vm2206, %v2197, %v2213
        %v2215 = vsel %vm2205, %v2212, %v2214
        %v2216 = vsel %vm2204, %v2194, %v2197
        %v2217 = vsel %vm2207, %v2203, 1326507024
        %v2218 = vsel %vm2206, %v2200, %v2217
        %v2219 = vsel %vm2205, %v2216, %v2218
        %v2220 = vshll.u32 %v2180, 8
        %v2221 = vmul.u32.u64.compose %v2220, %v2219
        %v2222 = vextract.low.u32 %v2221
        %v2223 = vextract.high.u32 %v2221
        %v2224 = vmul.u32.u64.compose %v2220, %v2215
        %v2225 = vextract.low.u32 %v2224
        %v2226 = vextract.high.u32 %v2224
        %v2227 = vmul.u32 %v2220, %v2211
        %v2228 = vadd.s32 %v2223, %v2225
        %vm2229 = vc.u32 %v2223, %v2225
        %v2230 = vadd.s32 %v2226, 1
        %v2231 = vsel %vm2229, %v2230, %v2226
        %v2232 = vadd.s32 %v2227, %v2231
        %v2233 = vadd.s32 %v2232, 536870912
        %v2234 = vshrl.u32 %v2233, 30
        %v2235 = vshll.u32 %v2234, 30
        %v2236 = vsub.s32 %v2232, %v2235
        %vm2237 = vcmp.lt.s32.totalorder %v2236, 0
        %v2238 = vsub.s32 0, %v2236
        %v2239 = vsel %vm2237, %v2238, %v2236
        %v2240 = vclz %v2239
        %v2241 = vsub.s32 %v2240, 2
        %vm2242 = vcmp.gt.s32.totalorder 0, %v2241
        %v2243 = vsel %vm2242, 0, %v2241
        %v2244 = vsub.s32 32, %v2243
        %v2245 = vshll.u32 %v2236, %v2243
        %v2246 = vshrl.u32 %v2228, %v2244
        %v2247 = vor.u32 %v2245, %v2246
        %v2248 = vsub.s32 4294967266, %v2243
        %v2249 = vadd.s32 %v2248, 127
        %v2250 = vshll.u32 %v2249, 23
        %v2251 = vor.u32 4788187, %v2250
        %v2252 = vand.u32 2147483647, %v2251
        %v2254 = vcvt.s32.f32 %v2247
        %v2255 = vmul.f32 %v2254, %v2252
        %v2256 = vxor.u32 %v2255, 2147483648
        %v2257 = vsel %vm2174, %v2256, %v2255
        %v2258 = vsub.s32 4, %v2234
        %v2259 = vsel %vm2174, %v2258, %v2234
        %v2260 = vsel %vm2173, %v714, %v2257
        %v2261 = vsel %vm2173, 0, %v2259
        %v2262 = vcosq.f32.pop %v2260
        %v2263 = vsinq.f32.pop %v2260
        %vm2264 = vweird.f32 %v714
        %v2265 = vadd.s32 %v2261, 3
        %v2266 = vand.u32 %v2265, 3
        %vm2267 = vcmp.lt.s32.totalorder %v2266, 2
        %vm2268 = vcmp.eq.s32.totalorder %v2266, 0
        %v2269 = vxor.u32 %v2263, 2147483648
        %v2270 = vsel %vm2268, %v2262, %v2269
        %vm2271 = vcmp.eq.s32.totalorder %v2266, 2
        %v2272 = vxor.u32 %v2262, 2147483648
        %v2273 = vsel %vm2271, %v2272, %v2263
        %v2274 = vsel %vm2267, %v2270, %v2273
        %v2275 = vsel %vm2264, nan, %v2274
        %v2276 = vand.u32 2147483647, %v715
        %vm2277 = vcmp.le.f32.partialorder %v2276, 0.7853982
        %vm2278 = vcmp.lt.s32.totalorder %v715, 0
        %v2279 = vand.u32 %v715, 2139095040
        %v2280 = vshrl.u32 %v2279, 23
        %v2281 = vsub.s32 %v2280, 127
        %v2282 = vand.u32 2147483647, %v715
        %v2283 = vand.u32 %v2282, 8388607
        %v2284 = vor.u32 %v2283, 8388608
        %v2285 = vsub.s32 0, %v2284
        %v2286 = vadd.s32 %v2281, 1
        %vm2287 = vcmp.gt.s32.totalorder %v2286, 0
        %v2288 = vsel %vm2287, %v2286, 0
        %v2289 = vshrl.u32 %v2288, 5
        %v2290 = vand.u32 %v2288, 31
        %v2291 = vsub.s32 32, %v2290
        %v2292 = vshrl.u32 683565275, %v2291
        %v2293 = vshll.u32 683565275, %v2290
        %v2294 = vshrl.u32 2475754826, %v2291
        %v2295 = vor.u32 %v2293, %v2294
        %v2296 = vshll.u32 2475754826, %v2290
        %v2297 = vshrl.u32 2131351028, %v2291
        %v2298 = vor.u32 %v2296, %v2297
        %v2299 = vshll.u32 2131351028, %v2290
        %v2300 = vshrl.u32 2102212464, %v2291
        %v2301 = vor.u32 %v2299, %v2300
        %v2302 = vshll.u32 2102212464, %v2290
        %v2303 = vshrl.u32 920167782, %v2291
        %v2304 = vor.u32 %v2302, %v2303
        %v2305 = vshll.u32 920167782, %v2290
        %v2306 = vshrl.u32 1326507024, %v2291
        %v2307 = vor.u32 %v2305, %v2306
        %vm2308 = vcmp.lt.s32.totalorder %v2289, 1
        %vm2309 = vcmp.lt.s32.totalorder %v2289, 2
        %vm2310 = vcmp.lt.s32.totalorder %v2289, 3
        %vm2311 = vcmp.lt.s32.totalorder %v2289, 4
        %v2312 = vsel %vm2308, %v2292, %v2295
        %v2313 = vsel %vm2311, %v2301, 2102212464
        %v2314 = vsel %vm2310, %v2298, %v2313
        %v2315 = vsel %vm2309, %v2312, %v2314
        %v2316 = vsel %vm2308, %v2295, %v2298
        %v2317 = vsel %vm2311, %v2304, 920167782
        %v2318 = vsel %vm2310, %v2301, %v2317
        %v2319 = vsel %vm2309, %v2316, %v2318
        %v2320 = vsel %vm2308, %v2298, %v2301
        %v2321 = vsel %vm2311, %v2307, 1326507024
        %v2322 = vsel %vm2310, %v2304, %v2321
        %v2323 = vsel %vm2309, %v2320, %v2322
        %v2324 = vshll.u32 %v2284, 8
        %v2325 = vmul.u32.u64.compose %v2324, %v2323
        %v2326 = vextract.low.u32 %v2325
        %v2327 = vextract.high.u32 %v2325
        %v2328 = vmul.u32.u64.compose %v2324, %v2319
        %v2329 = vextract.low.u32 %v2328
        %v2330 = vextract.high.u32 %v2328
        %v2331 = vmul.u32 %v2324, %v2315
        %v2332 = vadd.s32 %v2327, %v2329
        %vm2333 = vc.u32 %v2327, %v2329
        %v2334 = vadd.s32 %v2330, 1
        %v2335 = vsel %vm2333, %v2334, %v2330
        %v2336 = vadd.s32 %v2331, %v2335
        %v2337 = vadd.s32 %v2336, 536870912
        %v2338 = vshrl.u32 %v2337, 30
        %v2339 = vshll.u32 %v2338, 30
        %v2340 = vsub.s32 %v2336, %v2339
        %vm2341 = vcmp.lt.s32.totalorder %v2340, 0
        %v2342 = vsub.s32 0, %v2340
        %v2343 = vsel %vm2341, %v2342, %v2340
        %v2344 = vclz %v2343
        %v2345 = vsub.s32 %v2344, 2
        %vm2346 = vcmp.gt.s32.totalorder 0, %v2345
        %v2347 = vsel %vm2346, 0, %v2345
        %v2348 = vsub.s32 32, %v2347
        %v2349 = vshll.u32 %v2340, %v2347
        %v2350 = vshrl.u32 %v2332, %v2348
        %v2351 = vor.u32 %v2349, %v2350
        %v2352 = vsub.s32 4294967266, %v2347
        %v2353 = vadd.s32 %v2352, 127
        %v2354 = vshll.u32 %v2353, 23
        %v2355 = vor.u32 4788187, %v2354
        %v2356 = vand.u32 2147483647, %v2355
        %v2358 = vcvt.s32.f32 %v2351
        %v2359 = vmul.f32 %v2358, %v2356
        %v2360 = vxor.u32 %v2359, 2147483648
        %v2361 = vsel %vm2278, %v2360, %v2359
        %v2362 = vsub.s32 4, %v2338
        %v2363 = vsel %vm2278, %v2362, %v2338
        %v2364 = vsel %vm2277, %v715, %v2361
        %v2365 = vsel %vm2277, 0, %v2363
        %v2366 = vcosq.f32.pop %v2364
        %v2367 = vsinq.f32.pop %v2364
        %vm2368 = vweird.f32 %v715
        %v2369 = vadd.s32 %v2365, 3
        %v2370 = vand.u32 %v2369, 3
        %vm2371 = vcmp.lt.s32.totalorder %v2370, 2
        %vm2372 = vcmp.eq.s32.totalorder %v2370, 0
        %v2373 = vxor.u32 %v2367, 2147483648
        %v2374 = vsel %vm2372, %v2366, %v2373
        %vm2375 = vcmp.eq.s32.totalorder %v2370, 2
        %v2376 = vxor.u32 %v2366, 2147483648
        %v2377 = vsel %vm2375, %v2376, %v2367
        %v2378 = vsel %vm2371, %v2374, %v2377
        %v2379 = vsel %vm2368, nan, %v2378
        %v2380 = vpack.c.bf16 %v923, %v819
        %v2381 = vpack.c.bf16 %v1131, %v1027
        %v2382 = vpack.c.bf16 %v1339, %v1235
        %v2383 = vpack.c.bf16 %v1547, %v1443
        %v2384 = vpack.c.bf16 %v1755, %v1651
        %v2385 = vpack.c.bf16 %v1963, %v1859
        %v2386 = vpack.c.bf16 %v2171, %v2067
        %v2387 = vpack.c.bf16 %v2379, %v2275
        %v2388 = vld [vmem:[%s3] sm:$0xf]
        %v2389 = vld [vmem:[%s3 + $0x4] sm:$0xf]
        %v2390 = vld [vmem:[%s3 + $0x8] sm:$0xf]
        %v2391 = vld [vmem:[%s3 + $0xc] sm:$0xf]
        %v2392 = vld [vmem:[%s3 + $0x10] sm:$0xf]
        %v2393 = vld [vmem:[%s3 + $0x14] sm:$0xf]
        %v2394 = vld [vmem:[%s3 + $0x18] sm:$0xf]
        %v2395 = vld [vmem:[%s3 + $0x1c] sm:$0xf]
        %v2396 = vld [vmem:[%s3 + $0x20] sm:$0xf]
        %v2397 = vld [vmem:[%s3 + $0x24] sm:$0xf]
        %v2398 = vld [vmem:[%s3 + $0x28] sm:$0xf]
        %v2399 = vld [vmem:[%s3 + $0x2c] sm:$0xf]
        %v2400 = vld [vmem:[%s3 + $0x30] sm:$0xf]
        %v2401 = vld [vmem:[%s3 + $0x34] sm:$0xf]
        %v2402 = vld [vmem:[%s3 + $0x38] sm:$0xf]
        %v2403 = vld [vmem:[%s3 + $0x3c] sm:$0xf]
        %v2404 = vld [vmem:[%s4] sm:$0x1]
        %v2406 = vlaneseq
        %v2407 = vshrl.u32 %v2406, 7
        %v2408 = vsub.s32 0, %v2407
        %v2409 = vrot.slane %v2404, %v2408
        %v2427 = vunpack.c.l.b16 %v2388
        %v2428 = vunpack.c.l.b16 %v2389
        %v2429 = vunpack.c.l.b16 %v2390
        %v2430 = vunpack.c.l.b16 %v2391
        %v2431 = vunpack.c.l.b16 %v2392
        %v2432 = vunpack.c.l.b16 %v2393
        %v2433 = vunpack.c.l.b16 %v2394
        %v2434 = vunpack.c.l.b16 %v2395
        %v2435 = vunpack.c.l.b16 %v2396
        %v2436 = vunpack.c.l.b16 %v2397
        %v2437 = vunpack.c.l.b16 %v2398
        %v2438 = vunpack.c.l.b16 %v2399
        %v2439 = vunpack.c.l.b16 %v2400
        %v2440 = vunpack.c.l.b16 %v2401
        %v2441 = vunpack.c.l.b16 %v2402
        %v2442 = vunpack.c.l.b16 %v2403
        %v2443 = vpack.c.b16 %v2428, %v2427
        %v2444 = vpack.c.b16 %v2430, %v2429
        %v2445 = vpack.c.b16 %v2432, %v2431
        %v2446 = vpack.c.b16 %v2434, %v2433
        %v2447 = vpack.c.b16 %v2436, %v2435
        %v2448 = vpack.c.b16 %v2438, %v2437
        %v2449 = vpack.c.b16 %v2440, %v2439
        %v2450 = vpack.c.b16 %v2442, %v2441
        %2459 = vmatprep.subr.bf16.mxu0 0
        %2460 = vmatpush1.bf16.msra.mxu0 %v2450
        %2461 = vmatprep.subr.bf16.mxu0 0
        %2462 = vmatpush1.bf16.msra.mxu0 %v2449
        %2463 = vmatprep.subr.bf16.mxu0 0
        %2464 = vmatpush1.bf16.msra.mxu0 %v2448
        %2465 = vmatprep.subr.bf16.mxu0 0
        %2466 = vmatpush1.bf16.msra.mxu0 %v2447
        %2467 = vmatprep.subr.bf16.mxu0 0
        %2468 = vmatpush1.bf16.msra.mxu0 %v2446
        %2469 = vmatprep.subr.bf16.mxu0 0
        %2470 = vmatpush1.bf16.msra.mxu0 %v2445
        %2471 = vmatprep.subr.bf16.mxu0 0
        %2472 = vmatpush1.bf16.msra.mxu0 %v2444
        %2473 = vmatprep.subr.bf16.mxu0 0
        %2474 = vmatpush1.bf16.msra.mxu0 %v2443
        %2475 = vmatprep.subr.bf16.mxu0 0
        %2476 = vmatpush2.bf16.msra.mxu0 0
        %2477 = vmatprep.subr.bf16.mxu0 0
        %2478 = vmatpush2.bf16.msra.mxu0 0
        %2479 = vmatprep.subr.bf16.mxu0 0
        %2480 = vmatpush2.bf16.msra.mxu0 0
        %2481 = vmatprep.subr.bf16.mxu0 0
        %2482 = vmatpush2.bf16.msra.mxu0 0
        %2483 = vmatprep.subr.bf16.mxu0 0
        %2484 = vmatpush2.bf16.msra.mxu0 0
        %2485 = vmatprep.subr.bf16.mxu0 0
        %2486 = vmatpush2.bf16.msra.mxu0 0
        %2487 = vmatprep.subr.bf16.mxu0 0
        %2488 = vmatpush2.bf16.msra.mxu0 0
        %2489 = vmatprep.subr.bf16.mxu0 0
        %2490 = vmatpush2.bf16.msra.mxu0 0
        %2491 = vmatprep.mubr.bf16.mxu0 0
        %2492 = vmatmul.mubr.bf16.gmra.mxu0 %v2380
        %v2493 = vpop.f32.mrf.mxu0
        %v2494 = vadd.f32 %v2409, %v2493
        %v2495 = vpop.f32.mrf.mxu0
        %v2496 = vpop.f32.mrf.mxu0
        %v2497 = vadd.f32 %v2409, %v2496
        %v2498 = vpop.f32.mrf.mxu0
        %2499 = vmatprep.mubr.bf16.mxu0 0
        %2500 = vmatmul.mubr.bf16.gmra.mxu0 %v2381
        %v2501 = vpop.f32.mrf.mxu0
        %v2502 = vadd.f32 %v2409, %v2501
        %v2503 = vpop.f32.mrf.mxu0
        %v2504 = vpop.f32.mrf.mxu0
        %v2505 = vadd.f32 %v2409, %v2504
        %v2506 = vpop.f32.mrf.mxu0
        %2507 = vmatprep.mubr.bf16.mxu0 0
        %2508 = vmatmul.mubr.bf16.gmra.mxu0 %v2382
        %v2509 = vpop.f32.mrf.mxu0
        %v2510 = vadd.f32 %v2409, %v2509
        %v2511 = vpop.f32.mrf.mxu0
        %v2512 = vpop.f32.mrf.mxu0
        %v2513 = vadd.f32 %v2409, %v2512
        %v2514 = vpop.f32.mrf.mxu0
        %2515 = vmatprep.mubr.bf16.mxu0 0
        %2516 = vmatmul.mubr.bf16.gmra.mxu0 %v2383
        %v2517 = vpop.f32.mrf.mxu0
        %v2518 = vadd.f32 %v2409, %v2517
        %v2519 = vpop.f32.mrf.mxu0
        %v2520 = vpop.f32.mrf.mxu0
        %v2521 = vadd.f32 %v2409, %v2520
        %v2522 = vpop.f32.mrf.mxu0
        %2523 = vmatprep.mubr.bf16.mxu0 0
        %2524 = vmatmul.mubr.bf16.gmra.mxu0 %v2384
        %v2525 = vpop.f32.mrf.mxu0
        %v2526 = vadd.f32 %v2409, %v2525
        %v2527 = vpop.f32.mrf.mxu0
        %v2528 = vpop.f32.mrf.mxu0
        %v2529 = vadd.f32 %v2409, %v2528
        %v2530 = vpop.f32.mrf.mxu0
        %2531 = vmatprep.mubr.bf16.mxu0 0
        %2532 = vmatmul.mubr.bf16.gmra.mxu0 %v2385
        %v2533 = vpop.f32.mrf.mxu0
        %v2534 = vadd.f32 %v2409, %v2533
        %v2535 = vpop.f32.mrf.mxu0
        %v2536 = vpop.f32.mrf.mxu0
        %v2537 = vadd.f32 %v2409, %v2536
        %v2538 = vpop.f32.mrf.mxu0
        %2539 = vmatprep.mubr.bf16.mxu0 0
        %2540 = vmatmul.mubr.bf16.gmra.mxu0 %v2386
        %v2541 = vpop.f32.mrf.mxu0
        %v2542 = vadd.f32 %v2409, %v2541
        %v2543 = vpop.f32.mrf.mxu0
        %v2544 = vpop.f32.mrf.mxu0
        %v2545 = vadd.f32 %v2409, %v2544
        %v2546 = vpop.f32.mrf.mxu0
        %2547 = vmatprep.mubr.bf16.mxu0 0
        %2548 = vmatmul.mubr.bf16.gmra.mxu0 %v2387
        %v2549 = vpop.f32.mrf.mxu0
        %v2550 = vadd.f32 %v2409, %v2549
        %v2551 = vpop.f32.mrf.mxu0
        %v2552 = vpop.f32.mrf.mxu0
        %v2553 = vadd.f32 %v2409, %v2552
        %v2554 = vpop.f32.mrf.mxu0
        %2555 = vdwg.mxu0
        %v2556 = vxor.u32 %v2494, 2147483648
        %v2557 = vxor.u32 %v2497, 2147483648
        %v2558 = vxor.u32 %v2502, 2147483648
        %v2559 = vxor.u32 %v2505, 2147483648
        %v2560 = vxor.u32 %v2510, 2147483648
        %v2561 = vxor.u32 %v2513, 2147483648
        %v2562 = vxor.u32 %v2518, 2147483648
        %v2563 = vxor.u32 %v2521, 2147483648
        %v2564 = vxor.u32 %v2526, 2147483648
        %v2565 = vxor.u32 %v2529, 2147483648
        %v2566 = vxor.u32 %v2534, 2147483648
        %v2567 = vxor.u32 %v2537, 2147483648
        %v2568 = vxor.u32 %v2542, 2147483648
        %v2569 = vxor.u32 %v2545, 2147483648
        %v2570 = vxor.u32 %v2550, 2147483648
        %v2571 = vxor.u32 %v2553, 2147483648
        %v2572 = vmul.f32 %v2556, 1.442695
        %v2573 = vpow.pop %v2572
        %v2574 = vmul.f32 %v2557, 1.442695
        %v2575 = vpow.pop %v2574
        %v2576 = vmul.f32 %v2558, 1.442695
        %v2577 = vpow.pop %v2576
        %v2578 = vmul.f32 %v2559, 1.442695
        %v2579 = vpow.pop %v2578
        %v2580 = vmul.f32 %v2560, 1.442695
        %v2581 = vpow.pop %v2580
        %v2582 = vmul.f32 %v2561, 1.442695
        %v2583 = vpow.pop %v2582
        %v2584 = vmul.f32 %v2562, 1.442695
        %v2585 = vpow.pop %v2584
        %v2586 = vmul.f32 %v2563, 1.442695
        %v2587 = vpow.pop %v2586
        %v2588 = vmul.f32 %v2564, 1.442695
        %v2589 = vpow.pop %v2588
        %v2590 = vmul.f32 %v2565, 1.442695
        %v2591 = vpow.pop %v2590
        %v2592 = vmul.f32 %v2566, 1.442695
        %v2593 = vpow.pop %v2592
        %v2594 = vmul.f32 %v2567, 1.442695
        %v2595 = vpow.pop %v2594
        %v2596 = vmul.f32 %v2568, 1.442695
        %v2597 = vpow.pop %v2596
        %v2598 = vmul.f32 %v2569, 1.442695
        %v2599 = vpow.pop %v2598
        %v2600 = vmul.f32 %v2570, 1.442695
        %v2601 = vpow.pop %v2600
        %v2602 = vmul.f32 %v2571, 1.442695
        %v2603 = vpow.pop %v2602
        %v2604 = vadd.f32 %v2573, 1.0
        %v2605 = vadd.f32 %v2575, 1.0
        %v2606 = vadd.f32 %v2577, 1.0
        %v2607 = vadd.f32 %v2579, 1.0
        %v2608 = vadd.f32 %v2581, 1.0
        %v2609 = vadd.f32 %v2583, 1.0
        %v2610 = vadd.f32 %v2585, 1.0
        %v2611 = vadd.f32 %v2587, 1.0
        %v2612 = vadd.f32 %v2589, 1.0
        %v2613 = vadd.f32 %v2591, 1.0
        %v2614 = vadd.f32 %v2593, 1.0
        %v2615 = vadd.f32 %v2595, 1.0
        %v2616 = vadd.f32 %v2597, 1.0
        %v2617 = vadd.f32 %v2599, 1.0
        %v2618 = vadd.f32 %v2601, 1.0
        %v2619 = vadd.f32 %v2603, 1.0
        %v2620 = vrcp.pop %v2604
        %v2621 = vmul.f32 1.0, %v2620
        %v2622 = vrcp.pop %v2605
        %v2623 = vmul.f32 1.0, %v2622
        %v2624 = vrcp.pop %v2606
        %v2625 = vmul.f32 1.0, %v2624
        %v2626 = vrcp.pop %v2607
        %v2627 = vmul.f32 1.0, %v2626
        %v2628 = vrcp.pop %v2608
        %v2629 = vmul.f32 1.0, %v2628
        %v2630 = vrcp.pop %v2609
        %v2631 = vmul.f32 1.0, %v2630
        %v2632 = vrcp.pop %v2610
        %v2633 = vmul.f32 1.0, %v2632
        %v2634 = vrcp.pop %v2611
        %v2635 = vmul.f32 1.0, %v2634
        %v2636 = vrcp.pop %v2612
        %v2637 = vmul.f32 1.0, %v2636
        %v2638 = vrcp.pop %v2613
        %v2639 = vmul.f32 1.0, %v2638
        %v2640 = vrcp.pop %v2614
        %v2641 = vmul.f32 1.0, %v2640
        %v2642 = vrcp.pop %v2615
        %v2643 = vmul.f32 1.0, %v2642
        %v2644 = vrcp.pop %v2616
        %v2645 = vmul.f32 1.0, %v2644
        %v2646 = vrcp.pop %v2617
        %v2647 = vmul.f32 1.0, %v2646
        %v2648 = vrcp.pop %v2618
        %v2649 = vmul.f32 1.0, %v2648
        %v2650 = vrcp.pop %v2619
        %v2651 = vmul.f32 1.0, %v2650
        %v2652 = vmul.f32 %v2494, %v2621
        %v2653 = vmul.f32 %v2497, %v2623
        %v2654 = vmul.f32 %v2502, %v2625
        %v2655 = vmul.f32 %v2505, %v2627
        %v2656 = vmul.f32 %v2510, %v2629
        %v2657 = vmul.f32 %v2513, %v2631
        %v2658 = vmul.f32 %v2518, %v2633
        %v2659 = vmul.f32 %v2521, %v2635
        %v2660 = vmul.f32 %v2526, %v2637
        %v2661 = vmul.f32 %v2529, %v2639
        %v2662 = vmul.f32 %v2534, %v2641
        %v2663 = vmul.f32 %v2537, %v2643
        %v2664 = vmul.f32 %v2542, %v2645
        %v2665 = vmul.f32 %v2545, %v2647
        %v2666 = vmul.f32 %v2550, %v2649
        %v2667 = vmul.f32 %v2553, %v2651
        %v2668 = vpack.c.bf16 %v2653, %v2652
        %v2669 = vpack.c.bf16 %v2655, %v2654
        %v2670 = vpack.c.bf16 %v2657, %v2656
        %v2671 = vpack.c.bf16 %v2659, %v2658
        %v2672 = vpack.c.bf16 %v2661, %v2660
        %v2673 = vpack.c.bf16 %v2663, %v2662
        %v2674 = vpack.c.bf16 %v2665, %v2664
        %v2675 = vpack.c.bf16 %v2667, %v2666
        %v2676 = vld [vmem:[%s5] sm:$0xf]
        %v2677 = vld [vmem:[%s5 + $0x4] sm:$0xf]
        %v2678 = vld [vmem:[%s5 + $0x8] sm:$0xf]
        %v2679 = vld [vmem:[%s5 + $0xc] sm:$0xf]
        %v2680 = vld [vmem:[%s5 + $0x10] sm:$0xf]
        %v2681 = vld [vmem:[%s5 + $0x14] sm:$0xf]
        %v2682 = vld [vmem:[%s5 + $0x18] sm:$0xf]
        %v2683 = vld [vmem:[%s5 + $0x1c] sm:$0xf]
        %v2684 = vld [vmem:[%s5 + $0x20] sm:$0xf]
        %v2685 = vld [vmem:[%s5 + $0x24] sm:$0xf]
        %v2686 = vld [vmem:[%s5 + $0x28] sm:$0xf]
        %v2687 = vld [vmem:[%s5 + $0x2c] sm:$0xf]
        %v2688 = vld [vmem:[%s5 + $0x30] sm:$0xf]
        %v2689 = vld [vmem:[%s5 + $0x34] sm:$0xf]
        %v2690 = vld [vmem:[%s5 + $0x38] sm:$0xf]
        %v2691 = vld [vmem:[%s5 + $0x3c] sm:$0xf]
        %v2692 = vld [vmem:[%s6] sm:$0x1]
        %v2694 = vlaneseq
        %v2695 = vshrl.u32 %v2694, 7
        %v2696 = vsub.s32 0, %v2695
        %v2697 = vrot.slane %v2692, %v2696
        %v2715 = vunpack.c.l.b16 %v2676
        %v2716 = vunpack.c.l.b16 %v2677
        %v2717 = vunpack.c.l.b16 %v2678
        %v2718 = vunpack.c.l.b16 %v2679
        %v2719 = vunpack.c.l.b16 %v2680
        %v2720 = vunpack.c.l.b16 %v2681
        %v2721 = vunpack.c.l.b16 %v2682
        %v2722 = vunpack.c.l.b16 %v2683
        %v2723 = vunpack.c.l.b16 %v2684
        %v2724 = vunpack.c.l.b16 %v2685
        %v2725 = vunpack.c.l.b16 %v2686
        %v2726 = vunpack.c.l.b16 %v2687
        %v2727 = vunpack.c.l.b16 %v2688
        %v2728 = vunpack.c.l.b16 %v2689
        %v2729 = vunpack.c.l.b16 %v2690
        %v2730 = vunpack.c.l.b16 %v2691
        %v2731 = vpack.c.b16 %v2716, %v2715
        %v2732 = vpack.c.b16 %v2718, %v2717
        %v2733 = vpack.c.b16 %v2720, %v2719
        %v2734 = vpack.c.b16 %v2722, %v2721
        %v2735 = vpack.c.b16 %v2724, %v2723
        %v2736 = vpack.c.b16 %v2726, %v2725
        %v2737 = vpack.c.b16 %v2728, %v2727
        %v2738 = vpack.c.b16 %v2730, %v2729
        %2747 = vmatprep.subr.bf16.mxu0 0
        %2748 = vmatpush1.bf16.msra.mxu0 %v2738
        %2749 = vmatprep.subr.bf16.mxu0 0
        %2750 = vmatpush1.bf16.msra.mxu0 %v2737
        %2751 = vmatprep.subr.bf16.mxu0 0
        %2752 = vmatpush1.bf16.msra.mxu0 %v2736
        %2753 = vmatprep.subr.bf16.mxu0 0
        %2754 = vmatpush1.bf16.msra.mxu0 %v2735
        %2755 = vmatprep.subr.bf16.mxu0 0
        %2756 = vmatpush1.bf16.msra.mxu0 %v2734
        %2757 = vmatprep.subr.bf16.mxu0 0
        %2758 = vmatpush1.bf16.msra.mxu0 %v2733
        %2759 = vmatprep.subr.bf16.mxu0 0
        %2760 = vmatpush1.bf16.msra.mxu0 %v2732
        %2761 = vmatprep.subr.bf16.mxu0 0
        %2762 = vmatpush1.bf16.msra.mxu0 %v2731
        %2763 = vmatprep.subr.bf16.mxu0 0
        %2764 = vmatpush2.bf16.msra.mxu0 0
        %2765 = vmatprep.subr.bf16.mxu0 0
        %2766 = vmatpush2.bf16.msra.mxu0 0
        %2767 = vmatprep.subr.bf16.mxu0 0
        %2768 = vmatpush2.bf16.msra.mxu0 0
        %2769 = vmatprep.subr.bf16.mxu0 0
        %2770 = vmatpush2.bf16.msra.mxu0 0
        %2771 = vmatprep.subr.bf16.mxu0 0
        %2772 = vmatpush2.bf16.msra.mxu0 0
        %2773 = vmatprep.subr.bf16.mxu0 0
        %2774 = vmatpush2.bf16.msra.mxu0 0
        %2775 = vmatprep.subr.bf16.mxu0 0
        %2776 = vmatpush2.bf16.msra.mxu0 0
        %2777 = vmatprep.subr.bf16.mxu0 0
        %2778 = vmatpush2.bf16.msra.mxu0 0
        %2779 = vmatprep.mubr.bf16.mxu0 0
        %2780 = vmatmul.mubr.bf16.gmra.mxu0 %v2668
        %v2781 = vpop.f32.mrf.mxu0
        %v2782 = vadd.f32 %v2697, %v2781
        %v2783 = vpop.f32.mrf.mxu0
        %v2784 = vpop.f32.mrf.mxu0
        %v2785 = vadd.f32 %v2697, %v2784
        %v2786 = vpop.f32.mrf.mxu0
        %2787 = vmatprep.mubr.bf16.mxu0 0
        %2788 = vmatmul.mubr.bf16.gmra.mxu0 %v2669
        %v2789 = vpop.f32.mrf.mxu0
        %v2790 = vadd.f32 %v2697, %v2789
        %v2791 = vpop.f32.mrf.mxu0
        %v2792 = vpop.f32.mrf.mxu0
        %v2793 = vadd.f32 %v2697, %v2792
        %v2794 = vpop.f32.mrf.mxu0
        %2795 = vmatprep.mubr.bf16.mxu0 0
        %2796 = vmatmul.mubr.bf16.gmra.mxu0 %v2670
        %v2797 = vpop.f32.mrf.mxu0
        %v2798 = vadd.f32 %v2697, %v2797
        %v2799 = vpop.f32.mrf.mxu0
        %v2800 = vpop.f32.mrf.mxu0
        %v2801 = vadd.f32 %v2697, %v2800
        %v2802 = vpop.f32.mrf.mxu0
        %2803 = vmatprep.mubr.bf16.mxu0 0
        %2804 = vmatmul.mubr.bf16.gmra.mxu0 %v2671
        %v2805 = vpop.f32.mrf.mxu0
        %v2806 = vadd.f32 %v2697, %v2805
        %v2807 = vpop.f32.mrf.mxu0
        %v2808 = vpop.f32.mrf.mxu0
        %v2809 = vadd.f32 %v2697, %v2808
        %v2810 = vpop.f32.mrf.mxu0
        %2811 = vmatprep.mubr.bf16.mxu0 0
        %2812 = vmatmul.mubr.bf16.gmra.mxu0 %v2672
        %v2813 = vpop.f32.mrf.mxu0
        %v2814 = vadd.f32 %v2697, %v2813
        %v2815 = vpop.f32.mrf.mxu0
        %v2816 = vpop.f32.mrf.mxu0
        %v2817 = vadd.f32 %v2697, %v2816
        %v2818 = vpop.f32.mrf.mxu0
        %2819 = vmatprep.mubr.bf16.mxu0 0
        %2820 = vmatmul.mubr.bf16.gmra.mxu0 %v2673
        %v2821 = vpop.f32.mrf.mxu0
        %v2822 = vadd.f32 %v2697, %v2821
        %v2823 = vpop.f32.mrf.mxu0
        %v2824 = vpop.f32.mrf.mxu0
        %v2825 = vadd.f32 %v2697, %v2824
        %v2826 = vpop.f32.mrf.mxu0
        %2827 = vmatprep.mubr.bf16.mxu0 0
        %2828 = vmatmul.mubr.bf16.gmra.mxu0 %v2674
        %v2829 = vpop.f32.mrf.mxu0
        %v2830 = vadd.f32 %v2697, %v2829
        %v2831 = vpop.f32.mrf.mxu0
        %v2832 = vpop.f32.mrf.mxu0
        %v2833 = vadd.f32 %v2697, %v2832
        %v2834 = vpop.f32.mrf.mxu0
        %2835 = vmatprep.mubr.bf16.mxu0 0
        %2836 = vmatmul.mubr.bf16.gmra.mxu0 %v2675
        %v2837 = vpop.f32.mrf.mxu0
        %v2838 = vadd.f32 %v2697, %v2837
        %v2839 = vpop.f32.mrf.mxu0
        %v2840 = vpop.f32.mrf.mxu0
        %v2841 = vadd.f32 %v2697, %v2840
        %v2842 = vpop.f32.mrf.mxu0
        %2843 = vdwg.mxu0
        %v2844 = vld [vmem:[%s574] sm:$0xf]
        %v2845 = vld [vmem:[%s574 + $0x4] sm:$0xf]
        %v2846 = vld [vmem:[%s574 + $0x8] sm:$0xf]
        %v2847 = vld [vmem:[%s574 + $0xc] sm:$0xf]
        %v2848 = vld [vmem:[%s574 + $0x10] sm:$0xf]
        %v2849 = vld [vmem:[%s574 + $0x14] sm:$0xf]
        %v2850 = vld [vmem:[%s574 + $0x18] sm:$0xf]
        %v2851 = vld [vmem:[%s574 + $0x1c] sm:$0xf]
        %v2852 = vld [vmem:[%s574 + $0x20] sm:$0xf]
        %v2853 = vld [vmem:[%s574 + $0x24] sm:$0xf]
        %v2854 = vld [vmem:[%s574 + $0x28] sm:$0xf]
        %v2855 = vld [vmem:[%s574 + $0x2c] sm:$0xf]
        %v2856 = vld [vmem:[%s574 + $0x30] sm:$0xf]
        %v2857 = vld [vmem:[%s574 + $0x34] sm:$0xf]
        %v2858 = vld [vmem:[%s574 + $0x38] sm:$0xf]
        %v2859 = vld [vmem:[%s574 + $0x3c] sm:$0xf]
        %v2860 = vld [vmem:[#allocation2] sm:$0xf]
        %v2861 = vld [vmem:[#allocation2 + $0x4] sm:$0xf]
        %v2862 = vld [vmem:[#allocation2 + $0x8] sm:$0xf]
        %v2863 = vld [vmem:[#allocation2 + $0xc] sm:$0xf]
        %v2864 = vld [vmem:[#allocation2 + $0x10] sm:$0xf]
        %v2865 = vld [vmem:[#allocation2 + $0x14] sm:$0xf]
        %v2866 = vld [vmem:[#allocation2 + $0x18] sm:$0xf]
        %v2867 = vld [vmem:[#allocation2 + $0x1c] sm:$0xf]
        %v2868 = vld [vmem:[#allocation2 + $0x20] sm:$0xf]
        %v2869 = vld [vmem:[#allocation2 + $0x24] sm:$0xf]
        %v2870 = vld [vmem:[#allocation2 + $0x28] sm:$0xf]
        %v2871 = vld [vmem:[#allocation2 + $0x2c] sm:$0xf]
        %v2872 = vld [vmem:[#allocation2 + $0x30] sm:$0xf]
        %v2873 = vld [vmem:[#allocation2 + $0x34] sm:$0xf]
        %v2874 = vld [vmem:[#allocation2 + $0x38] sm:$0xf]
        %v2875 = vld [vmem:[#allocation2 + $0x3c] sm:$0xf]
        %v2876 = vld [vmem:[%s8] sm:$0x1]
        %v2878 = vlaneseq
        %v2879 = vshrl.u32 %v2878, 7
        %v2880 = vsub.s32 0, %v2879
        %v2881 = vrot.slane %v2876, %v2880
        %v2899 = vunpack.c.l.b16 %v2844
        %v2900 = vunpack.c.l.b16 %v2845
        %v2901 = vunpack.c.l.b16 %v2846
        %v2902 = vunpack.c.l.b16 %v2847
        %v2903 = vunpack.c.l.b16 %v2848
        %v2904 = vunpack.c.l.b16 %v2849
        %v2905 = vunpack.c.l.b16 %v2850
        %v2906 = vunpack.c.l.b16 %v2851
        %v2907 = vunpack.c.l.b16 %v2852
        %v2908 = vunpack.c.l.b16 %v2853
        %v2909 = vunpack.c.l.b16 %v2854
        %v2910 = vunpack.c.l.b16 %v2855
        %v2911 = vunpack.c.l.b16 %v2856
        %v2912 = vunpack.c.l.b16 %v2857
        %v2913 = vunpack.c.l.b16 %v2858
        %v2914 = vunpack.c.l.b16 %v2859
        %v2915 = vpack.c.b16 %v2900, %v2899
        %v2916 = vpack.c.b16 %v2902, %v2901
        %v2917 = vpack.c.b16 %v2904, %v2903
        %v2918 = vpack.c.b16 %v2906, %v2905
        %v2919 = vpack.c.b16 %v2908, %v2907
        %v2920 = vpack.c.b16 %v2910, %v2909
        %v2921 = vpack.c.b16 %v2912, %v2911
        %v2922 = vpack.c.b16 %v2914, %v2913
        %v2947 = vunpack.c.l.b16 %v2860
        %v2948 = vunpack.c.l.b16 %v2861
        %v2949 = vunpack.c.l.b16 %v2862
        %v2950 = vunpack.c.l.b16 %v2863
        %v2951 = vunpack.c.l.b16 %v2864
        %v2952 = vunpack.c.l.b16 %v2865
        %v2953 = vunpack.c.l.b16 %v2866
        %v2954 = vunpack.c.l.b16 %v2867
        %v2955 = vunpack.c.l.b16 %v2868
        %v2956 = vunpack.c.l.b16 %v2869
        %v2957 = vunpack.c.l.b16 %v2870
        %v2958 = vunpack.c.l.b16 %v2871
        %v2959 = vunpack.c.l.b16 %v2872
        %v2960 = vunpack.c.l.b16 %v2873
        %v2961 = vunpack.c.l.b16 %v2874
        %v2962 = vunpack.c.l.b16 %v2875
        %v2963 = vpack.c.b16 %v2948, %v2947
        %v2964 = vpack.c.b16 %v2950, %v2949
        %v2965 = vpack.c.b16 %v2952, %v2951
        %v2966 = vpack.c.b16 %v2954, %v2953
        %v2967 = vpack.c.b16 %v2956, %v2955
        %v2968 = vpack.c.b16 %v2958, %v2957
        %v2969 = vpack.c.b16 %v2960, %v2959
        %v2970 = vpack.c.b16 %v2962, %v2961
        %2979 = vmatprep.subr.bf16.mxu0 0
        %2980 = vmatpush1.bf16.msra.mxu0 %v2970
        %2981 = vmatprep.subr.bf16.mxu0 0
        %2982 = vmatpush1.bf16.msra.mxu0 %v2969
        %2983 = vmatprep.subr.bf16.mxu0 0
        %2984 = vmatpush1.bf16.msra.mxu0 %v2968
        %2985 = vmatprep.subr.bf16.mxu0 0
        %2986 = vmatpush1.bf16.msra.mxu0 %v2967
        %2987 = vmatprep.subr.bf16.mxu0 0
        %2988 = vmatpush1.bf16.msra.mxu0 %v2966
        %2989 = vmatprep.subr.bf16.mxu0 0
        %2990 = vmatpush1.bf16.msra.mxu0 %v2965
        %2991 = vmatprep.subr.bf16.mxu0 0
        %2992 = vmatpush1.bf16.msra.mxu0 %v2964
        %2993 = vmatprep.subr.bf16.mxu0 0
        %2994 = vmatpush1.bf16.msra.mxu0 %v2963
        %2995 = vmatprep.subr.bf16.mxu0 0
        %2996 = vmatpush2.bf16.msra.mxu0 0
        %2997 = vmatprep.subr.bf16.mxu0 0
        %2998 = vmatpush2.bf16.msra.mxu0 0
        %2999 = vmatprep.subr.bf16.mxu0 0
        %3000 = vmatpush2.bf16.msra.mxu0 0
        %3001 = vmatprep.subr.bf16.mxu0 0
        %3002 = vmatpush2.bf16.msra.mxu0 0
        %3003 = vmatprep.subr.bf16.mxu0 0
        %3004 = vmatpush2.bf16.msra.mxu0 0
        %3005 = vmatprep.subr.bf16.mxu0 0
        %3006 = vmatpush2.bf16.msra.mxu0 0
        %3007 = vmatprep.subr.bf16.mxu0 0
        %3008 = vmatpush2.bf16.msra.mxu0 0
        %3009 = vmatprep.subr.bf16.mxu0 0
        %3010 = vmatpush2.bf16.msra.mxu0 0
        %3011 = vmatprep.mubr.bf16.mxu0 0
        %3012 = vmatmul.mubr.bf16.gmra.mxu0 %v2915
        %v3013 = vpop.f32.mrf.mxu0
        %v3014 = vadd.f32 %v2881, %v3013
        %v3015 = vpop.f32.mrf.mxu0
        %v3016 = vpop.f32.mrf.mxu0
        %v3017 = vadd.f32 %v2881, %v3016
        %v3018 = vpop.f32.mrf.mxu0
        %3019 = vmatprep.mubr.bf16.mxu0 0
        %3020 = vmatmul.mubr.bf16.gmra.mxu0 %v2916
        %v3021 = vpop.f32.mrf.mxu0
        %v3022 = vadd.f32 %v2881, %v3021
        %v3023 = vpop.f32.mrf.mxu0
        %v3024 = vpop.f32.mrf.mxu0
        %v3025 = vadd.f32 %v2881, %v3024
        %v3026 = vpop.f32.mrf.mxu0
        %3027 = vmatprep.mubr.bf16.mxu0 0
        %3028 = vmatmul.mubr.bf16.gmra.mxu0 %v2917
        %v3029 = vpop.f32.mrf.mxu0
        %v3030 = vadd.f32 %v2881, %v3029
        %v3031 = vpop.f32.mrf.mxu0
        %v3032 = vpop.f32.mrf.mxu0
        %v3033 = vadd.f32 %v2881, %v3032
        %v3034 = vpop.f32.mrf.mxu0
        %3035 = vmatprep.mubr.bf16.mxu0 0
        %3036 = vmatmul.mubr.bf16.gmra.mxu0 %v2918
        %v3037 = vpop.f32.mrf.mxu0
        %v3038 = vadd.f32 %v2881, %v3037
        %v3039 = vpop.f32.mrf.mxu0
        %v3040 = vpop.f32.mrf.mxu0
        %v3041 = vadd.f32 %v2881, %v3040
        %v3042 = vpop.f32.mrf.mxu0
        %3043 = vmatprep.mubr.bf16.mxu0 0
        %3044 = vmatmul.mubr.bf16.gmra.mxu0 %v2919
        %v3045 = vpop.f32.mrf.mxu0
        %v3046 = vadd.f32 %v2881, %v3045
        %v3047 = vpop.f32.mrf.mxu0
        %v3048 = vpop.f32.mrf.mxu0
        %v3049 = vadd.f32 %v2881, %v3048
        %v3050 = vpop.f32.mrf.mxu0
        %3051 = vmatprep.mubr.bf16.mxu0 0
        %3052 = vmatmul.mubr.bf16.gmra.mxu0 %v2920
        %v3053 = vpop.f32.mrf.mxu0
        %v3054 = vadd.f32 %v2881, %v3053
        %v3055 = vpop.f32.mrf.mxu0
        %v3056 = vpop.f32.mrf.mxu0
        %v3057 = vadd.f32 %v2881, %v3056
        %v3058 = vpop.f32.mrf.mxu0
        %3059 = vmatprep.mubr.bf16.mxu0 0
        %3060 = vmatmul.mubr.bf16.gmra.mxu0 %v2921
        %v3061 = vpop.f32.mrf.mxu0
        %v3062 = vadd.f32 %v2881, %v3061
        %v3063 = vpop.f32.mrf.mxu0
        %v3064 = vpop.f32.mrf.mxu0
        %v3065 = vadd.f32 %v2881, %v3064
        %v3066 = vpop.f32.mrf.mxu0
        %3067 = vmatprep.mubr.bf16.mxu0 0
        %3068 = vmatmul.mubr.bf16.gmra.mxu0 %v2922
        %v3069 = vpop.f32.mrf.mxu0
        %v3070 = vadd.f32 %v2881, %v3069
        %v3071 = vpop.f32.mrf.mxu0
        %v3072 = vpop.f32.mrf.mxu0
        %v3073 = vadd.f32 %v2881, %v3072
        %v3074 = vpop.f32.mrf.mxu0
        %3075 = vdwg.mxu0
        %v3076 = vadd.f32 %v3014, %v2782
        %v3077 = vadd.f32 %v3017, %v2785
        %v3078 = vadd.f32 %v3022, %v2790
        %v3079 = vadd.f32 %v3025, %v2793
        %v3080 = vadd.f32 %v3030, %v2798
        %v3081 = vadd.f32 %v3033, %v2801
        %v3082 = vadd.f32 %v3038, %v2806
        %v3083 = vadd.f32 %v3041, %v2809
        %v3084 = vadd.f32 %v3046, %v2814
        %v3085 = vadd.f32 %v3049, %v2817
        %v3086 = vadd.f32 %v3054, %v2822
        %v3087 = vadd.f32 %v3057, %v2825
        %v3088 = vadd.f32 %v3062, %v2830
        %v3089 = vadd.f32 %v3065, %v2833
        %v3090 = vadd.f32 %v3070, %v2838
        %v3091 = vadd.f32 %v3073, %v2841
        %v3092 = vpack.c.bf16 %v3077, %v3076
        %v3093 = vpack.c.bf16 %v3079, %v3078
        %v3094 = vpack.c.bf16 %v3081, %v3080
        %v3095 = vpack.c.bf16 %v3083, %v3082
        %v3096 = vpack.c.bf16 %v3085, %v3084
        %v3097 = vpack.c.bf16 %v3087, %v3086
        %v3098 = vpack.c.bf16 %v3089, %v3088
        %v3099 = vpack.c.bf16 %v3091, %v3090
        %v3100 = vld [vmem:[#allocation5] sm:$0xf]
        %v3101 = vld [vmem:[#allocation5 + $0x4] sm:$0xf]
        %v3102 = vld [vmem:[#allocation5 + $0x8] sm:$0xf]
        %v3103 = vld [vmem:[#allocation5 + $0xc] sm:$0xf]
        %v3104 = vld [vmem:[#allocation5 + $0x10] sm:$0xf]
        %v3105 = vld [vmem:[#allocation5 + $0x14] sm:$0xf]
        %v3106 = vld [vmem:[#allocation5 + $0x18] sm:$0xf]
        %v3107 = vld [vmem:[#allocation5 + $0x1c] sm:$0xf]
        %v3108 = vld [vmem:[#allocation5 + $0x20] sm:$0xf]
        %v3109 = vld [vmem:[#allocation5 + $0x24] sm:$0xf]
        %v3110 = vld [vmem:[#allocation5 + $0x28] sm:$0xf]
        %v3111 = vld [vmem:[#allocation5 + $0x2c] sm:$0xf]
        %v3112 = vld [vmem:[#allocation5 + $0x30] sm:$0xf]
        %v3113 = vld [vmem:[#allocation5 + $0x34] sm:$0xf]
        %v3114 = vld [vmem:[#allocation5 + $0x38] sm:$0xf]
        %v3115 = vld [vmem:[#allocation5 + $0x3c] sm:$0xf]
        %v3116 = vld [vmem:[%s10] sm:$0x1]
        %v3118 = vlaneseq
        %v3119 = vshrl.u32 %v3118, 7
        %v3120 = vsub.s32 0, %v3119
        %v3121 = vrot.slane %v3116, %v3120
        %v3139 = vunpack.c.l.b16 %v3100
        %v3140 = vunpack.c.l.b16 %v3101
        %v3141 = vunpack.c.l.b16 %v3102
        %v3142 = vunpack.c.l.b16 %v3103
        %v3143 = vunpack.c.l.b16 %v3104
        %v3144 = vunpack.c.l.b16 %v3105
        %v3145 = vunpack.c.l.b16 %v3106
        %v3146 = vunpack.c.l.b16 %v3107
        %v3147 = vunpack.c.l.b16 %v3108
        %v3148 = vunpack.c.l.b16 %v3109
        %v3149 = vunpack.c.l.b16 %v3110
        %v3150 = vunpack.c.l.b16 %v3111
        %v3151 = vunpack.c.l.b16 %v3112
        %v3152 = vunpack.c.l.b16 %v3113
        %v3153 = vunpack.c.l.b16 %v3114
        %v3154 = vunpack.c.l.b16 %v3115
        %v3155 = vpack.c.b16 %v3140, %v3139
        %v3156 = vpack.c.b16 %v3142, %v3141
        %v3157 = vpack.c.b16 %v3144, %v3143
        %v3158 = vpack.c.b16 %v3146, %v3145
        %v3159 = vpack.c.b16 %v3148, %v3147
        %v3160 = vpack.c.b16 %v3150, %v3149
        %v3161 = vpack.c.b16 %v3152, %v3151
        %v3162 = vpack.c.b16 %v3154, %v3153
        %3171 = vmatprep.subr.bf16.mxu0 0
        %3172 = vmatpush1.bf16.msra.mxu0 %v3162
        %3173 = vmatprep.subr.bf16.mxu0 0
        %3174 = vmatpush1.bf16.msra.mxu0 %v3161
        %3175 = vmatprep.subr.bf16.mxu0 0
        %3176 = vmatpush1.bf16.msra.mxu0 %v3160
        %3177 = vmatprep.subr.bf16.mxu0 0
        %3178 = vmatpush1.bf16.msra.mxu0 %v3159
        %3179 = vmatprep.subr.bf16.mxu0 0
        %3180 = vmatpush1.bf16.msra.mxu0 %v3158
        %3181 = vmatprep.subr.bf16.mxu0 0
        %3182 = vmatpush1.bf16.msra.mxu0 %v3157
        %3183 = vmatprep.subr.bf16.mxu0 0
        %3184 = vmatpush1.bf16.msra.mxu0 %v3156
        %3185 = vmatprep.subr.bf16.mxu0 0
        %3186 = vmatpush1.bf16.msra.mxu0 %v3155
        %3187 = vmatprep.subr.bf16.mxu0 0
        %3188 = vmatpush2.bf16.msra.mxu0 0
        %3189 = vmatprep.subr.bf16.mxu0 0
        %3190 = vmatpush2.bf16.msra.mxu0 0
        %3191 = vmatprep.subr.bf16.mxu0 0
        %3192 = vmatpush2.bf16.msra.mxu0 0
        %3193 = vmatprep.subr.bf16.mxu0 0
        %3194 = vmatpush2.bf16.msra.mxu0 0
        %3195 = vmatprep.subr.bf16.mxu0 0
        %3196 = vmatpush2.bf16.msra.mxu0 0
        %3197 = vmatprep.subr.bf16.mxu0 0
        %3198 = vmatpush2.bf16.msra.mxu0 0
        %3199 = vmatprep.subr.bf16.mxu0 0
        %3200 = vmatpush2.bf16.msra.mxu0 0
        %3201 = vmatprep.subr.bf16.mxu0 0
        %3202 = vmatpush2.bf16.msra.mxu0 0
        %3203 = vmatprep.mubr.bf16.mxu0 0
        %3204 = vmatmul.mubr.bf16.gmra.mxu0 %v3092
        %v3205 = vpop.f32.mrf.mxu0
        %v3206 = vadd.f32 %v3121, %v3205
        %v3207 = vpop.f32.mrf.mxu0
        %v3208 = vpop.f32.mrf.mxu0
        %v3209 = vadd.f32 %v3121, %v3208
        %v3210 = vpop.f32.mrf.mxu0
        %3211 = vmatprep.mubr.bf16.mxu0 0
        %3212 = vmatmul.mubr.bf16.gmra.mxu0 %v3093
        %v3213 = vpop.f32.mrf.mxu0
        %v3214 = vadd.f32 %v3121, %v3213
        %v3215 = vpop.f32.mrf.mxu0
        %v3216 = vpop.f32.mrf.mxu0
        %v3217 = vadd.f32 %v3121, %v3216
        %v3218 = vpop.f32.mrf.mxu0
        %3219 = vmatprep.mubr.bf16.mxu0 0
        %3220 = vmatmul.mubr.bf16.gmra.mxu0 %v3094
        %v3221 = vpop.f32.mrf.mxu0
        %v3222 = vadd.f32 %v3121, %v3221
        %v3223 = vpop.f32.mrf.mxu0
        %v3224 = vpop.f32.mrf.mxu0
        %v3225 = vadd.f32 %v3121, %v3224
        %v3226 = vpop.f32.mrf.mxu0
        %3227 = vmatprep.mubr.bf16.mxu0 0
        %3228 = vmatmul.mubr.bf16.gmra.mxu0 %v3095
        %v3229 = vpop.f32.mrf.mxu0
        %v3230 = vadd.f32 %v3121, %v3229
        %v3231 = vpop.f32.mrf.mxu0
        %v3232 = vpop.f32.mrf.mxu0
        %v3233 = vadd.f32 %v3121, %v3232
        %v3234 = vpop.f32.mrf.mxu0
        %3235 = vmatprep.mubr.bf16.mxu0 0
        %3236 = vmatmul.mubr.bf16.gmra.mxu0 %v3096
        %v3237 = vpop.f32.mrf.mxu0
        %v3238 = vadd.f32 %v3121, %v3237
        %v3239 = vpop.f32.mrf.mxu0
        %v3240 = vpop.f32.mrf.mxu0
        %v3241 = vadd.f32 %v3121, %v3240
        %v3242 = vpop.f32.mrf.mxu0
        %3243 = vmatprep.mubr.bf16.mxu0 0
        %3244 = vmatmul.mubr.bf16.gmra.mxu0 %v3097
        %v3245 = vpop.f32.mrf.mxu0
        %v3246 = vadd.f32 %v3121, %v3245
        %v3247 = vpop.f32.mrf.mxu0
        %v3248 = vpop.f32.mrf.mxu0
        %v3249 = vadd.f32 %v3121, %v3248
        %v3250 = vpop.f32.mrf.mxu0
        %3251 = vmatprep.mubr.bf16.mxu0 0
        %3252 = vmatmul.mubr.bf16.gmra.mxu0 %v3098
        %v3253 = vpop.f32.mrf.mxu0
        %v3254 = vadd.f32 %v3121, %v3253
        %v3255 = vpop.f32.mrf.mxu0
        %v3256 = vpop.f32.mrf.mxu0
        %v3257 = vadd.f32 %v3121, %v3256
        %v3258 = vpop.f32.mrf.mxu0
        %3259 = vmatprep.mubr.bf16.mxu0 0
        %3260 = vmatmul.mubr.bf16.gmra.mxu0 %v3099
        %v3261 = vpop.f32.mrf.mxu0
        %v3262 = vadd.f32 %v3121, %v3261
        %v3263 = vpop.f32.mrf.mxu0
        %v3264 = vpop.f32.mrf.mxu0
        %v3265 = vadd.f32 %v3121, %v3264
        %v3266 = vpop.f32.mrf.mxu0
        %3267 = vdwg.mxu0
        %v3268 = vmax.f32 %v3206, 0.0
        %v3269 = vmax.f32 %v3209, 0.0
        %v3270 = vmax.f32 %v3214, 0.0
        %v3271 = vmax.f32 %v3217, 0.0
        %v3272 = vmax.f32 %v3222, 0.0
        %v3273 = vmax.f32 %v3225, 0.0
        %v3274 = vmax.f32 %v3230, 0.0
        %v3275 = vmax.f32 %v3233, 0.0
        %v3276 = vmax.f32 %v3238, 0.0
        %v3277 = vmax.f32 %v3241, 0.0
        %v3278 = vmax.f32 %v3246, 0.0
        %v3279 = vmax.f32 %v3249, 0.0
        %v3280 = vmax.f32 %v3254, 0.0
        %v3281 = vmax.f32 %v3257, 0.0
        %v3282 = vmax.f32 %v3262, 0.0
        %v3283 = vmax.f32 %v3265, 0.0
        %v3284 = vpack.c.bf16 %v3269, %v3268
        %v3285 = vpack.c.bf16 %v3271, %v3270
        %v3286 = vpack.c.bf16 %v3273, %v3272
        %v3287 = vpack.c.bf16 %v3275, %v3274
        %v3288 = vpack.c.bf16 %v3277, %v3276
        %v3289 = vpack.c.bf16 %v3279, %v3278
        %v3290 = vpack.c.bf16 %v3281, %v3280
        %v3291 = vpack.c.bf16 %v3283, %v3282
        %v3292 = vld [vmem:[#allocation7] sm:$0xf]
        %v3293 = vld [vmem:[#allocation7 + $0x4] sm:$0xf]
        %v3294 = vld [vmem:[#allocation7 + $0x8] sm:$0xf]
        %v3295 = vld [vmem:[#allocation7 + $0xc] sm:$0xf]
        %v3296 = vld [vmem:[#allocation7 + $0x10] sm:$0xf]
        %v3297 = vld [vmem:[#allocation7 + $0x14] sm:$0xf]
        %v3298 = vld [vmem:[#allocation7 + $0x18] sm:$0xf]
        %v3299 = vld [vmem:[#allocation7 + $0x1c] sm:$0xf]
        %v3300 = vld [vmem:[#allocation7 + $0x20] sm:$0xf]
        %v3301 = vld [vmem:[#allocation7 + $0x24] sm:$0xf]
        %v3302 = vld [vmem:[#allocation7 + $0x28] sm:$0xf]
        %v3303 = vld [vmem:[#allocation7 + $0x2c] sm:$0xf]
        %v3304 = vld [vmem:[#allocation7 + $0x30] sm:$0xf]
        %v3305 = vld [vmem:[#allocation7 + $0x34] sm:$0xf]
        %v3306 = vld [vmem:[#allocation7 + $0x38] sm:$0xf]
        %v3307 = vld [vmem:[#allocation7 + $0x3c] sm:$0xf]
        %v3308 = vld [vmem:[%s12] sm:$0x1]
        %v3310 = vlaneseq
        %v3311 = vshrl.u32 %v3310, 7
        %v3312 = vsub.s32 0, %v3311
        %v3313 = vrot.slane %v3308, %v3312
        %v3331 = vunpack.c.l.b16 %v3292
        %v3332 = vunpack.c.l.b16 %v3293
        %v3333 = vunpack.c.l.b16 %v3294
        %v3334 = vunpack.c.l.b16 %v3295
        %v3335 = vunpack.c.l.b16 %v3296
        %v3336 = vunpack.c.l.b16 %v3297
        %v3337 = vunpack.c.l.b16 %v3298
        %v3338 = vunpack.c.l.b16 %v3299
        %v3339 = vunpack.c.l.b16 %v3300
        %v3340 = vunpack.c.l.b16 %v3301
        %v3341 = vunpack.c.l.b16 %v3302
        %v3342 = vunpack.c.l.b16 %v3303
        %v3343 = vunpack.c.l.b16 %v3304
        %v3344 = vunpack.c.l.b16 %v3305
        %v3345 = vunpack.c.l.b16 %v3306
        %v3346 = vunpack.c.l.b16 %v3307
        %v3347 = vpack.c.b16 %v3332, %v3331
        %v3348 = vpack.c.b16 %v3334, %v3333
        %v3349 = vpack.c.b16 %v3336, %v3335
        %v3350 = vpack.c.b16 %v3338, %v3337
        %v3351 = vpack.c.b16 %v3340, %v3339
        %v3352 = vpack.c.b16 %v3342, %v3341
        %v3353 = vpack.c.b16 %v3344, %v3343
        %v3354 = vpack.c.b16 %v3346, %v3345
        %3363 = vmatprep.subr.bf16.mxu0 0
        %3364 = vmatpush1.bf16.msra.mxu0 %v3354
        %3365 = vmatprep.subr.bf16.mxu0 0
        %3366 = vmatpush1.bf16.msra.mxu0 %v3353
        %3367 = vmatprep.subr.bf16.mxu0 0
        %3368 = vmatpush1.bf16.msra.mxu0 %v3352
        %3369 = vmatprep.subr.bf16.mxu0 0
        %3370 = vmatpush1.bf16.msra.mxu0 %v3351
        %3371 = vmatprep.subr.bf16.mxu0 0
        %3372 = vmatpush1.bf16.msra.mxu0 %v3350
        %3373 = vmatprep.subr.bf16.mxu0 0
        %3374 = vmatpush1.bf16.msra.mxu0 %v3349
        %3375 = vmatprep.subr.bf16.mxu0 0
        %3376 = vmatpush1.bf16.msra.mxu0 %v3348
        %3377 = vmatprep.subr.bf16.mxu0 0
        %3378 = vmatpush1.bf16.msra.mxu0 %v3347
        %3379 = vmatprep.subr.bf16.mxu0 0
        %3380 = vmatpush2.bf16.msra.mxu0 0
        %3381 = vmatprep.subr.bf16.mxu0 0
        %3382 = vmatpush2.bf16.msra.mxu0 0
        %3383 = vmatprep.subr.bf16.mxu0 0
        %3384 = vmatpush2.bf16.msra.mxu0 0
        %3385 = vmatprep.subr.bf16.mxu0 0
        %3386 = vmatpush2.bf16.msra.mxu0 0
        %3387 = vmatprep.subr.bf16.mxu0 0
        %3388 = vmatpush2.bf16.msra.mxu0 0
        %3389 = vmatprep.subr.bf16.mxu0 0
        %3390 = vmatpush2.bf16.msra.mxu0 0
        %3391 = vmatprep.subr.bf16.mxu0 0
        %3392 = vmatpush2.bf16.msra.mxu0 0
        %3393 = vmatprep.subr.bf16.mxu0 0
        %3394 = vmatpush2.bf16.msra.mxu0 0
        %3395 = vmatprep.mubr.bf16.mxu0 0
        %3396 = vmatmul.mubr.bf16.gmra.mxu0 %v3284
        %v3397 = vpop.f32.mrf.mxu0
        %v3398 = vadd.f32 %v3313, %v3397
        %v3399 = vpop.f32.mrf.mxu0
        %v3400 = vpop.f32.mrf.mxu0
        %v3401 = vadd.f32 %v3313, %v3400
        %v3402 = vpop.f32.mrf.mxu0
        %3403 = vmatprep.mubr.bf16.mxu0 0
        %3404 = vmatmul.mubr.bf16.gmra.mxu0 %v3285
        %v3405 = vpop.f32.mrf.mxu0
        %v3406 = vadd.f32 %v3313, %v3405
        %v3407 = vpop.f32.mrf.mxu0
        %v3408 = vpop.f32.mrf.mxu0
        %v3409 = vadd.f32 %v3313, %v3408
        %v3410 = vpop.f32.mrf.mxu0
        %3411 = vmatprep.mubr.bf16.mxu0 0
        %3412 = vmatmul.mubr.bf16.gmra.mxu0 %v3286
        %v3413 = vpop.f32.mrf.mxu0
        %v3414 = vadd.f32 %v3313, %v3413
        %v3415 = vpop.f32.mrf.mxu0
        %v3416 = vpop.f32.mrf.mxu0
        %v3417 = vadd.f32 %v3313, %v3416
        %v3418 = vpop.f32.mrf.mxu0
        %3419 = vmatprep.mubr.bf16.mxu0 0
        %3420 = vmatmul.mubr.bf16.gmra.mxu0 %v3287
        %v3421 = vpop.f32.mrf.mxu0
        %v3422 = vadd.f32 %v3313, %v3421
        %v3423 = vpop.f32.mrf.mxu0
        %v3424 = vpop.f32.mrf.mxu0
        %v3425 = vadd.f32 %v3313, %v3424
        %v3426 = vpop.f32.mrf.mxu0
        %3427 = vmatprep.mubr.bf16.mxu0 0
        %3428 = vmatmul.mubr.bf16.gmra.mxu0 %v3288
        %v3429 = vpop.f32.mrf.mxu0
        %v3430 = vadd.f32 %v3313, %v3429
        %v3431 = vpop.f32.mrf.mxu0
        %v3432 = vpop.f32.mrf.mxu0
        %v3433 = vadd.f32 %v3313, %v3432
        %v3434 = vpop.f32.mrf.mxu0
        %3435 = vmatprep.mubr.bf16.mxu0 0
        %3436 = vmatmul.mubr.bf16.gmra.mxu0 %v3289
        %v3437 = vpop.f32.mrf.mxu0
        %v3438 = vadd.f32 %v3313, %v3437
        %v3439 = vpop.f32.mrf.mxu0
        %v3440 = vpop.f32.mrf.mxu0
        %v3441 = vadd.f32 %v3313, %v3440
        %v3442 = vpop.f32.mrf.mxu0
        %3443 = vmatprep.mubr.bf16.mxu0 0
        %3444 = vmatmul.mubr.bf16.gmra.mxu0 %v3290
        %v3445 = vpop.f32.mrf.mxu0
        %v3446 = vadd.f32 %v3313, %v3445
        %v3447 = vpop.f32.mrf.mxu0
        %v3448 = vpop.f32.mrf.mxu0
        %v3449 = vadd.f32 %v3313, %v3448
        %v3450 = vpop.f32.mrf.mxu0
        %3451 = vmatprep.mubr.bf16.mxu0 0
        %3452 = vmatmul.mubr.bf16.gmra.mxu0 %v3291
        %v3453 = vpop.f32.mrf.mxu0
        %v3454 = vadd.f32 %v3313, %v3453
        %v3455 = vpop.f32.mrf.mxu0
        %v3456 = vpop.f32.mrf.mxu0
        %v3457 = vadd.f32 %v3313, %v3456
        %v3458 = vpop.f32.mrf.mxu0
        %3459 = vdwg.mxu0
        %v3460 = vmax.f32 %v3398, 0.0
        %v3461 = vmax.f32 %v3401, 0.0
        %v3462 = vmax.f32 %v3406, 0.0
        %v3463 = vmax.f32 %v3409, 0.0
        %v3464 = vmax.f32 %v3414, 0.0
        %v3465 = vmax.f32 %v3417, 0.0
        %v3466 = vmax.f32 %v3422, 0.0
        %v3467 = vmax.f32 %v3425, 0.0
        %v3468 = vmax.f32 %v3430, 0.0
        %v3469 = vmax.f32 %v3433, 0.0
        %v3470 = vmax.f32 %v3438, 0.0
        %v3471 = vmax.f32 %v3441, 0.0
        %v3472 = vmax.f32 %v3446, 0.0
        %v3473 = vmax.f32 %v3449, 0.0
        %v3474 = vmax.f32 %v3454, 0.0
        %v3475 = vmax.f32 %v3457, 0.0
        %v3476 = vpack.c.bf16 %v3461, %v3460
        %v3477 = vpack.c.bf16 %v3463, %v3462
        %v3478 = vpack.c.bf16 %v3465, %v3464
        %v3479 = vpack.c.bf16 %v3467, %v3466
        %v3480 = vpack.c.bf16 %v3469, %v3468
        %v3481 = vpack.c.bf16 %v3471, %v3470
        %v3482 = vpack.c.bf16 %v3473, %v3472
        %v3483 = vpack.c.bf16 %v3475, %v3474
        %v3484 = vld [vmem:[#allocation8] sm:$0xf]
        %v3485 = vld [vmem:[#allocation8 + $0x4] sm:$0xf]
        %v3486 = vld [vmem:[#allocation8 + $0x8] sm:$0xf]
        %v3487 = vld [vmem:[#allocation8 + $0xc] sm:$0xf]
        %v3488 = vld [vmem:[#allocation8 + $0x10] sm:$0xf]
        %v3489 = vld [vmem:[#allocation8 + $0x14] sm:$0xf]
        %v3490 = vld [vmem:[#allocation8 + $0x18] sm:$0xf]
        %v3491 = vld [vmem:[#allocation8 + $0x1c] sm:$0xf]
        %v3492 = vld [vmem:[#allocation8 + $0x20] sm:$0xf]
        %v3493 = vld [vmem:[#allocation8 + $0x24] sm:$0xf]
        %v3494 = vld [vmem:[#allocation8 + $0x28] sm:$0xf]
        %v3495 = vld [vmem:[#allocation8 + $0x2c] sm:$0xf]
        %v3496 = vld [vmem:[#allocation8 + $0x30] sm:$0xf]
        %v3497 = vld [vmem:[#allocation8 + $0x34] sm:$0xf]
        %v3498 = vld [vmem:[#allocation8 + $0x38] sm:$0xf]
        %v3499 = vld [vmem:[#allocation8 + $0x3c] sm:$0xf]
        %v3500 = vld [vmem:[%s14] sm:$0x1]
        %v3502 = vlaneseq
        %v3503 = vshrl.u32 %v3502, 7
        %v3504 = vsub.s32 0, %v3503
        %v3505 = vrot.slane %v3500, %v3504
        %v3523 = vunpack.c.l.b16 %v3484
        %v3524 = vunpack.c.l.b16 %v3485
        %v3525 = vunpack.c.l.b16 %v3486
        %v3526 = vunpack.c.l.b16 %v3487
        %v3527 = vunpack.c.l.b16 %v3488
        %v3528 = vunpack.c.l.b16 %v3489
        %v3529 = vunpack.c.l.b16 %v3490
        %v3530 = vunpack.c.l.b16 %v3491
        %v3531 = vunpack.c.l.b16 %v3492
        %v3532 = vunpack.c.l.b16 %v3493
        %v3533 = vunpack.c.l.b16 %v3494
        %v3534 = vunpack.c.l.b16 %v3495
        %v3535 = vunpack.c.l.b16 %v3496
        %v3536 = vunpack.c.l.b16 %v3497
        %v3537 = vunpack.c.l.b16 %v3498
        %v3538 = vunpack.c.l.b16 %v3499
        %v3539 = vpack.c.b16 %v3524, %v3523
        %v3540 = vpack.c.b16 %v3526, %v3525
        %v3541 = vpack.c.b16 %v3528, %v3527
        %v3542 = vpack.c.b16 %v3530, %v3529
        %v3543 = vpack.c.b16 %v3532, %v3531
        %v3544 = vpack.c.b16 %v3534, %v3533
        %v3545 = vpack.c.b16 %v3536, %v3535
        %v3546 = vpack.c.b16 %v3538, %v3537
        %3555 = vmatprep.subr.bf16.mxu0 0
        %3556 = vmatpush1.bf16.msra.mxu0 %v3546
        %3557 = vmatprep.subr.bf16.mxu0 0
        %3558 = vmatpush1.bf16.msra.mxu0 %v3545
        %3559 = vmatprep.subr.bf16.mxu0 0
        %3560 = vmatpush1.bf16.msra.mxu0 %v3544
        %3561 = vmatprep.subr.bf16.mxu0 0
        %3562 = vmatpush1.bf16.msra.mxu0 %v3543
        %3563 = vmatprep.subr.bf16.mxu0 0
        %3564 = vmatpush1.bf16.msra.mxu0 %v3542
        %3565 = vmatprep.subr.bf16.mxu0 0
        %3566 = vmatpush1.bf16.msra.mxu0 %v3541
        %3567 = vmatprep.subr.bf16.mxu0 0
        %3568 = vmatpush1.bf16.msra.mxu0 %v3540
        %3569 = vmatprep.subr.bf16.mxu0 0
        %3570 = vmatpush1.bf16.msra.mxu0 %v3539
        %3571 = vmatprep.subr.bf16.mxu0 0
        %3572 = vmatpush2.bf16.msra.mxu0 0
        %3573 = vmatprep.subr.bf16.mxu0 0
        %3574 = vmatpush2.bf16.msra.mxu0 0
        %3575 = vmatprep.subr.bf16.mxu0 0
        %3576 = vmatpush2.bf16.msra.mxu0 0
        %3577 = vmatprep.subr.bf16.mxu0 0
        %3578 = vmatpush2.bf16.msra.mxu0 0
        %3579 = vmatprep.subr.bf16.mxu0 0
        %3580 = vmatpush2.bf16.msra.mxu0 0
        %3581 = vmatprep.subr.bf16.mxu0 0
        %3582 = vmatpush2.bf16.msra.mxu0 0
        %3583 = vmatprep.subr.bf16.mxu0 0
        %3584 = vmatpush2.bf16.msra.mxu0 0
        %3585 = vmatprep.subr.bf16.mxu0 0
        %3586 = vmatpush2.bf16.msra.mxu0 0
        %3587 = vmatprep.mubr.bf16.mxu0 0
        %3588 = vmatmul.mubr.bf16.gmra.mxu0 %v3476
        %v3589 = vpop.f32.mrf.mxu0
        %v3590 = vadd.f32 %v3505, %v3589
        %v3591 = vpop.f32.mrf.mxu0
        %v3592 = vpop.f32.mrf.mxu0
        %v3593 = vadd.f32 %v3505, %v3592
        %v3594 = vpop.f32.mrf.mxu0
        %3595 = vmatprep.mubr.bf16.mxu0 0
        %3596 = vmatmul.mubr.bf16.gmra.mxu0 %v3477
        %v3597 = vpop.f32.mrf.mxu0
        %v3598 = vadd.f32 %v3505, %v3597
        %v3599 = vpop.f32.mrf.mxu0
        %v3600 = vpop.f32.mrf.mxu0
        %v3601 = vadd.f32 %v3505, %v3600
        %v3602 = vpop.f32.mrf.mxu0
        %3603 = vmatprep.mubr.bf16.mxu0 0
        %3604 = vmatmul.mubr.bf16.gmra.mxu0 %v3478
        %v3605 = vpop.f32.mrf.mxu0
        %v3606 = vadd.f32 %v3505, %v3605
        %v3607 = vpop.f32.mrf.mxu0
        %v3608 = vpop.f32.mrf.mxu0
        %v3609 = vadd.f32 %v3505, %v3608
        %v3610 = vpop.f32.mrf.mxu0
        %3611 = vmatprep.mubr.bf16.mxu0 0
        %3612 = vmatmul.mubr.bf16.gmra.mxu0 %v3479
        %v3613 = vpop.f32.mrf.mxu0
        %v3614 = vadd.f32 %v3505, %v3613
        %v3615 = vpop.f32.mrf.mxu0
        %v3616 = vpop.f32.mrf.mxu0
        %v3617 = vadd.f32 %v3505, %v3616
        %v3618 = vpop.f32.mrf.mxu0
        %3619 = vmatprep.mubr.bf16.mxu0 0
        %3620 = vmatmul.mubr.bf16.gmra.mxu0 %v3480
        %v3621 = vpop.f32.mrf.mxu0
        %v3622 = vadd.f32 %v3505, %v3621
        %v3623 = vpop.f32.mrf.mxu0
        %v3624 = vpop.f32.mrf.mxu0
        %v3625 = vadd.f32 %v3505, %v3624
        %v3626 = vpop.f32.mrf.mxu0
        %3627 = vmatprep.mubr.bf16.mxu0 0
        %3628 = vmatmul.mubr.bf16.gmra.mxu0 %v3481
        %v3629 = vpop.f32.mrf.mxu0
        %v3630 = vadd.f32 %v3505, %v3629
        %v3631 = vpop.f32.mrf.mxu0
        %v3632 = vpop.f32.mrf.mxu0
        %v3633 = vadd.f32 %v3505, %v3632
        %v3634 = vpop.f32.mrf.mxu0
        %3635 = vmatprep.mubr.bf16.mxu0 0
        %3636 = vmatmul.mubr.bf16.gmra.mxu0 %v3482
        %v3637 = vpop.f32.mrf.mxu0
        %v3638 = vadd.f32 %v3505, %v3637
        %v3639 = vpop.f32.mrf.mxu0
        %v3640 = vpop.f32.mrf.mxu0
        %v3641 = vadd.f32 %v3505, %v3640
        %v3642 = vpop.f32.mrf.mxu0
        %3643 = vmatprep.mubr.bf16.mxu0 0
        %3644 = vmatmul.mubr.bf16.gmra.mxu0 %v3483
        %v3645 = vpop.f32.mrf.mxu0
        %v3646 = vadd.f32 %v3505, %v3645
        %v3647 = vpop.f32.mrf.mxu0
        %v3648 = vpop.f32.mrf.mxu0
        %v3649 = vadd.f32 %v3505, %v3648
        %v3650 = vpop.f32.mrf.mxu0
        %3651 = vdwg.mxu0
        %3652 = vst [vmem:[%s563] sm:$0xff] %v3590
        %3653 = vst [vmem:[%s563 + $0x8] sm:$0xff] %v3593
        %3654 = vst [vmem:[%s563 + $0x10] sm:$0xff] %v3598
        %3655 = vst [vmem:[%s563 + $0x18] sm:$0xff] %v3601
        %3656 = vst [vmem:[%s563 + $0x20] sm:$0xff] %v3606
        %3657 = vst [vmem:[%s563 + $0x28] sm:$0xff] %v3609
        %3658 = vst [vmem:[%s563 + $0x30] sm:$0xff] %v3614
        %3659 = vst [vmem:[%s563 + $0x38] sm:$0xff] %v3617
        %3660 = vst [vmem:[%s563 + $0x40] sm:$0xff] %v3622
        %3661 = vst [vmem:[%s563 + $0x48] sm:$0xff] %v3625
        %3662 = vst [vmem:[%s563 + $0x50] sm:$0xff] %v3630
        %3663 = vst [vmem:[%s563 + $0x58] sm:$0xff] %v3633
        %3664 = vst [vmem:[%s563 + $0x60] sm:$0xff] %v3638
        %3665 = vst [vmem:[%s563 + $0x68] sm:$0xff] %v3641
        %3666 = vst [vmem:[%s563 + $0x70] sm:$0xff] %v3646
        %3667 = vst [vmem:[%s563 + $0x78] sm:$0xff] %v3649
        %s3668 = sand.u32 %s365, 1
        %s3669 = scalar_lea.sflag [#allocation4], %s3668
        %s3670 = sand.u32 %s365, 1
        %s3671 = smul.addr %s3670, 128
        %s3672 = scalar_lea.vmem [#allocation10], %s3671
        // Predicated region
        $region97: #{tpu_custom_call.1} parent=79 // pred_check
          %p3673 = pneg %p375
        $region98: #{tpu_custom_call.1} parent=79 // pred_check_branch
          %3675 = sbr.rel (%p3673) target = $region100
        $region99: #{tpu_custom_call.1} parent=79 // pred_region
          %s3676 = smul.u32 16, %s32
          %s3678 = ssub.s32 2048, 2048
          %3679 = vsyncadd %s3669, %s3678
          %s3680 = smul.addr %s3676, 128
          %s3681 = scalar_lea.hbm %s15, %s3680
          %s3682 = sshll.u32 %s3672, 4
          %s3683 = int_to_ptr.vmem [resolvable:$true] %s3682
          %3688 = dma.vmem_to_hbm [thread:$0]  %s3683, 2048, %s3681, %s3669, 128, 128, 8
        $region100: #{tpu_custom_call.1} parent=79 // pred_fallthru
          _
      $region80: #{tpu_custom_call.1} parent=5 // pred_fallthru
        _
      %p3689 = scmp.le.s32.totalorder 2, %s27
      // Predicated region
      $region101: #{tpu_custom_call.1} parent=5 // pred_check
        %p3690 = pneg %p3689
      $region102: #{tpu_custom_call.1} parent=5 // pred_check_branch
        %3692 = sbr.rel (%p3690) target = $region104
      $region103: #{tpu_custom_call.1} parent=5 // pred_region
        %s3693 = ssub.s32 %s27, 2
        // Predicated region
        $region105: #{tpu_custom_call.1} parent=103 // pred_check
          %p3694 = pneg %p381
        $region106: #{tpu_custom_call.1} parent=103 // pred_check_branch
          %3696 = sbr.rel (%p3694) target = $region108
        $region107: #{tpu_custom_call.1} parent=103 // pred_region
          %s3697 = sand.u32 %s366, 1
          %s3698 = scalar_lea.sflag [#allocation4], %s3697
          %s3699 = sand.u32 %s366, 1
          %s3700 = smul.addr %s3699, 128
          %s3701 = scalar_lea.vmem [#allocation10], %s3700
          %3702 = dma.done %s3698, 2048
        $region108: #{tpu_custom_call.1} parent=103 // pred_fallthru
          _
      $region104: #{tpu_custom_call.1} parent=5 // pred_fallthru
        _
    $region6: #{tpu_custom_call.1} parent=1 // loop_footer
      %s31 = sadd.s32 1, %s27
    $region7: #{tpu_custom_call.1} parent=1 // loop_footer_branch
      %26 = sbr.rel target = $region3
    $region8: #{tpu_custom_call.1} parent=1 // loop_exit
      _
    %3703 = vsyncpa [#allocation3], 1
    %s3704 = scalar_lea.sflag [#allocation3], 1
    %3705 = vsyncpa %s3704, 1
    %3706 = vsyncpa [#allocation6], 1
    %3707 = vsyncpa [#allocation9], 1
    %3708 = vsyncpa [#allocation4], 1
    %s3709 = scalar_lea.sflag [#allocation4], 1
    %3710 = vsyncpa %s3709, 1

</llo_original>
